<compile_context>
chip_gen: v7x
topology: tpu7x:2x2x1
jax: 0.10.0
libtpu: 0.0.40
codegen_flags: <defaults>
</compile_context>

<pallas_src>
import jax
import jax.numpy as jnp
import numpy as np
from jax import lax
from jax.experimental import pallas as pl
from jax.experimental.pallas import tpu as pltpu


def _round_up(n, m):
    return ((n + m - 1) // m) * m


def _choose_t_blk(T, b_blk, din, hidden, o_pad, budget_bytes=24 << 20):
    """Largest time block whose tiles+scratch fit a conservative VMEM budget."""
    per_t = 4 * b_blk * (2 * din + 2 * o_pad + 5 * hidden)   # f32 bytes / timestep
    return max(1, min(T, budget_bytes // max(per_t, 1)))


def _vmem_limit(rows_blk, b_blk, din, hidden, o_pad, num_layers, wih_rows):
    """Derive vmem_limit_bytes from the actual footprint (cap < v7x 64 MiB)."""
    f32 = 4
    h4 = 4 * hidden
    tiles = 2 * rows_blk * din * f32 + 2 * rows_blk * o_pad * f32   # double-buffered I/O
    weights = 2 * f32 * (sum(r * h4 for r in wih_rows)
                         + num_layers * (hidden * h4 + h4)
                         + hidden * o_pad + o_pad)
    scratch = f32 * (rows_blk * h4 + rows_blk * hidden
                     + 2 * num_layers * b_blk * hidden)
    total = tiles + weights + scratch
    return int(min(max(2 * total, 16 << 20), 56 << 20))


# ----------------------------------------------------------------------------
# Fused Decoder kernel: all LSTM layers + linear head in one pallas_call.
# Grid = (time blocks,) ["arbitrary"]; h/c scratch carries the recurrence.
# ----------------------------------------------------------------------------
def _make_decoder_kernel(num_layers, hidden, t_blk, b_blk):
    h4 = 4 * hidden
    # unroll that divides t_blk (full unroll for short blocks).
    if t_blk <= 8:
        unroll = t_blk
    elif t_blk % 8 == 0:
        unroll = 8
    elif t_blk % 4 == 0:
        unroll = 4
    elif t_blk % 2 == 0:
        unroll = 2
    else:
        unroll = 1

    def kernel(*refs):
        x_ref = refs[0]                                   # (t_blk*b_blk, Din)
        w_refs = refs[1:1 + 3 * num_layers]               # per layer: w_ih, w_hh, bias
        w_head_ref, b_head_ref = refs[1 + 3 * num_layers:3 + 3 * num_layers]
        out_ref = refs[3 + 3 * num_layers]                # (t_blk*b_blk, O_pad)
        xp_scr, act_scr, h_scr, c_scr = refs[4 + 3 * num_layers:]

        # Reset recurrent state at the first time block.
        @pl.when(pl.program_id(0) == 0)
        def _():
            h_scr[...] = jnp.zeros_like(h_scr)
            c_scr[...] = jnp.zeros_like(c_scr)

        # Hoisted lane mask for the full-width activation blend (loop invariant).
        lane = lax.broadcasted_iota(jnp.int32, (b_blk, h4), 1)
        tanh_mask = (lane >= 2 * hidden) & (lane < 3 * hidden)

        for l in range(num_layers):
            w_ih_ref, w_hh_ref, b_ref = w_refs[3 * l:3 * l + 3]

            # Hoisted input projection for the whole time block (bias folded once).
            layer_in = x_ref[...] if l == 0 else act_scr[...]
            xp_scr[...] = (jnp.dot(layer_in, w_ih_ref[...],
                                   preferred_element_type=jnp.float32)
                           + b_ref[...])
            w_hh = w_hh_ref[...]

            def step(t, carry, l=l, w_hh=w_hh):
                row0 = pl.multiple_of(t * b_blk, b_blk)
                # Single lane-dense (B, H) x (H, 4H) matmul on the recurrent path.
                g = xp_scr[pl.ds(row0, b_blk), :] + jnp.dot(
                    h_scr[l], w_hh, preferred_element_type=jnp.float32)
                # Full-width EUP pushes, blended with the hoisted lane mask,
                # then sliced into gate groups for the elementwise combine.
                sig = jax.nn.sigmoid(g)
                tnh = jnp.tanh(g)
                act = jnp.where(tanh_mask, tnh, sig)
                i_g = act[:, 0 * hidden:1 * hidden]
                f_g = act[:, 1 * hidden:2 * hidden]
                g_g = act[:, 2 * hidden:3 * hidden]
                o_g = act[:, 3 * hidden:4 * hidden]

                c_new = f_g * c_scr[l] + i_g * g_g
                h_new = o_g * jnp.tanh(c_new)
                c_scr[l] = c_new
                h_scr[l] = h_new
                act_scr[pl.ds(row0, b_blk), :] = h_new   # VMEM-only store
                return carry

            lax.fori_loop(0, t_blk, step, 0, unroll=unroll)

        # Fused hidden2label head epilogue: one matmul, lane-dense output store.
        out_ref[...] = (jnp.dot(act_scr[...], w_head_ref[...],
                                preferred_element_type=jnp.float32)
                        + b_head_ref[...])

    return kernel


def decoder_forward(params, inputs, *, t_blk=None):
    """inputs: (B, T, input_dim) batch-first -> (B, T, output_dim)."""
    B, T, din = inputs.shape
    layers = params["lstm"]
    num_layers = len(layers)
    hidden = layers[0][1].shape[0]
    w_head, b_head = params["linear"]
    out_dim = w_head.shape[1]
    o_pad = _round_up(max(out_dim, 128), 128)

    b_blk = _round_up(B, 8)                    # fill the f32 sublane granule
    if t_blk is None:
        t_blk = _choose_t_blk(T, b_blk, din, hidden, o_pad)
    t_blk = max(1, min(int(t_blk), T))
    T_pad = _round_up(T, t_blk)                # pad T (forward recurrence -> safe)
    rows_blk = t_blk * b_blk

    # TODO(synk): fold the batch-first<->time-major transpose into the kernel
    # index maps to save an HBM roundtrip of the activations for large T*B.
    x = jnp.transpose(inputs, (1, 0, 2)).astype(jnp.float32)     # (T, B, Din)
    x = jnp.pad(x, ((0, T_pad - T), (0, b_blk - B), (0, 0)))
    x_flat = x.reshape(T_pad * b_blk, din)                       # 2-D flattened

    w_head_pad = jnp.zeros((hidden, o_pad), jnp.float32).at[:, :out_dim].set(w_head)
    b_head_pad = jnp.zeros((1, o_pad), jnp.float32).at[:, :out_dim].set(b_head)

    args = [x_flat]
    in_specs = [pl.BlockSpec((rows_blk, din), lambda i: (i, 0))]
    wih_rows = []
    for (w_ih, w_hh, bias) in layers:
        wih_rows.append(w_ih.shape[0])
        args += [w_ih, w_hh, bias]
        # TODO(synk): pipeline_mode=pl.Buffered(1) on these constant-index
        # weight specs would save one VMEM buffer each when hidden_dim is large.
        in_specs += [pl.BlockSpec(w_ih.shape, lambda i: (0, 0)),
                     pl.BlockSpec(w_hh.shape, lambda i: (0, 0)),
                     pl.BlockSpec(bias.shape, lambda i: (0, 0))]
    args += [w_head_pad, b_head_pad]
    in_specs += [pl.BlockSpec((hidden, o_pad), lambda i: (0, 0)),
                 pl.BlockSpec((1, o_pad), lambda i: (0, 0))]

    kernel = _make_decoder_kernel(num_layers, hidden, t_blk, b_blk)

    y_flat = pl.pallas_call(
        kernel,
        out_shape=jax.ShapeDtypeStruct((T_pad * b_blk, o_pad), jnp.float32),
        grid_spec=pltpu.PrefetchScalarGridSpec(
            num_scalar_prefetch=0,
            grid=(T_pad // t_blk,),
            in_specs=in_specs,
            out_specs=pl.BlockSpec((rows_blk, o_pad), lambda i: (i, 0)),
            scratch_shapes=[
                pltpu.VMEM((rows_blk, 4 * hidden), jnp.float32),        # hoisted x-proj
                pltpu.VMEM((rows_blk, hidden), jnp.float32),            # inter-layer h
                pltpu.VMEM((num_layers, b_blk, hidden), jnp.float32),   # h carry
                pltpu.VMEM((num_layers, b_blk, hidden), jnp.float32),   # c carry
            ],
        ),
        compiler_params=pltpu.CompilerParams(
            dimension_semantics=("arbitrary",),
            vmem_limit_bytes=_vmem_limit(rows_blk, b_blk, din, hidden, o_pad,
                                         num_layers, wih_rows),
        ),
    )(*args)

    y = y_flat.reshape(T_pad, b_blk, o_pad)[:T, :B, :out_dim]
    return jnp.transpose(y, (1, 0, 2))


# ----------------------------------------------------------------------------
# Decoder parameters (mirrors PyTorch __init__; gates fused as i,f,g,o)
# ----------------------------------------------------------------------------
def init_decoder_params(key, input_dim, hidden_dim, output_dim, num_layers):
    params = {"lstm": []}
    k = 1.0 / np.sqrt(hidden_dim)            # nn.LSTM default U(-1/sqrt(H), 1/sqrt(H))
    keys = jax.random.split(key, num_layers * 4 + 2)
    idx = 0
    for layer in range(num_layers):
        din = input_dim if layer == 0 else hidden_dim
        w_ih = jax.random.uniform(keys[idx], (din, 4 * hidden_dim), jnp.float32, -k, k); idx += 1
        w_hh = jax.random.uniform(keys[idx], (hidden_dim, 4 * hidden_dim), jnp.float32, -k, k); idx += 1
        b_ih = jax.random.uniform(keys[idx], (1, 4 * hidden_dim), jnp.float32, -k, k); idx += 1
        b_hh = jax.random.uniform(keys[idx], (1, 4 * hidden_dim), jnp.float32, -k, k); idx += 1
        params["lstm"].append((w_ih, w_hh, b_ih + b_hh))

    # hidden2label: kaiming_uniform_(mode='fan_in', nonlinearity='relu')
    fan_in = hidden_dim
    bound_w = float(np.sqrt(6.0 / fan_in))
    w = jax.random.uniform(keys[idx], (hidden_dim, output_dim), jnp.float32,
                           -bound_w, bound_w); idx += 1
    bound_b = 1.0 / np.sqrt(fan_in)           # default nn.Linear bias init
    b = jax.random.uniform(keys[idx], (1, output_dim), jnp.float32, -bound_b, bound_b)
    params["linear"] = (w, b)
    return params


# ----------------------------------------------------------------------------
# Pure-JAX reference (PyTorch nn.LSTM + nn.Linear semantics)
# ----------------------------------------------------------------------------
def decoder_reference(params, inputs):
    x = inputs                                # (B, T, D)
    B, T, _ = x.shape
    for (w_ih, w_hh, bias) in params["lstm"]:
        H = w_hh.shape[0]
        h = jnp.zeros((B, H), jnp.float32)
        c = jnp.zeros((B, H), jnp.float32)
        outs = []
        for t in range(T):
            g = x[:, t, :] @ w_ih + h @ w_hh + bias
            i_g = jax.nn.sigmoid(g[:, 0 * H:1 * H])
            f_g = jax.nn.sigmoid(g[:, 1 * H:2 * H])
            g_g = jnp.tanh(g[:, 2 * H:3 * H])
            o_g = jax.nn.sigmoid(g[:, 3 * H:4 * H])
            c = f_g * c + i_g * g_g
            h = o_g * jnp.tanh(c)
            outs.append(h)
        x = jnp.stack(outs, axis=1)
    w, b = params["linear"]
    return x @ w + b


# ----------------------------------------------------------------------------
if __name__ == "__main__":
    B, T = 2, 8
    input_dim, hidden_dim, output_dim, num_layers = 16, 32, 8, 2

    key = jax.random.PRNGKey(0)
    k_param, k_input = jax.random.split(key)
    params = init_decoder_params(k_param, input_dim, hidden_dim, output_dim, num_layers)
    inputs = jax.random.normal(k_input, (B, T, input_dim), jnp.float32)

    y_ref = decoder_reference(params, inputs)

    # Fast path: t_blk auto-selects the full sequence (single grid step).
    y = decoder_forward(params, inputs)
    jax.block_until_ready(y)
    np.testing.assert_allclose(np.asarray(y), np.asarray(y_ref), rtol=1e-4, atol=1e-4)
    assert y.shape == (B, T, output_dim)

    # Multi-block path: t_blk=3 exercises the h/c carry across grid steps and
    # the T-padding (T=8 -> T_pad=9) logic.
    y2 = decoder_forward(params, inputs, t_blk=3)
    jax.block_until_ready(y2)
    np.testing.assert_allclose(np.asarray(y2), np.asarray(y_ref), rtol=1e-4, atol=1e-4)

    print("KERNEL_OK")
</pallas_src>

<mosaic_0001>
module attributes {stable_mosaic.version = 11 : i64} {
  func.func @kernel(%arg0: i32, %arg1: memref<64x16xf32, #tpu.memory_space<vmem>>, %arg2: memref<16x128xf32, #tpu.memory_space<vmem>>, %arg3: memref<32x128xf32, #tpu.memory_space<vmem>>, %arg4: memref<1x128xf32, #tpu.memory_space<vmem>>, %arg5: memref<32x128xf32, #tpu.memory_space<vmem>>, %arg6: memref<32x128xf32, #tpu.memory_space<vmem>>, %arg7: memref<1x128xf32, #tpu.memory_space<vmem>>, %arg8: memref<32x128xf32, #tpu.memory_space<vmem>>, %arg9: memref<1x128xf32, #tpu.memory_space<vmem>>, %arg10: memref<64x128xf32, #tpu.memory_space<vmem>>, %arg11: memref<64x128xf32, #tpu.memory_space<vmem>>, %arg12: memref<64x32xf32, #tpu.memory_space<vmem>>, %arg13: memref<2x8x32xf32, #tpu.memory_space<vmem>>, %arg14: memref<2x8x32xf32, #tpu.memory_space<vmem>>) attributes {dimension_semantics = [#tpu.dimension_semantics<arbitrary>], iteration_bounds = array<i64: 1>, scalar_prefetch = 0 : i64, scratch_operands = 4 : i64, tpu.core_type = #tpu.core_type<tc>, window_params = [{transform_indices = @transform_0, window_bounds = array<i64: 64, 16>}, {pipeline_mode = #tpu.pipeline_mode<synchronous>, transform_indices = @transform_1, window_bounds = array<i64: 16, 128>}, {pipeline_mode = #tpu.pipeline_mode<synchronous>, transform_indices = @transform_2, window_bounds = array<i64: 32, 128>}, {pipeline_mode = #tpu.pipeline_mode<synchronous>, transform_indices = @transform_3, window_bounds = array<i64: 1, 128>}, {pipeline_mode = #tpu.pipeline_mode<synchronous>, transform_indices = @transform_4, window_bounds = array<i64: 32, 128>}, {pipeline_mode = #tpu.pipeline_mode<synchronous>, transform_indices = @transform_5, window_bounds = array<i64: 32, 128>}, {pipeline_mode = #tpu.pipeline_mode<synchronous>, transform_indices = @transform_6, window_bounds = array<i64: 1, 128>}, {pipeline_mode = #tpu.pipeline_mode<synchronous>, transform_indices = @transform_7, window_bounds = array<i64: 32, 128>}, {pipeline_mode = #tpu.pipeline_mode<synchronous>, transform_indices = @transform_8, window_bounds = array<i64: 1, 128>}, {transform_indices = @transform_9, window_bounds = array<i64: 64, 128>}]} {
    %c0_i32 = arith.constant 0 : i32
    %0 = arith.cmpi eq, %arg0, %c0_i32 : i32
    %1 = arith.extui %0 : i1 to i32
    %c0_i32_0 = arith.constant 0 : i32
    %2 = arith.cmpi ne, %1, %c0_i32_0 : i32
    scf.if %2 {
      %cst_311 = arith.constant 0.000000e+00 : f32
      %576 = vector.broadcast %cst_311 : f32 to vector<2x8x32xf32>
      %c0_312 = arith.constant 0 : index
      %c0_313 = arith.constant 0 : index
      %c0_314 = arith.constant 0 : index
      %577 = vector.load %arg13[%c0_312, %c0_313, %c0_314] : memref<2x8x32xf32, #tpu.memory_space<vmem>>, vector<2x8x32xf32>
      tpu.vector_store %arg13[%c0_312, %c0_313, %c0_314], %576 {strides = array<i32>} : memref<2x8x32xf32, #tpu.memory_space<vmem>>, vector<2x8x32xf32>,
      %cst_315 = arith.constant 0.000000e+00 : f32
      %578 = vector.broadcast %cst_315 : f32 to vector<2x8x32xf32>
      %c0_316 = arith.constant 0 : index
      %c0_317 = arith.constant 0 : index
      %c0_318 = arith.constant 0 : index
      %579 = vector.load %arg14[%c0_316, %c0_317, %c0_318] : memref<2x8x32xf32, #tpu.memory_space<vmem>>, vector<2x8x32xf32>
      tpu.vector_store %arg14[%c0_316, %c0_317, %c0_318], %578 {strides = array<i32>} : memref<2x8x32xf32, #tpu.memory_space<vmem>>, vector<2x8x32xf32>,
    } else {
    }
    %3 = tpu.iota {dimensions = array<i32: 1>} : vector<8x128xi32>
    %c64_i32 = arith.constant 64 : i32
    %4 = vector.broadcast %c64_i32 : i32 to vector<8x128xi32>
    %5 = arith.cmpi sge, %3, %4 : vector<8x128xi32>
    %c96_i32 = arith.constant 96 : i32
    %6 = vector.broadcast %c96_i32 : i32 to vector<8x128xi32>
    %7 = arith.cmpi slt, %3, %6 : vector<8x128xi32>
    %8 = arith.andi %5, %7 : vector<8x128xi1>
    %c0 = arith.constant 0 : index
    %c0_1 = arith.constant 0 : index
    %9 = vector.load %arg1[%c0, %c0_1] : memref<64x16xf32, #tpu.memory_space<vmem>>, vector<64x16xf32>
    %c0_2 = arith.constant 0 : index
    %c0_3 = arith.constant 0 : index
    %10 = vector.load %arg2[%c0_2, %c0_3] : memref<16x128xf32, #tpu.memory_space<vmem>>, vector<16x128xf32>
    %cst = arith.constant dense<0.000000e+00> : vector<64x128xf32>
    %11 = tpu.matmul %9, %10, %cst {dimension_numbers = #tpu.dot_dimension_numbers<[1], [0], [0], [1], [0, 0, 1, 1], [], []>} : vector<64x16xf32>, vector<16x128xf32>, vector<64x128xf32> -> vector<64x128xf32>
    %c0_4 = arith.constant 0 : index
    %c0_5 = arith.constant 0 : index
    %12 = vector.load %arg4[%c0_4, %c0_5] : memref<1x128xf32, #tpu.memory_space<vmem>>, vector<1x128xf32>
    %13 = vector.broadcast %12 : vector<1x128xf32> to vector<64x128xf32>
    %14 = arith.addf %11, %13 : vector<64x128xf32>
    %c0_6 = arith.constant 0 : index
    %c0_7 = arith.constant 0 : index
    %15 = vector.load %arg11[%c0_6, %c0_7] : memref<64x128xf32, #tpu.memory_space<vmem>>, vector<64x128xf32>
    tpu.vector_store %arg11[%c0_6, %c0_7], %14 {strides = array<i32>} : memref<64x128xf32, #tpu.memory_space<vmem>>, vector<64x128xf32>,
    %c0_8 = arith.constant 0 : index
    %c0_9 = arith.constant 0 : index
    %16 = vector.load %arg3[%c0_8, %c0_9] : memref<32x128xf32, #tpu.memory_space<vmem>>, vector<32x128xf32>
    %c0_i32_10 = arith.constant 0 : i32
    %c8_i32 = arith.constant 8 : i32
    %17 = arith.muli %c0_i32_10, %c8_i32 : i32
    %18 = tpu.assume_multiple %17, 8 : i32
    %19 = arith.index_cast %18 : i32 to index
    %c0_11 = arith.constant 0 : index
    %20 = vector.load %arg11[%19, %c0_11] : memref<64x128xf32, #tpu.memory_space<vmem>>, vector<8x128xf32>
    %c0_12 = arith.constant 0 : index
    %c0_13 = arith.constant 0 : index
    %c0_14 = arith.constant 0 : index
    %21 = vector.load %arg13[%c0_12, %c0_13, %c0_14] : memref<2x8x32xf32, #tpu.memory_space<vmem>>, vector<1x8x32xf32>
    %22 = vector.shape_cast %21 : vector<1x8x32xf32> to vector<8x32xf32>
    %cst_15 = arith.constant dense<0.000000e+00> : vector<8x128xf32>
    %23 = tpu.matmul %22, %16, %cst_15 {dimension_numbers = #tpu.dot_dimension_numbers<[1], [0], [0], [1], [0, 0, 1, 1], [], []>} : vector<8x32xf32>, vector<32x128xf32>, vector<8x128xf32> -> vector<8x128xf32>
    %24 = arith.addf %20, %23 : vector<8x128xf32>
    %25 = arith.negf %24 : vector<8x128xf32>
    %26 = math.exp %25 : vector<8x128xf32>
    %cst_16 = arith.constant 1.000000e+00 : f32
    %27 = vector.broadcast %cst_16 : f32 to vector<8x128xf32>
    %28 = arith.addf %27, %26 : vector<8x128xf32>
    %29 = arith.divf %27, %28 : vector<8x128xf32>
    %30 = math.tanh %24 : vector<8x128xf32>
    %31 = arith.select %8, %30, %29 : vector<8x128xi1>, vector<8x128xf32>
    %32 = vector.extract_strided_slice %31 {offsets = [0, 0], sizes = [8, 32], strides = [1, 1]} : vector<8x128xf32> to vector<8x32xf32>
    %33 = vector.extract_strided_slice %31 {offsets = [0, 32], sizes = [8, 32], strides = [1, 1]} : vector<8x128xf32> to vector<8x32xf32>
    %34 = vector.extract_strided_slice %31 {offsets = [0, 64], sizes = [8, 32], strides = [1, 1]} : vector<8x128xf32> to vector<8x32xf32>
    %35 = vector.extract_strided_slice %31 {offsets = [0, 96], sizes = [8, 32], strides = [1, 1]} : vector<8x128xf32> to vector<8x32xf32>
    %c0_17 = arith.constant 0 : index
    %c0_18 = arith.constant 0 : index
    %c0_19 = arith.constant 0 : index
    %36 = vector.load %arg14[%c0_17, %c0_18, %c0_19] : memref<2x8x32xf32, #tpu.memory_space<vmem>>, vector<1x8x32xf32>
    %37 = vector.shape_cast %36 : vector<1x8x32xf32> to vector<8x32xf32>
    %38 = arith.mulf %33, %37 : vector<8x32xf32>
    %39 = arith.mulf %32, %34 : vector<8x32xf32>
    %40 = arith.addf %38, %39 : vector<8x32xf32>
    %41 = math.tanh %40 : vector<8x32xf32>
    %42 = arith.mulf %35, %41 : vector<8x32xf32>
    %c0_20 = arith.constant 0 : index
    %c0_21 = arith.constant 0 : index
    %c0_22 = arith.constant 0 : index
    %43 = vector.load %arg14[%c0_20, %c0_21, %c0_22] : memref<2x8x32xf32, #tpu.memory_space<vmem>>, vector<1x8x32xf32>
    %44 = vector.shape_cast %43 : vector<1x8x32xf32> to vector<8x32xf32>
    %45 = vector.shape_cast %40 : vector<8x32xf32> to vector<1x8x32xf32>
    tpu.vector_store %arg14[%c0_20, %c0_21, %c0_22], %45 {strides = array<i32>} : memref<2x8x32xf32, #tpu.memory_space<vmem>>, vector<1x8x32xf32>,
    %c0_23 = arith.constant 0 : index
    %c0_24 = arith.constant 0 : index
    %c0_25 = arith.constant 0 : index
    %46 = vector.load %arg13[%c0_23, %c0_24, %c0_25] : memref<2x8x32xf32, #tpu.memory_space<vmem>>, vector<1x8x32xf32>
    %47 = vector.shape_cast %46 : vector<1x8x32xf32> to vector<8x32xf32>
    %48 = vector.shape_cast %42 : vector<8x32xf32> to vector<1x8x32xf32>
    tpu.vector_store %arg13[%c0_23, %c0_24, %c0_25], %48 {strides = array<i32>} : memref<2x8x32xf32, #tpu.memory_space<vmem>>, vector<1x8x32xf32>,
    %49 = arith.index_cast %18 : i32 to index
    %c0_26 = arith.constant 0 : index
    %50 = vector.load %arg12[%49, %c0_26] : memref<64x32xf32, #tpu.memory_space<vmem>>, vector<8x32xf32>
    tpu.vector_store %arg12[%49, %c0_26], %42 {strides = array<i32>} : memref<64x32xf32, #tpu.memory_space<vmem>>, vector<8x32xf32>,
    %c1_i32 = arith.constant 1 : i32
    %c8_i32_27 = arith.constant 8 : i32
    %51 = arith.muli %c1_i32, %c8_i32_27 : i32
    %52 = tpu.assume_multiple %51, 8 : i32
    %53 = arith.index_cast %52 : i32 to index
    %c0_28 = arith.constant 0 : index
    %54 = vector.load %arg11[%53, %c0_28] : memref<64x128xf32, #tpu.memory_space<vmem>>, vector<8x128xf32>
    %c0_29 = arith.constant 0 : index
    %c0_30 = arith.constant 0 : index
    %c0_31 = arith.constant 0 : index
    %55 = vector.load %arg13[%c0_29, %c0_30, %c0_31] : memref<2x8x32xf32, #tpu.memory_space<vmem>>, vector<1x8x32xf32>
    %56 = vector.shape_cast %55 : vector<1x8x32xf32> to vector<8x32xf32>
    %cst_32 = arith.constant dense<0.000000e+00> : vector<8x128xf32>
    %57 = tpu.matmul %56, %16, %cst_32 {dimension_numbers = #tpu.dot_dimension_numbers<[1], [0], [0], [1], [0, 0, 1, 1], [], []>} : vector<8x32xf32>, vector<32x128xf32>, vector<8x128xf32> -> vector<8x128xf32>
    %58 = arith.addf %54, %57 : vector<8x128xf32>
    %59 = arith.negf %58 : vector<8x128xf32>
    %60 = math.exp %59 : vector<8x128xf32>
    %cst_33 = arith.constant 1.000000e+00 : f32
    %61 = vector.broadcast %cst_33 : f32 to vector<8x128xf32>
    %62 = arith.addf %61, %60 : vector<8x128xf32>
    %63 = arith.divf %61, %62 : vector<8x128xf32>
    %64 = math.tanh %58 : vector<8x128xf32>
    %65 = arith.select %8, %64, %63 : vector<8x128xi1>, vector<8x128xf32>
    %66 = vector.extract_strided_slice %65 {offsets = [0, 0], sizes = [8, 32], strides = [1, 1]} : vector<8x128xf32> to vector<8x32xf32>
    %67 = vector.extract_strided_slice %65 {offsets = [0, 32], sizes = [8, 32], strides = [1, 1]} : vector<8x128xf32> to vector<8x32xf32>
    %68 = vector.extract_strided_slice %65 {offsets = [0, 64], sizes = [8, 32], strides = [1, 1]} : vector<8x128xf32> to vector<8x32xf32>
    %69 = vector.extract_strided_slice %65 {offsets = [0, 96], sizes = [8, 32], strides = [1, 1]} : vector<8x128xf32> to vector<8x32xf32>
    %c0_34 = arith.constant 0 : index
    %c0_35 = arith.constant 0 : index
    %c0_36 = arith.constant 0 : index
    %70 = vector.load %arg14[%c0_34, %c0_35, %c0_36] : memref<2x8x32xf32, #tpu.memory_space<vmem>>, vector<1x8x32xf32>
    %71 = vector.shape_cast %70 : vector<1x8x32xf32> to vector<8x32xf32>
    %72 = arith.mulf %67, %71 : vector<8x32xf32>
    %73 = arith.mulf %66, %68 : vector<8x32xf32>
    %74 = arith.addf %72, %73 : vector<8x32xf32>
    %75 = math.tanh %74 : vector<8x32xf32>
    %76 = arith.mulf %69, %75 : vector<8x32xf32>
    %c0_37 = arith.constant 0 : index
    %c0_38 = arith.constant 0 : index
    %c0_39 = arith.constant 0 : index
    %77 = vector.load %arg14[%c0_37, %c0_38, %c0_39] : memref<2x8x32xf32, #tpu.memory_space<vmem>>, vector<1x8x32xf32>
    %78 = vector.shape_cast %77 : vector<1x8x32xf32> to vector<8x32xf32>
    %79 = vector.shape_cast %74 : vector<8x32xf32> to vector<1x8x32xf32>
    tpu.vector_store %arg14[%c0_37, %c0_38, %c0_39], %79 {strides = array<i32>} : memref<2x8x32xf32, #tpu.memory_space<vmem>>, vector<1x8x32xf32>,
    %c0_40 = arith.constant 0 : index
    %c0_41 = arith.constant 0 : index
    %c0_42 = arith.constant 0 : index
    %80 = vector.load %arg13[%c0_40, %c0_41, %c0_42] : memref<2x8x32xf32, #tpu.memory_space<vmem>>, vector<1x8x32xf32>
    %81 = vector.shape_cast %80 : vector<1x8x32xf32> to vector<8x32xf32>
    %82 = vector.shape_cast %76 : vector<8x32xf32> to vector<1x8x32xf32>
    tpu.vector_store %arg13[%c0_40, %c0_41, %c0_42], %82 {strides = array<i32>} : memref<2x8x32xf32, #tpu.memory_space<vmem>>, vector<1x8x32xf32>,
    %83 = arith.index_cast %52 : i32 to index
    %c0_43 = arith.constant 0 : index
    %84 = vector.load %arg12[%83, %c0_43] : memref<64x32xf32, #tpu.memory_space<vmem>>, vector<8x32xf32>
    tpu.vector_store %arg12[%83, %c0_43], %76 {strides = array<i32>} : memref<64x32xf32, #tpu.memory_space<vmem>>, vector<8x32xf32>,
    %c2_i32 = arith.constant 2 : i32
    %c8_i32_44 = arith.constant 8 : i32
    %85 = arith.muli %c2_i32, %c8_i32_44 : i32
    %86 = tpu.assume_multiple %85, 8 : i32
    %87 = arith.index_cast %86 : i32 to index
    %c0_45 = arith.constant 0 : index
    %88 = vector.load %arg11[%87, %c0_45] : memref<64x128xf32, #tpu.memory_space<vmem>>, vector<8x128xf32>
    %c0_46 = arith.constant 0 : index
    %c0_47 = arith.constant 0 : index
    %c0_48 = arith.constant 0 : index
    %89 = vector.load %arg13[%c0_46, %c0_47, %c0_48] : memref<2x8x32xf32, #tpu.memory_space<vmem>>, vector<1x8x32xf32>
    %90 = vector.shape_cast %89 : vector<1x8x32xf32> to vector<8x32xf32>
    %cst_49 = arith.constant dense<0.000000e+00> : vector<8x128xf32>
    %91 = tpu.matmul %90, %16, %cst_49 {dimension_numbers = #tpu.dot_dimension_numbers<[1], [0], [0], [1], [0, 0, 1, 1], [], []>} : vector<8x32xf32>, vector<32x128xf32>, vector<8x128xf32> -> vector<8x128xf32>
    %92 = arith.addf %88, %91 : vector<8x128xf32>
    %93 = arith.negf %92 : vector<8x128xf32>
    %94 = math.exp %93 : vector<8x128xf32>
    %cst_50 = arith.constant 1.000000e+00 : f32
    %95 = vector.broadcast %cst_50 : f32 to vector<8x128xf32>
    %96 = arith.addf %95, %94 : vector<8x128xf32>
    %97 = arith.divf %95, %96 : vector<8x128xf32>
    %98 = math.tanh %92 : vector<8x128xf32>
    %99 = arith.select %8, %98, %97 : vector<8x128xi1>, vector<8x128xf32>
    %100 = vector.extract_strided_slice %99 {offsets = [0, 0], sizes = [8, 32], strides = [1, 1]} : vector<8x128xf32> to vector<8x32xf32>
    %101 = vector.extract_strided_slice %99 {offsets = [0, 32], sizes = [8, 32], strides = [1, 1]} : vector<8x128xf32> to vector<8x32xf32>
    %102 = vector.extract_strided_slice %99 {offsets = [0, 64], sizes = [8, 32], strides = [1, 1]} : vector<8x128xf32> to vector<8x32xf32>
    %103 = vector.extract_strided_slice %99 {offsets = [0, 96], sizes = [8, 32], strides = [1, 1]} : vector<8x128xf32> to vector<8x32xf32>
    %c0_51 = arith.constant 0 : index
    %c0_52 = arith.constant 0 : index
    %c0_53 = arith.constant 0 : index
    %104 = vector.load %arg14[%c0_51, %c0_52, %c0_53] : memref<2x8x32xf32, #tpu.memory_space<vmem>>, vector<1x8x32xf32>
    %105 = vector.shape_cast %104 : vector<1x8x32xf32> to vector<8x32xf32>
    %106 = arith.mulf %101, %105 : vector<8x32xf32>
    %107 = arith.mulf %100, %102 : vector<8x32xf32>
    %108 = arith.addf %106, %107 : vector<8x32xf32>
    %109 = math.tanh %108 : vector<8x32xf32>
    %110 = arith.mulf %103, %109 : vector<8x32xf32>
    %c0_54 = arith.constant 0 : index
    %c0_55 = arith.constant 0 : index
    %c0_56 = arith.constant 0 : index
    %111 = vector.load %arg14[%c0_54, %c0_55, %c0_56] : memref<2x8x32xf32, #tpu.memory_space<vmem>>, vector<1x8x32xf32>
    %112 = vector.shape_cast %111 : vector<1x8x32xf32> to vector<8x32xf32>
    %113 = vector.shape_cast %108 : vector<8x32xf32> to vector<1x8x32xf32>
    tpu.vector_store %arg14[%c0_54, %c0_55, %c0_56], %113 {strides = array<i32>} : memref<2x8x32xf32, #tpu.memory_space<vmem>>, vector<1x8x32xf32>,
    %c0_57 = arith.constant 0 : index
    %c0_58 = arith.constant 0 : index
    %c0_59 = arith.constant 0 : index
    %114 = vector.load %arg13[%c0_57, %c0_58, %c0_59] : memref<2x8x32xf32, #tpu.memory_space<vmem>>, vector<1x8x32xf32>
    %115 = vector.shape_cast %114 : vector<1x8x32xf32> to vector<8x32xf32>
    %116 = vector.shape_cast %110 : vector<8x32xf32> to vector<1x8x32xf32>
    tpu.vector_store %arg13[%c0_57, %c0_58, %c0_59], %116 {strides = array<i32>} : memref<2x8x32xf32, #tpu.memory_space<vmem>>, vector<1x8x32xf32>,
    %117 = arith.index_cast %86 : i32 to index
    %c0_60 = arith.constant 0 : index
    %118 = vector.load %arg12[%117, %c0_60] : memref<64x32xf32, #tpu.memory_space<vmem>>, vector<8x32xf32>
    tpu.vector_store %arg12[%117, %c0_60], %110 {strides = array<i32>} : memref<64x32xf32, #tpu.memory_space<vmem>>, vector<8x32xf32>,
    %c3_i32 = arith.constant 3 : i32
    %c8_i32_61 = arith.constant 8 : i32
    %119 = arith.muli %c3_i32, %c8_i32_61 : i32
    %120 = tpu.assume_multiple %119, 8 : i32
    %121 = arith.index_cast %120 : i32 to index
    %c0_62 = arith.constant 0 : index
    %122 = vector.load %arg11[%121, %c0_62] : memref<64x128xf32, #tpu.memory_space<vmem>>, vector<8x128xf32>
    %c0_63 = arith.constant 0 : index
    %c0_64 = arith.constant 0 : index
    %c0_65 = arith.constant 0 : index
    %123 = vector.load %arg13[%c0_63, %c0_64, %c0_65] : memref<2x8x32xf32, #tpu.memory_space<vmem>>, vector<1x8x32xf32>
    %124 = vector.shape_cast %123 : vector<1x8x32xf32> to vector<8x32xf32>
    %cst_66 = arith.constant dense<0.000000e+00> : vector<8x128xf32>
    %125 = tpu.matmul %124, %16, %cst_66 {dimension_numbers = #tpu.dot_dimension_numbers<[1], [0], [0], [1], [0, 0, 1, 1], [], []>} : vector<8x32xf32>, vector<32x128xf32>, vector<8x128xf32> -> vector<8x128xf32>
    %126 = arith.addf %122, %125 : vector<8x128xf32>
    %127 = arith.negf %126 : vector<8x128xf32>
    %128 = math.exp %127 : vector<8x128xf32>
    %cst_67 = arith.constant 1.000000e+00 : f32
    %129 = vector.broadcast %cst_67 : f32 to vector<8x128xf32>
    %130 = arith.addf %129, %128 : vector<8x128xf32>
    %131 = arith.divf %129, %130 : vector<8x128xf32>
    %132 = math.tanh %126 : vector<8x128xf32>
    %133 = arith.select %8, %132, %131 : vector<8x128xi1>, vector<8x128xf32>
    %134 = vector.extract_strided_slice %133 {offsets = [0, 0], sizes = [8, 32], strides = [1, 1]} : vector<8x128xf32> to vector<8x32xf32>
    %135 = vector.extract_strided_slice %133 {offsets = [0, 32], sizes = [8, 32], strides = [1, 1]} : vector<8x128xf32> to vector<8x32xf32>
    %136 = vector.extract_strided_slice %133 {offsets = [0, 64], sizes = [8, 32], strides = [1, 1]} : vector<8x128xf32> to vector<8x32xf32>
    %137 = vector.extract_strided_slice %133 {offsets = [0, 96], sizes = [8, 32], strides = [1, 1]} : vector<8x128xf32> to vector<8x32xf32>
    %c0_68 = arith.constant 0 : index
    %c0_69 = arith.constant 0 : index
    %c0_70 = arith.constant 0 : index
    %138 = vector.load %arg14[%c0_68, %c0_69, %c0_70] : memref<2x8x32xf32, #tpu.memory_space<vmem>>, vector<1x8x32xf32>
    %139 = vector.shape_cast %138 : vector<1x8x32xf32> to vector<8x32xf32>
    %140 = arith.mulf %135, %139 : vector<8x32xf32>
    %141 = arith.mulf %134, %136 : vector<8x32xf32>
    %142 = arith.addf %140, %141 : vector<8x32xf32>
    %143 = math.tanh %142 : vector<8x32xf32>
    %144 = arith.mulf %137, %143 : vector<8x32xf32>
    %c0_71 = arith.constant 0 : index
    %c0_72 = arith.constant 0 : index
    %c0_73 = arith.constant 0 : index
    %145 = vector.load %arg14[%c0_71, %c0_72, %c0_73] : memref<2x8x32xf32, #tpu.memory_space<vmem>>, vector<1x8x32xf32>
    %146 = vector.shape_cast %145 : vector<1x8x32xf32> to vector<8x32xf32>
    %147 = vector.shape_cast %142 : vector<8x32xf32> to vector<1x8x32xf32>
    tpu.vector_store %arg14[%c0_71, %c0_72, %c0_73], %147 {strides = array<i32>} : memref<2x8x32xf32, #tpu.memory_space<vmem>>, vector<1x8x32xf32>,
    %c0_74 = arith.constant 0 : index
    %c0_75 = arith.constant 0 : index
    %c0_76 = arith.constant 0 : index
    %148 = vector.load %arg13[%c0_74, %c0_75, %c0_76] : memref<2x8x32xf32, #tpu.memory_space<vmem>>, vector<1x8x32xf32>
    %149 = vector.shape_cast %148 : vector<1x8x32xf32> to vector<8x32xf32>
    %150 = vector.shape_cast %144 : vector<8x32xf32> to vector<1x8x32xf32>
    tpu.vector_store %arg13[%c0_74, %c0_75, %c0_76], %150 {strides = array<i32>} : memref<2x8x32xf32, #tpu.memory_space<vmem>>, vector<1x8x32xf32>,
    %151 = arith.index_cast %120 : i32 to index
    %c0_77 = arith.constant 0 : index
    %152 = vector.load %arg12[%151, %c0_77] : memref<64x32xf32, #tpu.memory_space<vmem>>, vector<8x32xf32>
    tpu.vector_store %arg12[%151, %c0_77], %144 {strides = array<i32>} : memref<64x32xf32, #tpu.memory_space<vmem>>, vector<8x32xf32>,
    %c4_i32 = arith.constant 4 : i32
    %c8_i32_78 = arith.constant 8 : i32
    %153 = arith.muli %c4_i32, %c8_i32_78 : i32
    %154 = tpu.assume_multiple %153, 8 : i32
    %155 = arith.index_cast %154 : i32 to index
    %c0_79 = arith.constant 0 : index
    %156 = vector.load %arg11[%155, %c0_79] : memref<64x128xf32, #tpu.memory_space<vmem>>, vector<8x128xf32>
    %c0_80 = arith.constant 0 : index
    %c0_81 = arith.constant 0 : index
    %c0_82 = arith.constant 0 : index
    %157 = vector.load %arg13[%c0_80, %c0_81, %c0_82] : memref<2x8x32xf32, #tpu.memory_space<vmem>>, vector<1x8x32xf32>
    %158 = vector.shape_cast %157 : vector<1x8x32xf32> to vector<8x32xf32>
    %cst_83 = arith.constant dense<0.000000e+00> : vector<8x128xf32>
    %159 = tpu.matmul %158, %16, %cst_83 {dimension_numbers = #tpu.dot_dimension_numbers<[1], [0], [0], [1], [0, 0, 1, 1], [], []>} : vector<8x32xf32>, vector<32x128xf32>, vector<8x128xf32> -> vector<8x128xf32>
    %160 = arith.addf %156, %159 : vector<8x128xf32>
    %161 = arith.negf %160 : vector<8x128xf32>
    %162 = math.exp %161 : vector<8x128xf32>
    %cst_84 = arith.constant 1.000000e+00 : f32
    %163 = vector.broadcast %cst_84 : f32 to vector<8x128xf32>
    %164 = arith.addf %163, %162 : vector<8x128xf32>
    %165 = arith.divf %163, %164 : vector<8x128xf32>
    %166 = math.tanh %160 : vector<8x128xf32>
    %167 = arith.select %8, %166, %165 : vector<8x128xi1>, vector<8x128xf32>
    %168 = vector.extract_strided_slice %167 {offsets = [0, 0], sizes = [8, 32], strides = [1, 1]} : vector<8x128xf32> to vector<8x32xf32>
    %169 = vector.extract_strided_slice %167 {offsets = [0, 32], sizes = [8, 32], strides = [1, 1]} : vector<8x128xf32> to vector<8x32xf32>
    %170 = vector.extract_strided_slice %167 {offsets = [0, 64], sizes = [8, 32], strides = [1, 1]} : vector<8x128xf32> to vector<8x32xf32>
    %171 = vector.extract_strided_slice %167 {offsets = [0, 96], sizes = [8, 32], strides = [1, 1]} : vector<8x128xf32> to vector<8x32xf32>
    %c0_85 = arith.constant 0 : index
    %c0_86 = arith.constant 0 : index
    %c0_87 = arith.constant 0 : index
    %172 = vector.load %arg14[%c0_85, %c0_86, %c0_87] : memref<2x8x32xf32, #tpu.memory_space<vmem>>, vector<1x8x32xf32>
    %173 = vector.shape_cast %172 : vector<1x8x32xf32> to vector<8x32xf32>
    %174 = arith.mulf %169, %173 : vector<8x32xf32>
    %175 = arith.mulf %168, %170 : vector<8x32xf32>
    %176 = arith.addf %174, %175 : vector<8x32xf32>
    %177 = math.tanh %176 : vector<8x32xf32>
    %178 = arith.mulf %171, %177 : vector<8x32xf32>
    %c0_88 = arith.constant 0 : index
    %c0_89 = arith.constant 0 : index
    %c0_90 = arith.constant 0 : index
    %179 = vector.load %arg14[%c0_88, %c0_89, %c0_90] : memref<2x8x32xf32, #tpu.memory_space<vmem>>, vector<1x8x32xf32>
    %180 = vector.shape_cast %179 : vector<1x8x32xf32> to vector<8x32xf32>
    %181 = vector.shape_cast %176 : vector<8x32xf32> to vector<1x8x32xf32>
    tpu.vector_store %arg14[%c0_88, %c0_89, %c0_90], %181 {strides = array<i32>} : memref<2x8x32xf32, #tpu.memory_space<vmem>>, vector<1x8x32xf32>,
    %c0_91 = arith.constant 0 : index
    %c0_92 = arith.constant 0 : index
    %c0_93 = arith.constant 0 : index
    %182 = vector.load %arg13[%c0_91, %c0_92, %c0_93] : memref<2x8x32xf32, #tpu.memory_space<vmem>>, vector<1x8x32xf32>
    %183 = vector.shape_cast %182 : vector<1x8x32xf32> to vector<8x32xf32>
    %184 = vector.shape_cast %178 : vector<8x32xf32> to vector<1x8x32xf32>
    tpu.vector_store %arg13[%c0_91, %c0_92, %c0_93], %184 {strides = array<i32>} : memref<2x8x32xf32, #tpu.memory_space<vmem>>, vector<1x8x32xf32>,
    %185 = arith.index_cast %154 : i32 to index
    %c0_94 = arith.constant 0 : index
    %186 = vector.load %arg12[%185, %c0_94] : memref<64x32xf32, #tpu.memory_space<vmem>>, vector<8x32xf32>
    tpu.vector_store %arg12[%185, %c0_94], %178 {strides = array<i32>} : memref<64x32xf32, #tpu.memory_space<vmem>>, vector<8x32xf32>,
    %c5_i32 = arith.constant 5 : i32
    %c8_i32_95 = arith.constant 8 : i32
    %187 = arith.muli %c5_i32, %c8_i32_95 : i32
    %188 = tpu.assume_multiple %187, 8 : i32
    %189 = arith.index_cast %188 : i32 to index
    %c0_96 = arith.constant 0 : index
    %190 = vector.load %arg11[%189, %c0_96] : memref<64x128xf32, #tpu.memory_space<vmem>>, vector<8x128xf32>
    %c0_97 = arith.constant 0 : index
    %c0_98 = arith.constant 0 : index
    %c0_99 = arith.constant 0 : index
    %191 = vector.load %arg13[%c0_97, %c0_98, %c0_99] : memref<2x8x32xf32, #tpu.memory_space<vmem>>, vector<1x8x32xf32>
    %192 = vector.shape_cast %191 : vector<1x8x32xf32> to vector<8x32xf32>
    %cst_100 = arith.constant dense<0.000000e+00> : vector<8x128xf32>
    %193 = tpu.matmul %192, %16, %cst_100 {dimension_numbers = #tpu.dot_dimension_numbers<[1], [0], [0], [1], [0, 0, 1, 1], [], []>} : vector<8x32xf32>, vector<32x128xf32>, vector<8x128xf32> -> vector<8x128xf32>
    %194 = arith.addf %190, %193 : vector<8x128xf32>
    %195 = arith.negf %194 : vector<8x128xf32>
    %196 = math.exp %195 : vector<8x128xf32>
    %cst_101 = arith.constant 1.000000e+00 : f32
    %197 = vector.broadcast %cst_101 : f32 to vector<8x128xf32>
    %198 = arith.addf %197, %196 : vector<8x128xf32>
    %199 = arith.divf %197, %198 : vector<8x128xf32>
    %200 = math.tanh %194 : vector<8x128xf32>
    %201 = arith.select %8, %200, %199 : vector<8x128xi1>, vector<8x128xf32>
    %202 = vector.extract_strided_slice %201 {offsets = [0, 0], sizes = [8, 32], strides = [1, 1]} : vector<8x128xf32> to vector<8x32xf32>
    %203 = vector.extract_strided_slice %201 {offsets = [0, 32], sizes = [8, 32], strides = [1, 1]} : vector<8x128xf32> to vector<8x32xf32>
    %204 = vector.extract_strided_slice %201 {offsets = [0, 64], sizes = [8, 32], strides = [1, 1]} : vector<8x128xf32> to vector<8x32xf32>
    %205 = vector.extract_strided_slice %201 {offsets = [0, 96], sizes = [8, 32], strides = [1, 1]} : vector<8x128xf32> to vector<8x32xf32>
    %c0_102 = arith.constant 0 : index
    %c0_103 = arith.constant 0 : index
    %c0_104 = arith.constant 0 : index
    %206 = vector.load %arg14[%c0_102, %c0_103, %c0_104] : memref<2x8x32xf32, #tpu.memory_space<vmem>>, vector<1x8x32xf32>
    %207 = vector.shape_cast %206 : vector<1x8x32xf32> to vector<8x32xf32>
    %208 = arith.mulf %203, %207 : vector<8x32xf32>
    %209 = arith.mulf %202, %204 : vector<8x32xf32>
    %210 = arith.addf %208, %209 : vector<8x32xf32>
    %211 = math.tanh %210 : vector<8x32xf32>
    %212 = arith.mulf %205, %211 : vector<8x32xf32>
    %c0_105 = arith.constant 0 : index
    %c0_106 = arith.constant 0 : index
    %c0_107 = arith.constant 0 : index
    %213 = vector.load %arg14[%c0_105, %c0_106, %c0_107] : memref<2x8x32xf32, #tpu.memory_space<vmem>>, vector<1x8x32xf32>
    %214 = vector.shape_cast %213 : vector<1x8x32xf32> to vector<8x32xf32>
    %215 = vector.shape_cast %210 : vector<8x32xf32> to vector<1x8x32xf32>
    tpu.vector_store %arg14[%c0_105, %c0_106, %c0_107], %215 {strides = array<i32>} : memref<2x8x32xf32, #tpu.memory_space<vmem>>, vector<1x8x32xf32>,
    %c0_108 = arith.constant 0 : index
    %c0_109 = arith.constant 0 : index
    %c0_110 = arith.constant 0 : index
    %216 = vector.load %arg13[%c0_108, %c0_109, %c0_110] : memref<2x8x32xf32, #tpu.memory_space<vmem>>, vector<1x8x32xf32>
    %217 = vector.shape_cast %216 : vector<1x8x32xf32> to vector<8x32xf32>
    %218 = vector.shape_cast %212 : vector<8x32xf32> to vector<1x8x32xf32>
    tpu.vector_store %arg13[%c0_108, %c0_109, %c0_110], %218 {strides = array<i32>} : memref<2x8x32xf32, #tpu.memory_space<vmem>>, vector<1x8x32xf32>,
    %219 = arith.index_cast %188 : i32 to index
    %c0_111 = arith.constant 0 : index
    %220 = vector.load %arg12[%219, %c0_111] : memref<64x32xf32, #tpu.memory_space<vmem>>, vector<8x32xf32>
    tpu.vector_store %arg12[%219, %c0_111], %212 {strides = array<i32>} : memref<64x32xf32, #tpu.memory_space<vmem>>, vector<8x32xf32>,
    %c6_i32 = arith.constant 6 : i32
    %c8_i32_112 = arith.constant 8 : i32
    %221 = arith.muli %c6_i32, %c8_i32_112 : i32
    %222 = tpu.assume_multiple %221, 8 : i32
    %223 = arith.index_cast %222 : i32 to index
    %c0_113 = arith.constant 0 : index
    %224 = vector.load %arg11[%223, %c0_113] : memref<64x128xf32, #tpu.memory_space<vmem>>, vector<8x128xf32>
    %c0_114 = arith.constant 0 : index
    %c0_115 = arith.constant 0 : index
    %c0_116 = arith.constant 0 : index
    %225 = vector.load %arg13[%c0_114, %c0_115, %c0_116] : memref<2x8x32xf32, #tpu.memory_space<vmem>>, vector<1x8x32xf32>
    %226 = vector.shape_cast %225 : vector<1x8x32xf32> to vector<8x32xf32>
    %cst_117 = arith.constant dense<0.000000e+00> : vector<8x128xf32>
    %227 = tpu.matmul %226, %16, %cst_117 {dimension_numbers = #tpu.dot_dimension_numbers<[1], [0], [0], [1], [0, 0, 1, 1], [], []>} : vector<8x32xf32>, vector<32x128xf32>, vector<8x128xf32> -> vector<8x128xf32>
    %228 = arith.addf %224, %227 : vector<8x128xf32>
    %229 = arith.negf %228 : vector<8x128xf32>
    %230 = math.exp %229 : vector<8x128xf32>
    %cst_118 = arith.constant 1.000000e+00 : f32
    %231 = vector.broadcast %cst_118 : f32 to vector<8x128xf32>
    %232 = arith.addf %231, %230 : vector<8x128xf32>
    %233 = arith.divf %231, %232 : vector<8x128xf32>
    %234 = math.tanh %228 : vector<8x128xf32>
    %235 = arith.select %8, %234, %233 : vector<8x128xi1>, vector<8x128xf32>
    %236 = vector.extract_strided_slice %235 {offsets = [0, 0], sizes = [8, 32], strides = [1, 1]} : vector<8x128xf32> to vector<8x32xf32>
    %237 = vector.extract_strided_slice %235 {offsets = [0, 32], sizes = [8, 32], strides = [1, 1]} : vector<8x128xf32> to vector<8x32xf32>
    %238 = vector.extract_strided_slice %235 {offsets = [0, 64], sizes = [8, 32], strides = [1, 1]} : vector<8x128xf32> to vector<8x32xf32>
    %239 = vector.extract_strided_slice %235 {offsets = [0, 96], sizes = [8, 32], strides = [1, 1]} : vector<8x128xf32> to vector<8x32xf32>
    %c0_119 = arith.constant 0 : index
    %c0_120 = arith.constant 0 : index
    %c0_121 = arith.constant 0 : index
    %240 = vector.load %arg14[%c0_119, %c0_120, %c0_121] : memref<2x8x32xf32, #tpu.memory_space<vmem>>, vector<1x8x32xf32>
    %241 = vector.shape_cast %240 : vector<1x8x32xf32> to vector<8x32xf32>
    %242 = arith.mulf %237, %241 : vector<8x32xf32>
    %243 = arith.mulf %236, %238 : vector<8x32xf32>
    %244 = arith.addf %242, %243 : vector<8x32xf32>
    %245 = math.tanh %244 : vector<8x32xf32>
    %246 = arith.mulf %239, %245 : vector<8x32xf32>
    %c0_122 = arith.constant 0 : index
    %c0_123 = arith.constant 0 : index
    %c0_124 = arith.constant 0 : index
    %247 = vector.load %arg14[%c0_122, %c0_123, %c0_124] : memref<2x8x32xf32, #tpu.memory_space<vmem>>, vector<1x8x32xf32>
    %248 = vector.shape_cast %247 : vector<1x8x32xf32> to vector<8x32xf32>
    %249 = vector.shape_cast %244 : vector<8x32xf32> to vector<1x8x32xf32>
    tpu.vector_store %arg14[%c0_122, %c0_123, %c0_124], %249 {strides = array<i32>} : memref<2x8x32xf32, #tpu.memory_space<vmem>>, vector<1x8x32xf32>,
    %c0_125 = arith.constant 0 : index
    %c0_126 = arith.constant 0 : index
    %c0_127 = arith.constant 0 : index
    %250 = vector.load %arg13[%c0_125, %c0_126, %c0_127] : memref<2x8x32xf32, #tpu.memory_space<vmem>>, vector<1x8x32xf32>
    %251 = vector.shape_cast %250 : vector<1x8x32xf32> to vector<8x32xf32>
    %252 = vector.shape_cast %246 : vector<8x32xf32> to vector<1x8x32xf32>
    tpu.vector_store %arg13[%c0_125, %c0_126, %c0_127], %252 {strides = array<i32>} : memref<2x8x32xf32, #tpu.memory_space<vmem>>, vector<1x8x32xf32>,
    %253 = arith.index_cast %222 : i32 to index
    %c0_128 = arith.constant 0 : index
    %254 = vector.load %arg12[%253, %c0_128] : memref<64x32xf32, #tpu.memory_space<vmem>>, vector<8x32xf32>
    tpu.vector_store %arg12[%253, %c0_128], %246 {strides = array<i32>} : memref<64x32xf32, #tpu.memory_space<vmem>>, vector<8x32xf32>,
    %c7_i32 = arith.constant 7 : i32
    %c8_i32_129 = arith.constant 8 : i32
    %255 = arith.muli %c7_i32, %c8_i32_129 : i32
    %256 = tpu.assume_multiple %255, 8 : i32
    %257 = arith.index_cast %256 : i32 to index
    %c0_130 = arith.constant 0 : index
    %258 = vector.load %arg11[%257, %c0_130] : memref<64x128xf32, #tpu.memory_space<vmem>>, vector<8x128xf32>
    %c0_131 = arith.constant 0 : index
    %c0_132 = arith.constant 0 : index
    %c0_133 = arith.constant 0 : index
    %259 = vector.load %arg13[%c0_131, %c0_132, %c0_133] : memref<2x8x32xf32, #tpu.memory_space<vmem>>, vector<1x8x32xf32>
    %260 = vector.shape_cast %259 : vector<1x8x32xf32> to vector<8x32xf32>
    %cst_134 = arith.constant dense<0.000000e+00> : vector<8x128xf32>
    %261 = tpu.matmul %260, %16, %cst_134 {dimension_numbers = #tpu.dot_dimension_numbers<[1], [0], [0], [1], [0, 0, 1, 1], [], []>} : vector<8x32xf32>, vector<32x128xf32>, vector<8x128xf32> -> vector<8x128xf32>
    %262 = arith.addf %258, %261 : vector<8x128xf32>
    %263 = arith.negf %262 : vector<8x128xf32>
    %264 = math.exp %263 : vector<8x128xf32>
    %cst_135 = arith.constant 1.000000e+00 : f32
    %265 = vector.broadcast %cst_135 : f32 to vector<8x128xf32>
    %266 = arith.addf %265, %264 : vector<8x128xf32>
    %267 = arith.divf %265, %266 : vector<8x128xf32>
    %268 = math.tanh %262 : vector<8x128xf32>
    %269 = arith.select %8, %268, %267 : vector<8x128xi1>, vector<8x128xf32>
    %270 = vector.extract_strided_slice %269 {offsets = [0, 0], sizes = [8, 32], strides = [1, 1]} : vector<8x128xf32> to vector<8x32xf32>
    %271 = vector.extract_strided_slice %269 {offsets = [0, 32], sizes = [8, 32], strides = [1, 1]} : vector<8x128xf32> to vector<8x32xf32>
    %272 = vector.extract_strided_slice %269 {offsets = [0, 64], sizes = [8, 32], strides = [1, 1]} : vector<8x128xf32> to vector<8x32xf32>
    %273 = vector.extract_strided_slice %269 {offsets = [0, 96], sizes = [8, 32], strides = [1, 1]} : vector<8x128xf32> to vector<8x32xf32>
    %c0_136 = arith.constant 0 : index
    %c0_137 = arith.constant 0 : index
    %c0_138 = arith.constant 0 : index
    %274 = vector.load %arg14[%c0_136, %c0_137, %c0_138] : memref<2x8x32xf32, #tpu.memory_space<vmem>>, vector<1x8x32xf32>
    %275 = vector.shape_cast %274 : vector<1x8x32xf32> to vector<8x32xf32>
    %276 = arith.mulf %271, %275 : vector<8x32xf32>
    %277 = arith.mulf %270, %272 : vector<8x32xf32>
    %278 = arith.addf %276, %277 : vector<8x32xf32>
    %279 = math.tanh %278 : vector<8x32xf32>
    %280 = arith.mulf %273, %279 : vector<8x32xf32>
    %c0_139 = arith.constant 0 : index
    %c0_140 = arith.constant 0 : index
    %c0_141 = arith.constant 0 : index
    %281 = vector.load %arg14[%c0_139, %c0_140, %c0_141] : memref<2x8x32xf32, #tpu.memory_space<vmem>>, vector<1x8x32xf32>
    %282 = vector.shape_cast %281 : vector<1x8x32xf32> to vector<8x32xf32>
    %283 = vector.shape_cast %278 : vector<8x32xf32> to vector<1x8x32xf32>
    tpu.vector_store %arg14[%c0_139, %c0_140, %c0_141], %283 {strides = array<i32>} : memref<2x8x32xf32, #tpu.memory_space<vmem>>, vector<1x8x32xf32>,
    %c0_142 = arith.constant 0 : index
    %c0_143 = arith.constant 0 : index
    %c0_144 = arith.constant 0 : index
    %284 = vector.load %arg13[%c0_142, %c0_143, %c0_144] : memref<2x8x32xf32, #tpu.memory_space<vmem>>, vector<1x8x32xf32>
    %285 = vector.shape_cast %284 : vector<1x8x32xf32> to vector<8x32xf32>
    %286 = vector.shape_cast %280 : vector<8x32xf32> to vector<1x8x32xf32>
    tpu.vector_store %arg13[%c0_142, %c0_143, %c0_144], %286 {strides = array<i32>} : memref<2x8x32xf32, #tpu.memory_space<vmem>>, vector<1x8x32xf32>,
    %287 = arith.index_cast %256 : i32 to index
    %c0_145 = arith.constant 0 : index
    %288 = vector.load %arg12[%287, %c0_145] : memref<64x32xf32, #tpu.memory_space<vmem>>, vector<8x32xf32>
    tpu.vector_store %arg12[%287, %c0_145], %280 {strides = array<i32>} : memref<64x32xf32, #tpu.memory_space<vmem>>, vector<8x32xf32>,
    %c8_i32_146 = arith.constant 8 : i32
    %c0_147 = arith.constant 0 : index
    %c0_148 = arith.constant 0 : index
    %289 = vector.load %arg12[%c0_147, %c0_148] : memref<64x32xf32, #tpu.memory_space<vmem>>, vector<64x32xf32>
    %c0_149 = arith.constant 0 : index
    %c0_150 = arith.constant 0 : index
    %290 = vector.load %arg5[%c0_149, %c0_150] : memref<32x128xf32, #tpu.memory_space<vmem>>, vector<32x128xf32>
    %cst_151 = arith.constant dense<0.000000e+00> : vector<64x128xf32>
    %291 = tpu.matmul %289, %290, %cst_151 {dimension_numbers = #tpu.dot_dimension_numbers<[1], [0], [0], [1], [0, 0, 1, 1], [], []>} : vector<64x32xf32>, vector<32x128xf32>, vector<64x128xf32> -> vector<64x128xf32>
    %c0_152 = arith.constant 0 : index
    %c0_153 = arith.constant 0 : index
    %292 = vector.load %arg7[%c0_152, %c0_153] : memref<1x128xf32, #tpu.memory_space<vmem>>, vector<1x128xf32>
    %293 = vector.broadcast %292 : vector<1x128xf32> to vector<64x128xf32>
    %294 = arith.addf %291, %293 : vector<64x128xf32>
    %c0_154 = arith.constant 0 : index
    %c0_155 = arith.constant 0 : index
    %295 = vector.load %arg11[%c0_154, %c0_155] : memref<64x128xf32, #tpu.memory_space<vmem>>, vector<64x128xf32>
    tpu.vector_store %arg11[%c0_154, %c0_155], %294 {strides = array<i32>} : memref<64x128xf32, #tpu.memory_space<vmem>>, vector<64x128xf32>,
    %c0_156 = arith.constant 0 : index
    %c0_157 = arith.constant 0 : index
    %296 = vector.load %arg6[%c0_156, %c0_157] : memref<32x128xf32, #tpu.memory_space<vmem>>, vector<32x128xf32>
    %c0_i32_158 = arith.constant 0 : i32
    %c8_i32_159 = arith.constant 8 : i32
    %297 = arith.muli %c0_i32_158, %c8_i32_159 : i32
    %298 = tpu.assume_multiple %297, 8 : i32
    %299 = arith.index_cast %298 : i32 to index
    %c0_160 = arith.constant 0 : index
    %300 = vector.load %arg11[%299, %c0_160] : memref<64x128xf32, #tpu.memory_space<vmem>>, vector<8x128xf32>
    %c1 = arith.constant 1 : index
    %c0_161 = arith.constant 0 : index
    %c0_162 = arith.constant 0 : index
    %301 = vector.load %arg13[%c1, %c0_161, %c0_162] : memref<2x8x32xf32, #tpu.memory_space<vmem>>, vector<1x8x32xf32>
    %302 = vector.shape_cast %301 : vector<1x8x32xf32> to vector<8x32xf32>
    %cst_163 = arith.constant dense<0.000000e+00> : vector<8x128xf32>
    %303 = tpu.matmul %302, %296, %cst_163 {dimension_numbers = #tpu.dot_dimension_numbers<[1], [0], [0], [1], [0, 0, 1, 1], [], []>} : vector<8x32xf32>, vector<32x128xf32>, vector<8x128xf32> -> vector<8x128xf32>
    %304 = arith.addf %300, %303 : vector<8x128xf32>
    %305 = arith.negf %304 : vector<8x128xf32>
    %306 = math.exp %305 : vector<8x128xf32>
    %cst_164 = arith.constant 1.000000e+00 : f32
    %307 = vector.broadcast %cst_164 : f32 to vector<8x128xf32>
    %308 = arith.addf %307, %306 : vector<8x128xf32>
    %309 = arith.divf %307, %308 : vector<8x128xf32>
    %310 = math.tanh %304 : vector<8x128xf32>
    %311 = arith.select %8, %310, %309 : vector<8x128xi1>, vector<8x128xf32>
    %312 = vector.extract_strided_slice %311 {offsets = [0, 0], sizes = [8, 32], strides = [1, 1]} : vector<8x128xf32> to vector<8x32xf32>
    %313 = vector.extract_strided_slice %311 {offsets = [0, 32], sizes = [8, 32], strides = [1, 1]} : vector<8x128xf32> to vector<8x32xf32>
    %314 = vector.extract_strided_slice %311 {offsets = [0, 64], sizes = [8, 32], strides = [1, 1]} : vector<8x128xf32> to vector<8x32xf32>
    %315 = vector.extract_strided_slice %311 {offsets = [0, 96], sizes = [8, 32], strides = [1, 1]} : vector<8x128xf32> to vector<8x32xf32>
    %c1_165 = arith.constant 1 : index
    %c0_166 = arith.constant 0 : index
    %c0_167 = arith.constant 0 : index
    %316 = vector.load %arg14[%c1_165, %c0_166, %c0_167] : memref<2x8x32xf32, #tpu.memory_space<vmem>>, vector<1x8x32xf32>
    %317 = vector.shape_cast %316 : vector<1x8x32xf32> to vector<8x32xf32>
    %318 = arith.mulf %313, %317 : vector<8x32xf32>
    %319 = arith.mulf %312, %314 : vector<8x32xf32>
    %320 = arith.addf %318, %319 : vector<8x32xf32>
    %321 = math.tanh %320 : vector<8x32xf32>
    %322 = arith.mulf %315, %321 : vector<8x32xf32>
    %c1_168 = arith.constant 1 : index
    %c0_169 = arith.constant 0 : index
    %c0_170 = arith.constant 0 : index
    %323 = vector.load %arg14[%c1_168, %c0_169, %c0_170] : memref<2x8x32xf32, #tpu.memory_space<vmem>>, vector<1x8x32xf32>
    %324 = vector.shape_cast %323 : vector<1x8x32xf32> to vector<8x32xf32>
    %325 = vector.shape_cast %320 : vector<8x32xf32> to vector<1x8x32xf32>
    tpu.vector_store %arg14[%c1_168, %c0_169, %c0_170], %325 {strides = array<i32>} : memref<2x8x32xf32, #tpu.memory_space<vmem>>, vector<1x8x32xf32>,
    %c1_171 = arith.constant 1 : index
    %c0_172 = arith.constant 0 : index
    %c0_173 = arith.constant 0 : index
    %326 = vector.load %arg13[%c1_171, %c0_172, %c0_173] : memref<2x8x32xf32, #tpu.memory_space<vmem>>, vector<1x8x32xf32>
    %327 = vector.shape_cast %326 : vector<1x8x32xf32> to vector<8x32xf32>
    %328 = vector.shape_cast %322 : vector<8x32xf32> to vector<1x8x32xf32>
    tpu.vector_store %arg13[%c1_171, %c0_172, %c0_173], %328 {strides = array<i32>} : memref<2x8x32xf32, #tpu.memory_space<vmem>>, vector<1x8x32xf32>,
    %329 = arith.index_cast %298 : i32 to index
    %c0_174 = arith.constant 0 : index
    %330 = vector.load %arg12[%329, %c0_174] : memref<64x32xf32, #tpu.memory_space<vmem>>, vector<8x32xf32>
    tpu.vector_store %arg12[%329, %c0_174], %322 {strides = array<i32>} : memref<64x32xf32, #tpu.memory_space<vmem>>, vector<8x32xf32>,
    %c1_i32_175 = arith.constant 1 : i32
    %c8_i32_176 = arith.constant 8 : i32
    %331 = arith.muli %c1_i32_175, %c8_i32_176 : i32
    %332 = tpu.assume_multiple %331, 8 : i32
    %333 = arith.index_cast %332 : i32 to index
    %c0_177 = arith.constant 0 : index
    %334 = vector.load %arg11[%333, %c0_177] : memref<64x128xf32, #tpu.memory_space<vmem>>, vector<8x128xf32>
    %c1_178 = arith.constant 1 : index
    %c0_179 = arith.constant 0 : index
    %c0_180 = arith.constant 0 : index
    %335 = vector.load %arg13[%c1_178, %c0_179, %c0_180] : memref<2x8x32xf32, #tpu.memory_space<vmem>>, vector<1x8x32xf32>
    %336 = vector.shape_cast %335 : vector<1x8x32xf32> to vector<8x32xf32>
    %cst_181 = arith.constant dense<0.000000e+00> : vector<8x128xf32>
    %337 = tpu.matmul %336, %296, %cst_181 {dimension_numbers = #tpu.dot_dimension_numbers<[1], [0], [0], [1], [0, 0, 1, 1], [], []>} : vector<8x32xf32>, vector<32x128xf32>, vector<8x128xf32> -> vector<8x128xf32>
    %338 = arith.addf %334, %337 : vector<8x128xf32>
    %339 = arith.negf %338 : vector<8x128xf32>
    %340 = math.exp %339 : vector<8x128xf32>
    %cst_182 = arith.constant 1.000000e+00 : f32
    %341 = vector.broadcast %cst_182 : f32 to vector<8x128xf32>
    %342 = arith.addf %341, %340 : vector<8x128xf32>
    %343 = arith.divf %341, %342 : vector<8x128xf32>
    %344 = math.tanh %338 : vector<8x128xf32>
    %345 = arith.select %8, %344, %343 : vector<8x128xi1>, vector<8x128xf32>
    %346 = vector.extract_strided_slice %345 {offsets = [0, 0], sizes = [8, 32], strides = [1, 1]} : vector<8x128xf32> to vector<8x32xf32>
    %347 = vector.extract_strided_slice %345 {offsets = [0, 32], sizes = [8, 32], strides = [1, 1]} : vector<8x128xf32> to vector<8x32xf32>
    %348 = vector.extract_strided_slice %345 {offsets = [0, 64], sizes = [8, 32], strides = [1, 1]} : vector<8x128xf32> to vector<8x32xf32>
    %349 = vector.extract_strided_slice %345 {offsets = [0, 96], sizes = [8, 32], strides = [1, 1]} : vector<8x128xf32> to vector<8x32xf32>
    %c1_183 = arith.constant 1 : index
    %c0_184 = arith.constant 0 : index
    %c0_185 = arith.constant 0 : index
    %350 = vector.load %arg14[%c1_183, %c0_184, %c0_185] : memref<2x8x32xf32, #tpu.memory_space<vmem>>, vector<1x8x32xf32>
    %351 = vector.shape_cast %350 : vector<1x8x32xf32> to vector<8x32xf32>
    %352 = arith.mulf %347, %351 : vector<8x32xf32>
    %353 = arith.mulf %346, %348 : vector<8x32xf32>
    %354 = arith.addf %352, %353 : vector<8x32xf32>
    %355 = math.tanh %354 : vector<8x32xf32>
    %356 = arith.mulf %349, %355 : vector<8x32xf32>
    %c1_186 = arith.constant 1 : index
    %c0_187 = arith.constant 0 : index
    %c0_188 = arith.constant 0 : index
    %357 = vector.load %arg14[%c1_186, %c0_187, %c0_188] : memref<2x8x32xf32, #tpu.memory_space<vmem>>, vector<1x8x32xf32>
    %358 = vector.shape_cast %357 : vector<1x8x32xf32> to vector<8x32xf32>
    %359 = vector.shape_cast %354 : vector<8x32xf32> to vector<1x8x32xf32>
    tpu.vector_store %arg14[%c1_186, %c0_187, %c0_188], %359 {strides = array<i32>} : memref<2x8x32xf32, #tpu.memory_space<vmem>>, vector<1x8x32xf32>,
    %c1_189 = arith.constant 1 : index
    %c0_190 = arith.constant 0 : index
    %c0_191 = arith.constant 0 : index
    %360 = vector.load %arg13[%c1_189, %c0_190, %c0_191] : memref<2x8x32xf32, #tpu.memory_space<vmem>>, vector<1x8x32xf32>
    %361 = vector.shape_cast %360 : vector<1x8x32xf32> to vector<8x32xf32>
    %362 = vector.shape_cast %356 : vector<8x32xf32> to vector<1x8x32xf32>
    tpu.vector_store %arg13[%c1_189, %c0_190, %c0_191], %362 {strides = array<i32>} : memref<2x8x32xf32, #tpu.memory_space<vmem>>, vector<1x8x32xf32>,
    %363 = arith.index_cast %332 : i32 to index
    %c0_192 = arith.constant 0 : index
    %364 = vector.load %arg12[%363, %c0_192] : memref<64x32xf32, #tpu.memory_space<vmem>>, vector<8x32xf32>
    tpu.vector_store %arg12[%363, %c0_192], %356 {strides = array<i32>} : memref<64x32xf32, #tpu.memory_space<vmem>>, vector<8x32xf32>,
    %c2_i32_193 = arith.constant 2 : i32
    %c8_i32_194 = arith.constant 8 : i32
    %365 = arith.muli %c2_i32_193, %c8_i32_194 : i32
    %366 = tpu.assume_multiple %365, 8 : i32
    %367 = arith.index_cast %366 : i32 to index
    %c0_195 = arith.constant 0 : index
    %368 = vector.load %arg11[%367, %c0_195] : memref<64x128xf32, #tpu.memory_space<vmem>>, vector<8x128xf32>
    %c1_196 = arith.constant 1 : index
    %c0_197 = arith.constant 0 : index
    %c0_198 = arith.constant 0 : index
    %369 = vector.load %arg13[%c1_196, %c0_197, %c0_198] : memref<2x8x32xf32, #tpu.memory_space<vmem>>, vector<1x8x32xf32>
    %370 = vector.shape_cast %369 : vector<1x8x32xf32> to vector<8x32xf32>
    %cst_199 = arith.constant dense<0.000000e+00> : vector<8x128xf32>
    %371 = tpu.matmul %370, %296, %cst_199 {dimension_numbers = #tpu.dot_dimension_numbers<[1], [0], [0], [1], [0, 0, 1, 1], [], []>} : vector<8x32xf32>, vector<32x128xf32>, vector<8x128xf32> -> vector<8x128xf32>
    %372 = arith.addf %368, %371 : vector<8x128xf32>
    %373 = arith.negf %372 : vector<8x128xf32>
    %374 = math.exp %373 : vector<8x128xf32>
    %cst_200 = arith.constant 1.000000e+00 : f32
    %375 = vector.broadcast %cst_200 : f32 to vector<8x128xf32>
    %376 = arith.addf %375, %374 : vector<8x128xf32>
    %377 = arith.divf %375, %376 : vector<8x128xf32>
    %378 = math.tanh %372 : vector<8x128xf32>
    %379 = arith.select %8, %378, %377 : vector<8x128xi1>, vector<8x128xf32>
    %380 = vector.extract_strided_slice %379 {offsets = [0, 0], sizes = [8, 32], strides = [1, 1]} : vector<8x128xf32> to vector<8x32xf32>
    %381 = vector.extract_strided_slice %379 {offsets = [0, 32], sizes = [8, 32], strides = [1, 1]} : vector<8x128xf32> to vector<8x32xf32>
    %382 = vector.extract_strided_slice %379 {offsets = [0, 64], sizes = [8, 32], strides = [1, 1]} : vector<8x128xf32> to vector<8x32xf32>
    %383 = vector.extract_strided_slice %379 {offsets = [0, 96], sizes = [8, 32], strides = [1, 1]} : vector<8x128xf32> to vector<8x32xf32>
    %c1_201 = arith.constant 1 : index
    %c0_202 = arith.constant 0 : index
    %c0_203 = arith.constant 0 : index
    %384 = vector.load %arg14[%c1_201, %c0_202, %c0_203] : memref<2x8x32xf32, #tpu.memory_space<vmem>>, vector<1x8x32xf32>
    %385 = vector.shape_cast %384 : vector<1x8x32xf32> to vector<8x32xf32>
    %386 = arith.mulf %381, %385 : vector<8x32xf32>
    %387 = arith.mulf %380, %382 : vector<8x32xf32>
    %388 = arith.addf %386, %387 : vector<8x32xf32>
    %389 = math.tanh %388 : vector<8x32xf32>
    %390 = arith.mulf %383, %389 : vector<8x32xf32>
    %c1_204 = arith.constant 1 : index
    %c0_205 = arith.constant 0 : index
    %c0_206 = arith.constant 0 : index
    %391 = vector.load %arg14[%c1_204, %c0_205, %c0_206] : memref<2x8x32xf32, #tpu.memory_space<vmem>>, vector<1x8x32xf32>
    %392 = vector.shape_cast %391 : vector<1x8x32xf32> to vector<8x32xf32>
    %393 = vector.shape_cast %388 : vector<8x32xf32> to vector<1x8x32xf32>
    tpu.vector_store %arg14[%c1_204, %c0_205, %c0_206], %393 {strides = array<i32>} : memref<2x8x32xf32, #tpu.memory_space<vmem>>, vector<1x8x32xf32>,
    %c1_207 = arith.constant 1 : index
    %c0_208 = arith.constant 0 : index
    %c0_209 = arith.constant 0 : index
    %394 = vector.load %arg13[%c1_207, %c0_208, %c0_209] : memref<2x8x32xf32, #tpu.memory_space<vmem>>, vector<1x8x32xf32>
    %395 = vector.shape_cast %394 : vector<1x8x32xf32> to vector<8x32xf32>
    %396 = vector.shape_cast %390 : vector<8x32xf32> to vector<1x8x32xf32>
    tpu.vector_store %arg13[%c1_207, %c0_208, %c0_209], %396 {strides = array<i32>} : memref<2x8x32xf32, #tpu.memory_space<vmem>>, vector<1x8x32xf32>,
    %397 = arith.index_cast %366 : i32 to index
    %c0_210 = arith.constant 0 : index
    %398 = vector.load %arg12[%397, %c0_210] : memref<64x32xf32, #tpu.memory_space<vmem>>, vector<8x32xf32>
    tpu.vector_store %arg12[%397, %c0_210], %390 {strides = array<i32>} : memref<64x32xf32, #tpu.memory_space<vmem>>, vector<8x32xf32>,
    %c3_i32_211 = arith.constant 3 : i32
    %c8_i32_212 = arith.constant 8 : i32
    %399 = arith.muli %c3_i32_211, %c8_i32_212 : i32
    %400 = tpu.assume_multiple %399, 8 : i32
    %401 = arith.index_cast %400 : i32 to index
    %c0_213 = arith.constant 0 : index
    %402 = vector.load %arg11[%401, %c0_213] : memref<64x128xf32, #tpu.memory_space<vmem>>, vector<8x128xf32>
    %c1_214 = arith.constant 1 : index
    %c0_215 = arith.constant 0 : index
    %c0_216 = arith.constant 0 : index
    %403 = vector.load %arg13[%c1_214, %c0_215, %c0_216] : memref<2x8x32xf32, #tpu.memory_space<vmem>>, vector<1x8x32xf32>
    %404 = vector.shape_cast %403 : vector<1x8x32xf32> to vector<8x32xf32>
    %cst_217 = arith.constant dense<0.000000e+00> : vector<8x128xf32>
    %405 = tpu.matmul %404, %296, %cst_217 {dimension_numbers = #tpu.dot_dimension_numbers<[1], [0], [0], [1], [0, 0, 1, 1], [], []>} : vector<8x32xf32>, vector<32x128xf32>, vector<8x128xf32> -> vector<8x128xf32>
    %406 = arith.addf %402, %405 : vector<8x128xf32>
    %407 = arith.negf %406 : vector<8x128xf32>
    %408 = math.exp %407 : vector<8x128xf32>
    %cst_218 = arith.constant 1.000000e+00 : f32
    %409 = vector.broadcast %cst_218 : f32 to vector<8x128xf32>
    %410 = arith.addf %409, %408 : vector<8x128xf32>
    %411 = arith.divf %409, %410 : vector<8x128xf32>
    %412 = math.tanh %406 : vector<8x128xf32>
    %413 = arith.select %8, %412, %411 : vector<8x128xi1>, vector<8x128xf32>
    %414 = vector.extract_strided_slice %413 {offsets = [0, 0], sizes = [8, 32], strides = [1, 1]} : vector<8x128xf32> to vector<8x32xf32>
    %415 = vector.extract_strided_slice %413 {offsets = [0, 32], sizes = [8, 32], strides = [1, 1]} : vector<8x128xf32> to vector<8x32xf32>
    %416 = vector.extract_strided_slice %413 {offsets = [0, 64], sizes = [8, 32], strides = [1, 1]} : vector<8x128xf32> to vector<8x32xf32>
    %417 = vector.extract_strided_slice %413 {offsets = [0, 96], sizes = [8, 32], strides = [1, 1]} : vector<8x128xf32> to vector<8x32xf32>
    %c1_219 = arith.constant 1 : index
    %c0_220 = arith.constant 0 : index
    %c0_221 = arith.constant 0 : index
    %418 = vector.load %arg14[%c1_219, %c0_220, %c0_221] : memref<2x8x32xf32, #tpu.memory_space<vmem>>, vector<1x8x32xf32>
    %419 = vector.shape_cast %418 : vector<1x8x32xf32> to vector<8x32xf32>
    %420 = arith.mulf %415, %419 : vector<8x32xf32>
    %421 = arith.mulf %414, %416 : vector<8x32xf32>
    %422 = arith.addf %420, %421 : vector<8x32xf32>
    %423 = math.tanh %422 : vector<8x32xf32>
    %424 = arith.mulf %417, %423 : vector<8x32xf32>
    %c1_222 = arith.constant 1 : index
    %c0_223 = arith.constant 0 : index
    %c0_224 = arith.constant 0 : index
    %425 = vector.load %arg14[%c1_222, %c0_223, %c0_224] : memref<2x8x32xf32, #tpu.memory_space<vmem>>, vector<1x8x32xf32>
    %426 = vector.shape_cast %425 : vector<1x8x32xf32> to vector<8x32xf32>
    %427 = vector.shape_cast %422 : vector<8x32xf32> to vector<1x8x32xf32>
    tpu.vector_store %arg14[%c1_222, %c0_223, %c0_224], %427 {strides = array<i32>} : memref<2x8x32xf32, #tpu.memory_space<vmem>>, vector<1x8x32xf32>,
    %c1_225 = arith.constant 1 : index
    %c0_226 = arith.constant 0 : index
    %c0_227 = arith.constant 0 : index
    %428 = vector.load %arg13[%c1_225, %c0_226, %c0_227] : memref<2x8x32xf32, #tpu.memory_space<vmem>>, vector<1x8x32xf32>
    %429 = vector.shape_cast %428 : vector<1x8x32xf32> to vector<8x32xf32>
    %430 = vector.shape_cast %424 : vector<8x32xf32> to vector<1x8x32xf32>
    tpu.vector_store %arg13[%c1_225, %c0_226, %c0_227], %430 {strides = array<i32>} : memref<2x8x32xf32, #tpu.memory_space<vmem>>, vector<1x8x32xf32>,
    %431 = arith.index_cast %400 : i32 to index
    %c0_228 = arith.constant 0 : index
    %432 = vector.load %arg12[%431, %c0_228] : memref<64x32xf32, #tpu.memory_space<vmem>>, vector<8x32xf32>
    tpu.vector_store %arg12[%431, %c0_228], %424 {strides = array<i32>} : memref<64x32xf32, #tpu.memory_space<vmem>>, vector<8x32xf32>,
    %c4_i32_229 = arith.constant 4 : i32
    %c8_i32_230 = arith.constant 8 : i32
    %433 = arith.muli %c4_i32_229, %c8_i32_230 : i32
    %434 = tpu.assume_multiple %433, 8 : i32
    %435 = arith.index_cast %434 : i32 to index
    %c0_231 = arith.constant 0 : index
    %436 = vector.load %arg11[%435, %c0_231] : memref<64x128xf32, #tpu.memory_space<vmem>>, vector<8x128xf32>
    %c1_232 = arith.constant 1 : index
    %c0_233 = arith.constant 0 : index
    %c0_234 = arith.constant 0 : index
    %437 = vector.load %arg13[%c1_232, %c0_233, %c0_234] : memref<2x8x32xf32, #tpu.memory_space<vmem>>, vector<1x8x32xf32>
    %438 = vector.shape_cast %437 : vector<1x8x32xf32> to vector<8x32xf32>
    %cst_235 = arith.constant dense<0.000000e+00> : vector<8x128xf32>
    %439 = tpu.matmul %438, %296, %cst_235 {dimension_numbers = #tpu.dot_dimension_numbers<[1], [0], [0], [1], [0, 0, 1, 1], [], []>} : vector<8x32xf32>, vector<32x128xf32>, vector<8x128xf32> -> vector<8x128xf32>
    %440 = arith.addf %436, %439 : vector<8x128xf32>
    %441 = arith.negf %440 : vector<8x128xf32>
    %442 = math.exp %441 : vector<8x128xf32>
    %cst_236 = arith.constant 1.000000e+00 : f32
    %443 = vector.broadcast %cst_236 : f32 to vector<8x128xf32>
    %444 = arith.addf %443, %442 : vector<8x128xf32>
    %445 = arith.divf %443, %444 : vector<8x128xf32>
    %446 = math.tanh %440 : vector<8x128xf32>
    %447 = arith.select %8, %446, %445 : vector<8x128xi1>, vector<8x128xf32>
    %448 = vector.extract_strided_slice %447 {offsets = [0, 0], sizes = [8, 32], strides = [1, 1]} : vector<8x128xf32> to vector<8x32xf32>
    %449 = vector.extract_strided_slice %447 {offsets = [0, 32], sizes = [8, 32], strides = [1, 1]} : vector<8x128xf32> to vector<8x32xf32>
    %450 = vector.extract_strided_slice %447 {offsets = [0, 64], sizes = [8, 32], strides = [1, 1]} : vector<8x128xf32> to vector<8x32xf32>
    %451 = vector.extract_strided_slice %447 {offsets = [0, 96], sizes = [8, 32], strides = [1, 1]} : vector<8x128xf32> to vector<8x32xf32>
    %c1_237 = arith.constant 1 : index
    %c0_238 = arith.constant 0 : index
    %c0_239 = arith.constant 0 : index
    %452 = vector.load %arg14[%c1_237, %c0_238, %c0_239] : memref<2x8x32xf32, #tpu.memory_space<vmem>>, vector<1x8x32xf32>
    %453 = vector.shape_cast %452 : vector<1x8x32xf32> to vector<8x32xf32>
    %454 = arith.mulf %449, %453 : vector<8x32xf32>
    %455 = arith.mulf %448, %450 : vector<8x32xf32>
    %456 = arith.addf %454, %455 : vector<8x32xf32>
    %457 = math.tanh %456 : vector<8x32xf32>
    %458 = arith.mulf %451, %457 : vector<8x32xf32>
    %c1_240 = arith.constant 1 : index
    %c0_241 = arith.constant 0 : index
    %c0_242 = arith.constant 0 : index
    %459 = vector.load %arg14[%c1_240, %c0_241, %c0_242] : memref<2x8x32xf32, #tpu.memory_space<vmem>>, vector<1x8x32xf32>
    %460 = vector.shape_cast %459 : vector<1x8x32xf32> to vector<8x32xf32>
    %461 = vector.shape_cast %456 : vector<8x32xf32> to vector<1x8x32xf32>
    tpu.vector_store %arg14[%c1_240, %c0_241, %c0_242], %461 {strides = array<i32>} : memref<2x8x32xf32, #tpu.memory_space<vmem>>, vector<1x8x32xf32>,
    %c1_243 = arith.constant 1 : index
    %c0_244 = arith.constant 0 : index
    %c0_245 = arith.constant 0 : index
    %462 = vector.load %arg13[%c1_243, %c0_244, %c0_245] : memref<2x8x32xf32, #tpu.memory_space<vmem>>, vector<1x8x32xf32>
    %463 = vector.shape_cast %462 : vector<1x8x32xf32> to vector<8x32xf32>
    %464 = vector.shape_cast %458 : vector<8x32xf32> to vector<1x8x32xf32>
    tpu.vector_store %arg13[%c1_243, %c0_244, %c0_245], %464 {strides = array<i32>} : memref<2x8x32xf32, #tpu.memory_space<vmem>>, vector<1x8x32xf32>,
    %465 = arith.index_cast %434 : i32 to index
    %c0_246 = arith.constant 0 : index
    %466 = vector.load %arg12[%465, %c0_246] : memref<64x32xf32, #tpu.memory_space<vmem>>, vector<8x32xf32>
    tpu.vector_store %arg12[%465, %c0_246], %458 {strides = array<i32>} : memref<64x32xf32, #tpu.memory_space<vmem>>, vector<8x32xf32>,
    %c5_i32_247 = arith.constant 5 : i32
    %c8_i32_248 = arith.constant 8 : i32
    %467 = arith.muli %c5_i32_247, %c8_i32_248 : i32
    %468 = tpu.assume_multiple %467, 8 : i32
    %469 = arith.index_cast %468 : i32 to index
    %c0_249 = arith.constant 0 : index
    %470 = vector.load %arg11[%469, %c0_249] : memref<64x128xf32, #tpu.memory_space<vmem>>, vector<8x128xf32>
    %c1_250 = arith.constant 1 : index
    %c0_251 = arith.constant 0 : index
    %c0_252 = arith.constant 0 : index
    %471 = vector.load %arg13[%c1_250, %c0_251, %c0_252] : memref<2x8x32xf32, #tpu.memory_space<vmem>>, vector<1x8x32xf32>
    %472 = vector.shape_cast %471 : vector<1x8x32xf32> to vector<8x32xf32>
    %cst_253 = arith.constant dense<0.000000e+00> : vector<8x128xf32>
    %473 = tpu.matmul %472, %296, %cst_253 {dimension_numbers = #tpu.dot_dimension_numbers<[1], [0], [0], [1], [0, 0, 1, 1], [], []>} : vector<8x32xf32>, vector<32x128xf32>, vector<8x128xf32> -> vector<8x128xf32>
    %474 = arith.addf %470, %473 : vector<8x128xf32>
    %475 = arith.negf %474 : vector<8x128xf32>
    %476 = math.exp %475 : vector<8x128xf32>
    %cst_254 = arith.constant 1.000000e+00 : f32
    %477 = vector.broadcast %cst_254 : f32 to vector<8x128xf32>
    %478 = arith.addf %477, %476 : vector<8x128xf32>
    %479 = arith.divf %477, %478 : vector<8x128xf32>
    %480 = math.tanh %474 : vector<8x128xf32>
    %481 = arith.select %8, %480, %479 : vector<8x128xi1>, vector<8x128xf32>
    %482 = vector.extract_strided_slice %481 {offsets = [0, 0], sizes = [8, 32], strides = [1, 1]} : vector<8x128xf32> to vector<8x32xf32>
    %483 = vector.extract_strided_slice %481 {offsets = [0, 32], sizes = [8, 32], strides = [1, 1]} : vector<8x128xf32> to vector<8x32xf32>
    %484 = vector.extract_strided_slice %481 {offsets = [0, 64], sizes = [8, 32], strides = [1, 1]} : vector<8x128xf32> to vector<8x32xf32>
    %485 = vector.extract_strided_slice %481 {offsets = [0, 96], sizes = [8, 32], strides = [1, 1]} : vector<8x128xf32> to vector<8x32xf32>
    %c1_255 = arith.constant 1 : index
    %c0_256 = arith.constant 0 : index
    %c0_257 = arith.constant 0 : index
    %486 = vector.load %arg14[%c1_255, %c0_256, %c0_257] : memref<2x8x32xf32, #tpu.memory_space<vmem>>, vector<1x8x32xf32>
    %487 = vector.shape_cast %486 : vector<1x8x32xf32> to vector<8x32xf32>
    %488 = arith.mulf %483, %487 : vector<8x32xf32>
    %489 = arith.mulf %482, %484 : vector<8x32xf32>
    %490 = arith.addf %488, %489 : vector<8x32xf32>
    %491 = math.tanh %490 : vector<8x32xf32>
    %492 = arith.mulf %485, %491 : vector<8x32xf32>
    %c1_258 = arith.constant 1 : index
    %c0_259 = arith.constant 0 : index
    %c0_260 = arith.constant 0 : index
    %493 = vector.load %arg14[%c1_258, %c0_259, %c0_260] : memref<2x8x32xf32, #tpu.memory_space<vmem>>, vector<1x8x32xf32>
    %494 = vector.shape_cast %493 : vector<1x8x32xf32> to vector<8x32xf32>
    %495 = vector.shape_cast %490 : vector<8x32xf32> to vector<1x8x32xf32>
    tpu.vector_store %arg14[%c1_258, %c0_259, %c0_260], %495 {strides = array<i32>} : memref<2x8x32xf32, #tpu.memory_space<vmem>>, vector<1x8x32xf32>,
    %c1_261 = arith.constant 1 : index
    %c0_262 = arith.constant 0 : index
    %c0_263 = arith.constant 0 : index
    %496 = vector.load %arg13[%c1_261, %c0_262, %c0_263] : memref<2x8x32xf32, #tpu.memory_space<vmem>>, vector<1x8x32xf32>
    %497 = vector.shape_cast %496 : vector<1x8x32xf32> to vector<8x32xf32>
    %498 = vector.shape_cast %492 : vector<8x32xf32> to vector<1x8x32xf32>
    tpu.vector_store %arg13[%c1_261, %c0_262, %c0_263], %498 {strides = array<i32>} : memref<2x8x32xf32, #tpu.memory_space<vmem>>, vector<1x8x32xf32>,
    %499 = arith.index_cast %468 : i32 to index
    %c0_264 = arith.constant 0 : index
    %500 = vector.load %arg12[%499, %c0_264] : memref<64x32xf32, #tpu.memory_space<vmem>>, vector<8x32xf32>
    tpu.vector_store %arg12[%499, %c0_264], %492 {strides = array<i32>} : memref<64x32xf32, #tpu.memory_space<vmem>>, vector<8x32xf32>,
    %c6_i32_265 = arith.constant 6 : i32
    %c8_i32_266 = arith.constant 8 : i32
    %501 = arith.muli %c6_i32_265, %c8_i32_266 : i32
    %502 = tpu.assume_multiple %501, 8 : i32
    %503 = arith.index_cast %502 : i32 to index
    %c0_267 = arith.constant 0 : index
    %504 = vector.load %arg11[%503, %c0_267] : memref<64x128xf32, #tpu.memory_space<vmem>>, vector<8x128xf32>
    %c1_268 = arith.constant 1 : index
    %c0_269 = arith.constant 0 : index
    %c0_270 = arith.constant 0 : index
    %505 = vector.load %arg13[%c1_268, %c0_269, %c0_270] : memref<2x8x32xf32, #tpu.memory_space<vmem>>, vector<1x8x32xf32>
    %506 = vector.shape_cast %505 : vector<1x8x32xf32> to vector<8x32xf32>
    %cst_271 = arith.constant dense<0.000000e+00> : vector<8x128xf32>
    %507 = tpu.matmul %506, %296, %cst_271 {dimension_numbers = #tpu.dot_dimension_numbers<[1], [0], [0], [1], [0, 0, 1, 1], [], []>} : vector<8x32xf32>, vector<32x128xf32>, vector<8x128xf32> -> vector<8x128xf32>
    %508 = arith.addf %504, %507 : vector<8x128xf32>
    %509 = arith.negf %508 : vector<8x128xf32>
    %510 = math.exp %509 : vector<8x128xf32>
    %cst_272 = arith.constant 1.000000e+00 : f32
    %511 = vector.broadcast %cst_272 : f32 to vector<8x128xf32>
    %512 = arith.addf %511, %510 : vector<8x128xf32>
    %513 = arith.divf %511, %512 : vector<8x128xf32>
    %514 = math.tanh %508 : vector<8x128xf32>
    %515 = arith.select %8, %514, %513 : vector<8x128xi1>, vector<8x128xf32>
    %516 = vector.extract_strided_slice %515 {offsets = [0, 0], sizes = [8, 32], strides = [1, 1]} : vector<8x128xf32> to vector<8x32xf32>
    %517 = vector.extract_strided_slice %515 {offsets = [0, 32], sizes = [8, 32], strides = [1, 1]} : vector<8x128xf32> to vector<8x32xf32>
    %518 = vector.extract_strided_slice %515 {offsets = [0, 64], sizes = [8, 32], strides = [1, 1]} : vector<8x128xf32> to vector<8x32xf32>
    %519 = vector.extract_strided_slice %515 {offsets = [0, 96], sizes = [8, 32], strides = [1, 1]} : vector<8x128xf32> to vector<8x32xf32>
    %c1_273 = arith.constant 1 : index
    %c0_274 = arith.constant 0 : index
    %c0_275 = arith.constant 0 : index
    %520 = vector.load %arg14[%c1_273, %c0_274, %c0_275] : memref<2x8x32xf32, #tpu.memory_space<vmem>>, vector<1x8x32xf32>
    %521 = vector.shape_cast %520 : vector<1x8x32xf32> to vector<8x32xf32>
    %522 = arith.mulf %517, %521 : vector<8x32xf32>
    %523 = arith.mulf %516, %518 : vector<8x32xf32>
    %524 = arith.addf %522, %523 : vector<8x32xf32>
    %525 = math.tanh %524 : vector<8x32xf32>
    %526 = arith.mulf %519, %525 : vector<8x32xf32>
    %c1_276 = arith.constant 1 : index
    %c0_277 = arith.constant 0 : index
    %c0_278 = arith.constant 0 : index
    %527 = vector.load %arg14[%c1_276, %c0_277, %c0_278] : memref<2x8x32xf32, #tpu.memory_space<vmem>>, vector<1x8x32xf32>
    %528 = vector.shape_cast %527 : vector<1x8x32xf32> to vector<8x32xf32>
    %529 = vector.shape_cast %524 : vector<8x32xf32> to vector<1x8x32xf32>
    tpu.vector_store %arg14[%c1_276, %c0_277, %c0_278], %529 {strides = array<i32>} : memref<2x8x32xf32, #tpu.memory_space<vmem>>, vector<1x8x32xf32>,
    %c1_279 = arith.constant 1 : index
    %c0_280 = arith.constant 0 : index
    %c0_281 = arith.constant 0 : index
    %530 = vector.load %arg13[%c1_279, %c0_280, %c0_281] : memref<2x8x32xf32, #tpu.memory_space<vmem>>, vector<1x8x32xf32>
    %531 = vector.shape_cast %530 : vector<1x8x32xf32> to vector<8x32xf32>
    %532 = vector.shape_cast %526 : vector<8x32xf32> to vector<1x8x32xf32>
    tpu.vector_store %arg13[%c1_279, %c0_280, %c0_281], %532 {strides = array<i32>} : memref<2x8x32xf32, #tpu.memory_space<vmem>>, vector<1x8x32xf32>,
    %533 = arith.index_cast %502 : i32 to index
    %c0_282 = arith.constant 0 : index
    %534 = vector.load %arg12[%533, %c0_282] : memref<64x32xf32, #tpu.memory_space<vmem>>, vector<8x32xf32>
    tpu.vector_store %arg12[%533, %c0_282], %526 {strides = array<i32>} : memref<64x32xf32, #tpu.memory_space<vmem>>, vector<8x32xf32>,
    %c7_i32_283 = arith.constant 7 : i32
    %c8_i32_284 = arith.constant 8 : i32
    %535 = arith.muli %c7_i32_283, %c8_i32_284 : i32
    %536 = tpu.assume_multiple %535, 8 : i32
    %537 = arith.index_cast %536 : i32 to index
    %c0_285 = arith.constant 0 : index
    %538 = vector.load %arg11[%537, %c0_285] : memref<64x128xf32, #tpu.memory_space<vmem>>, vector<8x128xf32>
    %c1_286 = arith.constant 1 : index
    %c0_287 = arith.constant 0 : index
    %c0_288 = arith.constant 0 : index
    %539 = vector.load %arg13[%c1_286, %c0_287, %c0_288] : memref<2x8x32xf32, #tpu.memory_space<vmem>>, vector<1x8x32xf32>
    %540 = vector.shape_cast %539 : vector<1x8x32xf32> to vector<8x32xf32>
    %cst_289 = arith.constant dense<0.000000e+00> : vector<8x128xf32>
    %541 = tpu.matmul %540, %296, %cst_289 {dimension_numbers = #tpu.dot_dimension_numbers<[1], [0], [0], [1], [0, 0, 1, 1], [], []>} : vector<8x32xf32>, vector<32x128xf32>, vector<8x128xf32> -> vector<8x128xf32>
    %542 = arith.addf %538, %541 : vector<8x128xf32>
    %543 = arith.negf %542 : vector<8x128xf32>
    %544 = math.exp %543 : vector<8x128xf32>
    %cst_290 = arith.constant 1.000000e+00 : f32
    %545 = vector.broadcast %cst_290 : f32 to vector<8x128xf32>
    %546 = arith.addf %545, %544 : vector<8x128xf32>
    %547 = arith.divf %545, %546 : vector<8x128xf32>
    %548 = math.tanh %542 : vector<8x128xf32>
    %549 = arith.select %8, %548, %547 : vector<8x128xi1>, vector<8x128xf32>
    %550 = vector.extract_strided_slice %549 {offsets = [0, 0], sizes = [8, 32], strides = [1, 1]} : vector<8x128xf32> to vector<8x32xf32>
    %551 = vector.extract_strided_slice %549 {offsets = [0, 32], sizes = [8, 32], strides = [1, 1]} : vector<8x128xf32> to vector<8x32xf32>
    %552 = vector.extract_strided_slice %549 {offsets = [0, 64], sizes = [8, 32], strides = [1, 1]} : vector<8x128xf32> to vector<8x32xf32>
    %553 = vector.extract_strided_slice %549 {offsets = [0, 96], sizes = [8, 32], strides = [1, 1]} : vector<8x128xf32> to vector<8x32xf32>
    %c1_291 = arith.constant 1 : index
    %c0_292 = arith.constant 0 : index
    %c0_293 = arith.constant 0 : index
    %554 = vector.load %arg14[%c1_291, %c0_292, %c0_293] : memref<2x8x32xf32, #tpu.memory_space<vmem>>, vector<1x8x32xf32>
    %555 = vector.shape_cast %554 : vector<1x8x32xf32> to vector<8x32xf32>
    %556 = arith.mulf %551, %555 : vector<8x32xf32>
    %557 = arith.mulf %550, %552 : vector<8x32xf32>
    %558 = arith.addf %556, %557 : vector<8x32xf32>
    %559 = math.tanh %558 : vector<8x32xf32>
    %560 = arith.mulf %553, %559 : vector<8x32xf32>
    %c1_294 = arith.constant 1 : index
    %c0_295 = arith.constant 0 : index
    %c0_296 = arith.constant 0 : index
    %561 = vector.load %arg14[%c1_294, %c0_295, %c0_296] : memref<2x8x32xf32, #tpu.memory_space<vmem>>, vector<1x8x32xf32>
    %562 = vector.shape_cast %561 : vector<1x8x32xf32> to vector<8x32xf32>
    %563 = vector.shape_cast %558 : vector<8x32xf32> to vector<1x8x32xf32>
    tpu.vector_store %arg14[%c1_294, %c0_295, %c0_296], %563 {strides = array<i32>} : memref<2x8x32xf32, #tpu.memory_space<vmem>>, vector<1x8x32xf32>,
    %c1_297 = arith.constant 1 : index
    %c0_298 = arith.constant 0 : index
    %c0_299 = arith.constant 0 : index
    %564 = vector.load %arg13[%c1_297, %c0_298, %c0_299] : memref<2x8x32xf32, #tpu.memory_space<vmem>>, vector<1x8x32xf32>
    %565 = vector.shape_cast %564 : vector<1x8x32xf32> to vector<8x32xf32>
    %566 = vector.shape_cast %560 : vector<8x32xf32> to vector<1x8x32xf32>
    tpu.vector_store %arg13[%c1_297, %c0_298, %c0_299], %566 {strides = array<i32>} : memref<2x8x32xf32, #tpu.memory_space<vmem>>, vector<1x8x32xf32>,
    %567 = arith.index_cast %536 : i32 to index
    %c0_300 = arith.constant 0 : index
    %568 = vector.load %arg12[%567, %c0_300] : memref<64x32xf32, #tpu.memory_space<vmem>>, vector<8x32xf32>
    tpu.vector_store %arg12[%567, %c0_300], %560 {strides = array<i32>} : memref<64x32xf32, #tpu.memory_space<vmem>>, vector<8x32xf32>,
    %c8_i32_301 = arith.constant 8 : i32
    %c0_302 = arith.constant 0 : index
    %c0_303 = arith.constant 0 : index
    %569 = vector.load %arg12[%c0_302, %c0_303] : memref<64x32xf32, #tpu.memory_space<vmem>>, vector<64x32xf32>
    %c0_304 = arith.constant 0 : index
    %c0_305 = arith.constant 0 : index
    %570 = vector.load %arg8[%c0_304, %c0_305] : memref<32x128xf32, #tpu.memory_space<vmem>>, vector<32x128xf32>
    %cst_306 = arith.constant dense<0.000000e+00> : vector<64x128xf32>
    %571 = tpu.matmul %569, %570, %cst_306 {dimension_numbers = #tpu.dot_dimension_numbers<[1], [0], [0], [1], [0, 0, 1, 1], [], []>} : vector<64x32xf32>, vector<32x128xf32>, vector<64x128xf32> -> vector<64x128xf32>
    %c0_307 = arith.constant 0 : index
    %c0_308 = arith.constant 0 : index
    %572 = vector.load %arg9[%c0_307, %c0_308] : memref<1x128xf32, #tpu.memory_space<vmem>>, vector<1x128xf32>
    %573 = vector.broadcast %572 : vector<1x128xf32> to vector<64x128xf32>
    %574 = arith.addf %571, %573 : vector<64x128xf32>
    %c0_309 = arith.constant 0 : index
    %c0_310 = arith.constant 0 : index
    %575 = vector.load %arg10[%c0_309, %c0_310] : memref<64x128xf32, #tpu.memory_space<vmem>>, vector<64x128xf32>
    tpu.vector_store %arg10[%c0_309, %c0_310], %574 {strides = array<i32>} : memref<64x128xf32, #tpu.memory_space<vmem>>, vector<64x128xf32>,
    return
  }
  func.func @transform_0(%arg0: i32) -> (i32, i32) {
    %c0_i32 = arith.constant 0 : i32
    %c0_i32_0 = arith.constant 0 : i32
    return %arg0, %c0_i32 : i32, i32
  }
  func.func @transform_1(%arg0: i32) -> (i32, i32) {
    %c0_i32 = arith.constant 0 : i32
    %c0_i32_0 = arith.constant 0 : i32
    %c0_i32_1 = arith.constant 0 : i32
    return %c0_i32, %c0_i32_0 : i32, i32
  }
  func.func @transform_2(%arg0: i32) -> (i32, i32) {
    %c0_i32 = arith.constant 0 : i32
    %c0_i32_0 = arith.constant 0 : i32
    %c0_i32_1 = arith.constant 0 : i32
    return %c0_i32, %c0_i32_0 : i32, i32
  }
  func.func @transform_3(%arg0: i32) -> (i32, i32) {
    %c0_i32 = arith.constant 0 : i32
    %c0_i32_0 = arith.constant 0 : i32
    %c0_i32_1 = arith.constant 0 : i32
    return %c0_i32, %c0_i32_0 : i32, i32
  }
  func.func @transform_4(%arg0: i32) -> (i32, i32) {
    %c0_i32 = arith.constant 0 : i32
    %c0_i32_0 = arith.constant 0 : i32
    %c0_i32_1 = arith.constant 0 : i32
    return %c0_i32, %c0_i32_0 : i32, i32
  }
  func.func @transform_5(%arg0: i32) -> (i32, i32) {
    %c0_i32 = arith.constant 0 : i32
    %c0_i32_0 = arith.constant 0 : i32
    %c0_i32_1 = arith.constant 0 : i32
    return %c0_i32, %c0_i32_0 : i32, i32
  }
  func.func @transform_6(%arg0: i32) -> (i32, i32) {
    %c0_i32 = arith.constant 0 : i32
    %c0_i32_0 = arith.constant 0 : i32
    %c0_i32_1 = arith.constant 0 : i32
    return %c0_i32, %c0_i32_0 : i32, i32
  }
  func.func @transform_7(%arg0: i32) -> (i32, i32) {
    %c0_i32 = arith.constant 0 : i32
    %c0_i32_0 = arith.constant 0 : i32
    %c0_i32_1 = arith.constant 0 : i32
    return %c0_i32, %c0_i32_0 : i32, i32
  }
  func.func @transform_8(%arg0: i32) -> (i32, i32) {
    %c0_i32 = arith.constant 0 : i32
    %c0_i32_0 = arith.constant 0 : i32
    %c0_i32_1 = arith.constant 0 : i32
    return %c0_i32, %c0_i32_0 : i32, i32
  }
  func.func @transform_9(%arg0: i32) -> (i32, i32) {
    %c0_i32 = arith.constant 0 : i32
    %c0_i32_0 = arith.constant 0 : i32
    return %arg0, %c0_i32 : i32, i32
  }
}

</mosaic_0001>

<llo_original>
// kernel: tpu_custom_call.1
$region0: #{tpu_custom_call.1}
  #allocation0 [shape = 'u32[]', space=smem, size = 0x4, offset = 0x4, fixed_abs, tag = 'smem constant byte address 0x4 - core index']
  #allocation1 [shape = 'u32[144,128]{1,0:T(1,128)}', space=vmem, size = 0x12000, scoped, tag = 'internal scratch']
  #allocation2 [shape = 'f32[64,128]{1,0:T(8,128)}', space=vmem, size = 0x8000, scoped, tag = 'scratch operand']
  #allocation3 [shape = 'f32[64,32]{1,0:T(8,128)}', space=vmem, size = 0x8000, scoped, tag = 'scratch operand']
  #allocation4 [shape = 'f32[2,8,32]{2,1,0:T(8,128)}', space=vmem, size = 0x2000, scoped, tag = 'scratch operand']
  #allocation5 [shape = 'f32[2,8,32]{2,1,0:T(8,128)}', space=vmem, size = 0x2000, scoped, tag = 'scratch operand']
  %s0 = inlined_call_operand.vmem [shape: f32[64,16], index: 0, kind: input, shape index: {}]
  %s1 = inlined_call_operand.hbm [shape: f32[16,128], index: 1, kind: input, shape index: {}]
  %s2 = inlined_call_operand.vmem [shape: f32[32,128], index: 2, kind: input, shape index: {}]
  %s3 = inlined_call_operand.vmem [shape: f32[1,128], index: 3, kind: input, shape index: {}]
  %s4 = inlined_call_operand.vmem [shape: f32[32,128], index: 4, kind: input, shape index: {}]
  %s5 = inlined_call_operand.vmem [shape: f32[32,128], index: 5, kind: input, shape index: {}]
  %s6 = inlined_call_operand.vmem [shape: f32[1,128], index: 6, kind: input, shape index: {}]
  %s7 = inlined_call_operand.hbm [shape: f32[32,128], index: 7, kind: input, shape index: {}]
  %s8 = inlined_call_operand.vmem [shape: f32[1,128], index: 8, kind: input, shape index: {}]
  %s9 = inlined_call_operand.hbm [shape: f32[64,128], index: 9, kind: output, shape index: {}]
  %s10 = sld [smem:[#allocation0]]
  $region58: #{tpu_custom_call.1} parent=0
    _
  %s12 = ssub.s32 1, %s10
  %s13 = scalar_select 0, %s12, %s10
  $region1: #{tpu_custom_call.1} parent=0
    #allocation6 [shape = 'u8[8192]{0}', space=vmem, size = 0x2000, scoped, tag = 'input window, operand 1, single buffered']
    #allocation7 [shape = 's32[1]{0}', space=sflag, size = 0x4, scoped, tag = 'scoped memory for tpu_custom_call.1']
    #allocation8 [shape = 's32[1]{0}', space=sflag, size = 0x4, scoped, tag = 'scoped memory for tpu_custom_call.1']
    #allocation9 [shape = 'u8[16384]{0}', space=vmem, size = 0x4000, scoped, tag = 'input window, operand 7, single buffered']
    #allocation10 [shape = 's32[1]{0}', space=sflag, size = 0x4, scoped, tag = 'scoped memory for tpu_custom_call.1']
    #allocation11 [shape = 'u8[32768]{0}', space=vmem, size = 0x8000, scoped, tag = 'output window, operand 0, single buffered']
    %14 = vsyncpa [#allocation7], 0
    %15 = vsyncpa [#allocation10], 0
    %16 = vsyncpa [#allocation8], 0
    // Predicated region
    $region2: #{tpu_custom_call.1} parent=1 // pred_check
      _
    $region3: #{tpu_custom_call.1} parent=1 // pred_check_branch
      %18 = sbr.rel (0) target = $region5
    $region4: #{tpu_custom_call.1} parent=1 // pred_region
      _
    $region5: #{tpu_custom_call.1} parent=1 // pred_fallthru
      _
    // Predicated region
    $region6: #{tpu_custom_call.1} parent=1 // pred_check
      _
    $region7: #{tpu_custom_call.1} parent=1 // pred_check_branch
      %20 = sbr.rel (0) target = $region9
    $region8: #{tpu_custom_call.1} parent=1 // pred_region
      %s22 = ssub.s32 256, 256
      %23 = vsyncadd [#allocation7], %s22
      %s24 = sshll.u32 [#allocation6], 4
      %s25 = int_to_ptr.vmem [resolvable:$true] %s24
      %30 = dma.hbm_to_vmem [thread:$0]  %s1, 256, %s25, [#allocation7], 128, 128, 8
    $region9: #{tpu_custom_call.1} parent=1 // pred_fallthru
      _
    // Predicated region
    $region10: #{tpu_custom_call.1} parent=1 // pred_check
      _
    $region11: #{tpu_custom_call.1} parent=1 // pred_check_branch
      %32 = sbr.rel (0) target = $region13
    $region12: #{tpu_custom_call.1} parent=1 // pred_region
      _
    $region13: #{tpu_custom_call.1} parent=1 // pred_fallthru
      _
    // Predicated region
    $region14: #{tpu_custom_call.1} parent=1 // pred_check
      _
    $region15: #{tpu_custom_call.1} parent=1 // pred_check_branch
      %34 = sbr.rel (0) target = $region17
    $region16: #{tpu_custom_call.1} parent=1 // pred_region
      _
    $region17: #{tpu_custom_call.1} parent=1 // pred_fallthru
      _
    // Predicated region
    $region18: #{tpu_custom_call.1} parent=1 // pred_check
      _
    $region19: #{tpu_custom_call.1} parent=1 // pred_check_branch
      %36 = sbr.rel (0) target = $region21
    $region20: #{tpu_custom_call.1} parent=1 // pred_region
      _
    $region21: #{tpu_custom_call.1} parent=1 // pred_fallthru
      _
    // Predicated region
    $region22: #{tpu_custom_call.1} parent=1 // pred_check
      _
    $region23: #{tpu_custom_call.1} parent=1 // pred_check_branch
      %38 = sbr.rel (0) target = $region25
    $region24: #{tpu_custom_call.1} parent=1 // pred_region
      _
    $region25: #{tpu_custom_call.1} parent=1 // pred_fallthru
      _
    // Predicated region
    $region26: #{tpu_custom_call.1} parent=1 // pred_check
      _
    $region27: #{tpu_custom_call.1} parent=1 // pred_check_branch
      %40 = sbr.rel (0) target = $region29
    $region28: #{tpu_custom_call.1} parent=1 // pred_region
      _
    $region29: #{tpu_custom_call.1} parent=1 // pred_fallthru
      _
    // Predicated region
    $region30: #{tpu_custom_call.1} parent=1 // pred_check
      _
    $region31: #{tpu_custom_call.1} parent=1 // pred_check_branch
      %42 = sbr.rel (0) target = $region33
    $region32: #{tpu_custom_call.1} parent=1 // pred_region
      %s44 = ssub.s32 512, 512
      %45 = vsyncadd [#allocation10], %s44
      %s46 = sshll.u32 [#allocation9], 4
      %s47 = int_to_ptr.vmem [resolvable:$true] %s46
      %52 = dma.hbm_to_vmem [thread:$0]  %s7, 512, %s47, [#allocation10], 128, 128, 8
    $region33: #{tpu_custom_call.1} parent=1 // pred_fallthru
      _
    // Predicated region
    $region34: #{tpu_custom_call.1} parent=1 // pred_check
      _
    $region35: #{tpu_custom_call.1} parent=1 // pred_check_branch
      %54 = sbr.rel (0) target = $region37
    $region36: #{tpu_custom_call.1} parent=1 // pred_region
      _
    $region37: #{tpu_custom_call.1} parent=1 // pred_fallthru
      _
    // Predicated region
    $region38: #{tpu_custom_call.1} parent=1 // pred_check
      _
    $region39: #{tpu_custom_call.1} parent=1 // pred_check_branch
      %56 = sbr.rel (0) target = $region41
    $region40: #{tpu_custom_call.1} parent=1 // pred_region
      %57 = dma.done [#allocation7], 256
    $region41: #{tpu_custom_call.1} parent=1 // pred_fallthru
      _
    // Predicated region
    $region42: #{tpu_custom_call.1} parent=1 // pred_check
      _
    $region43: #{tpu_custom_call.1} parent=1 // pred_check_branch
      %59 = sbr.rel (0) target = $region45
    $region44: #{tpu_custom_call.1} parent=1 // pred_region
      %60 = dma.done [#allocation10], 512
    $region45: #{tpu_custom_call.1} parent=1 // pred_fallthru
      _
    %p61 = scmp.eq.s32.totalorder 0, 0
    // Predicated region
    $region46: #{tpu_custom_call.1} parent=1 // pred_check
      %p62 = pneg %p61
    $region47: #{tpu_custom_call.1} parent=1 // pred_check_branch
      %64 = sbr.rel (%p62) target = $region49
    $region48: #{tpu_custom_call.1} parent=1 // pred_region
      %vm65 = vcmask 261120
      %66 = vst.msk [vmem:[#allocation4] sm:$0xff] %vm65, 0.0
      %67 = vst.msk [vmem:[#allocation4 + $0x8] sm:$0xff] %vm65, 0.0
      %68 = vst.msk [vmem:[#allocation5] sm:$0xff] %vm65, 0.0
      %69 = vst.msk [vmem:[#allocation5 + $0x8] sm:$0xff] %vm65, 0.0
    $region49: #{tpu_custom_call.1} parent=1 // pred_fallthru
      _
    %v70 = vlaneseq
    %v71 = vand.u32 %v70, 127
    %vm72 = vcmp.ge.s32.totalorder %v71, 64
    %vm73 = vcmp.lt.s32.totalorder %v71, 96
    %vm74 = vmand %vm72, %vm73
    %v75 = vld [vmem:[%s0] sm:$0xff]
    %v76 = vld [vmem:[%s0 + $0x8] sm:$0xff]
    %v77 = vld [vmem:[%s0 + $0x10] sm:$0xff]
    %v78 = vld [vmem:[%s0 + $0x18] sm:$0xff]
    %v79 = vld [vmem:[%s0 + $0x20] sm:$0xff]
    %v80 = vld [vmem:[%s0 + $0x28] sm:$0xff]
    %v81 = vld [vmem:[%s0 + $0x30] sm:$0xff]
    %v82 = vld [vmem:[%s0 + $0x38] sm:$0xff]
    %v83 = vld [vmem:[#allocation6] sm:$0xff]
    %v84 = vld [vmem:[#allocation6 + $0x8] sm:$0xff]
    %v85 = vld [vmem:[%s3] sm:$0x1]
    %v87 = vlaneseq
    %v88 = vshrl.u32 %v87, 7
    %v89 = vsub.s32 0, %v88
    %v90 = vrot.slane %v85, %v89
    %vm92 = vcmask 130048
    %v94 = vsel %vm92, %v75, 0
    %v97 = vsel %vm92, %v76, 0
    %v100 = vsel %vm92, %v77, 0
    %v103 = vsel %vm92, %v78, 0
    %v106 = vsel %vm92, %v79, 0
    %v109 = vsel %vm92, %v80, 0
    %v112 = vsel %vm92, %v81, 0
    %v115 = vsel %vm92, %v82, 0
    %117 = vmatprep.subr.mxu0 0.0
    %118 = vmatpush1.msra.mxu0 %v83
    %119 = vmatprep.subr.mxu0 0.0
    %120 = vmatpush1.msra.mxu0 %v84
    %121 = vmatprep.subr.mxu0 0.0
    %122 = vmatpush1.msra.mxu0 0.0
    %123 = vmatprep.subr.mxu0 0.0
    %124 = vmatpush1.msra.mxu0 0.0
    %125 = vmatprep.subr.mxu0 0.0
    %126 = vmatpush1.msra.mxu0 0.0
    %127 = vmatprep.subr.mxu0 0.0
    %128 = vmatpush1.msra.mxu0 0.0
    %129 = vmatprep.subr.mxu0 0.0
    %130 = vmatpush1.msra.mxu0 0.0
    %131 = vmatprep.subr.mxu0 0.0
    %132 = vmatpush1.msra.mxu0 0.0
    %133 = vmatprep.subr.mxu0 0.0
    %134 = vmatpush1.msra.mxu0 0.0
    %135 = vmatprep.subr.mxu0 0.0
    %136 = vmatpush1.msra.mxu0 0.0
    %137 = vmatprep.subr.mxu0 0.0
    %138 = vmatpush1.msra.mxu0 0.0
    %139 = vmatprep.subr.mxu0 0.0
    %140 = vmatpush1.msra.mxu0 0.0
    %141 = vmatprep.subr.mxu0 0.0
    %142 = vmatpush1.msra.mxu0 0.0
    %143 = vmatprep.subr.mxu0 0.0
    %144 = vmatpush1.msra.mxu0 0.0
    %145 = vmatprep.subr.mxu0 0.0
    %146 = vmatpush1.msra.mxu0 0.0
    %147 = vmatprep.subr.mxu0 0.0
    %148 = vmatpush1.msra.mxu0 0.0
    %149 = vmatprep.subr.mxu0 0.0
    %150 = vmatpush1.msra.mxu0 0.0
    %151 = vmatprep.subr.mxu0 0.0
    %152 = vmatpush1.msra.mxu0 0.0
    %153 = vmatprep.subr.mxu0 0.0
    %154 = vmatpush1.msra.mxu0 0.0
    %155 = vmatprep.subr.mxu0 0.0
    %156 = vmatpush1.msra.mxu0 0.0
    %157 = vmatprep.subr.mxu0 0.0
    %158 = vmatpush1.msra.mxu0 0.0
    %159 = vmatprep.subr.mxu0 0.0
    %160 = vmatpush1.msra.mxu0 0.0
    %161 = vmatprep.subr.mxu0 0.0
    %162 = vmatpush1.msra.mxu0 0.0
    %163 = vmatprep.subr.mxu0 0.0
    %164 = vmatpush1.msra.mxu0 0.0
    %165 = vmatprep.subr.mxu0 0.0
    %166 = vmatpush1.msra.mxu0 0.0
    %167 = vmatprep.subr.mxu0 0.0
    %168 = vmatpush1.msra.mxu0 0.0
    %169 = vmatprep.subr.mxu0 0.0
    %170 = vmatpush1.msra.mxu0 0.0
    %171 = vmatprep.subr.mxu0 0.0
    %172 = vmatpush1.msra.mxu0 0.0
    %173 = vmatprep.subr.mxu0 0.0
    %174 = vmatpush1.msra.mxu0 0.0
    %175 = vmatprep.subr.mxu0 0.0
    %176 = vmatpush1.msra.mxu0 0.0
    %177 = vmatprep.subr.mxu0 0.0
    %178 = vmatpush1.msra.mxu0 0.0
    %179 = vmatprep.subr.mxu0 0.0
    %180 = vmatpush1.msra.mxu0 0.0
    %181 = vmatprep.mubr.f32.mxu0 0.0
    %182 = vmatmul.mubr.f32.gmra.mrb[0].mxu0 %v94
    %v183 = vpop.f32.mrb[0].mxu0
    %v184 = vadd.f32 %v90, %v183
    %v185 = vpop.f32.mrb[0].mxu0
    %186 = vmatprep.mubr.f32.mxu0 0.0
    %187 = vmatmul.mubr.f32.gmra.mrb[0].mxu0 %v97
    %v188 = vpop.f32.mrb[0].mxu0
    %v189 = vadd.f32 %v90, %v188
    %v190 = vpop.f32.mrb[0].mxu0
    %191 = vmatprep.mubr.f32.mxu0 0.0
    %192 = vmatmul.mubr.f32.gmra.mrb[0].mxu0 %v100
    %v193 = vpop.f32.mrb[0].mxu0
    %v194 = vadd.f32 %v90, %v193
    %v195 = vpop.f32.mrb[0].mxu0
    %196 = vmatprep.mubr.f32.mxu0 0.0
    %197 = vmatmul.mubr.f32.gmra.mrb[0].mxu0 %v103
    %v198 = vpop.f32.mrb[0].mxu0
    %v199 = vadd.f32 %v90, %v198
    %v200 = vpop.f32.mrb[0].mxu0
    %201 = vmatprep.mubr.f32.mxu0 0.0
    %202 = vmatmul.mubr.f32.gmra.mrb[0].mxu0 %v106
    %v203 = vpop.f32.mrb[0].mxu0
    %v204 = vadd.f32 %v90, %v203
    %v205 = vpop.f32.mrb[0].mxu0
    %206 = vmatprep.mubr.f32.mxu0 0.0
    %207 = vmatmul.mubr.f32.gmra.mrb[0].mxu0 %v109
    %v208 = vpop.f32.mrb[0].mxu0
    %v209 = vadd.f32 %v90, %v208
    %v210 = vpop.f32.mrb[0].mxu0
    %211 = vmatprep.mubr.f32.mxu0 0.0
    %212 = vmatmul.mubr.f32.gmra.mrb[0].mxu0 %v112
    %v213 = vpop.f32.mrb[0].mxu0
    %v214 = vadd.f32 %v90, %v213
    %v215 = vpop.f32.mrb[0].mxu0
    %216 = vmatprep.mubr.f32.mxu0 0.0
    %217 = vmatmul.mubr.f32.gmra.mrb[0].mxu0 %v115
    %v218 = vpop.f32.mrb[0].mxu0
    %v219 = vadd.f32 %v90, %v218
    %v220 = vpop.f32.mrb[0].mxu0
    %221 = vdwg.mxu0
    %222 = vst [vmem:[#allocation2] sm:$0xff] %v184
    %223 = vst [vmem:[#allocation2 + $0x8] sm:$0xff] %v189
    %224 = vst [vmem:[#allocation2 + $0x10] sm:$0xff] %v194
    %225 = vst [vmem:[#allocation2 + $0x18] sm:$0xff] %v199
    %226 = vst [vmem:[#allocation2 + $0x20] sm:$0xff] %v204
    %227 = vst [vmem:[#allocation2 + $0x28] sm:$0xff] %v209
    %228 = vst [vmem:[#allocation2 + $0x30] sm:$0xff] %v214
    %229 = vst [vmem:[#allocation2 + $0x38] sm:$0xff] %v219
    %v230 = vld [vmem:[%s2] sm:$0xff]
    %v231 = vld [vmem:[%s2 + $0x8] sm:$0xff]
    %v232 = vld [vmem:[%s2 + $0x10] sm:$0xff]
    %v233 = vld [vmem:[%s2 + $0x18] sm:$0xff]
    %v234 = vld [vmem:[#allocation2] sm:$0xff]
    %v235 = vld [vmem:[#allocation4] sm:$0xff]
    %vm236 = vcmask 261120
    %v238 = vsel %vm236, %v235, 0
    %240 = vmatprep.subr.mxu0 0.0
    %241 = vmatpush1.msra.mxu0 %v230
    %242 = vmatprep.subr.mxu0 0.0
    %243 = vmatpush1.msra.mxu0 %v231
    %244 = vmatprep.subr.mxu0 0.0
    %245 = vmatpush1.msra.mxu0 %v232
    %246 = vmatprep.subr.mxu0 0.0
    %247 = vmatpush1.msra.mxu0 %v233
    %248 = vmatprep.subr.mxu0 0.0
    %249 = vmatpush1.msra.mxu0 0.0
    %250 = vmatprep.subr.mxu0 0.0
    %251 = vmatpush1.msra.mxu0 0.0
    %252 = vmatprep.subr.mxu0 0.0
    %253 = vmatpush1.msra.mxu0 0.0
    %254 = vmatprep.subr.mxu0 0.0
    %255 = vmatpush1.msra.mxu0 0.0
    %256 = vmatprep.subr.mxu0 0.0
    %257 = vmatpush1.msra.mxu0 0.0
    %258 = vmatprep.subr.mxu0 0.0
    %259 = vmatpush1.msra.mxu0 0.0
    %260 = vmatprep.subr.mxu0 0.0
    %261 = vmatpush1.msra.mxu0 0.0
    %262 = vmatprep.subr.mxu0 0.0
    %263 = vmatpush1.msra.mxu0 0.0
    %264 = vmatprep.subr.mxu0 0.0
    %265 = vmatpush1.msra.mxu0 0.0
    %266 = vmatprep.subr.mxu0 0.0
    %267 = vmatpush1.msra.mxu0 0.0
    %268 = vmatprep.subr.mxu0 0.0
    %269 = vmatpush1.msra.mxu0 0.0
    %270 = vmatprep.subr.mxu0 0.0
    %271 = vmatpush1.msra.mxu0 0.0
    %272 = vmatprep.subr.mxu0 0.0
    %273 = vmatpush1.msra.mxu0 0.0
    %274 = vmatprep.subr.mxu0 0.0
    %275 = vmatpush1.msra.mxu0 0.0
    %276 = vmatprep.subr.mxu0 0.0
    %277 = vmatpush1.msra.mxu0 0.0
    %278 = vmatprep.subr.mxu0 0.0
    %279 = vmatpush1.msra.mxu0 0.0
    %280 = vmatprep.subr.mxu0 0.0
    %281 = vmatpush1.msra.mxu0 0.0
    %282 = vmatprep.subr.mxu0 0.0
    %283 = vmatpush1.msra.mxu0 0.0
    %284 = vmatprep.subr.mxu0 0.0
    %285 = vmatpush1.msra.mxu0 0.0
    %286 = vmatprep.subr.mxu0 0.0
    %287 = vmatpush1.msra.mxu0 0.0
    %288 = vmatprep.subr.mxu0 0.0
    %289 = vmatpush1.msra.mxu0 0.0
    %290 = vmatprep.subr.mxu0 0.0
    %291 = vmatpush1.msra.mxu0 0.0
    %292 = vmatprep.subr.mxu0 0.0
    %293 = vmatpush1.msra.mxu0 0.0
    %294 = vmatprep.subr.mxu0 0.0
    %295 = vmatpush1.msra.mxu0 0.0
    %296 = vmatprep.subr.mxu0 0.0
    %297 = vmatpush1.msra.mxu0 0.0
    %298 = vmatprep.subr.mxu0 0.0
    %299 = vmatpush1.msra.mxu0 0.0
    %300 = vmatprep.subr.mxu0 0.0
    %301 = vmatpush1.msra.mxu0 0.0
    %302 = vmatprep.subr.mxu0 0.0
    %303 = vmatpush1.msra.mxu0 0.0
    %304 = vmatprep.mubr.f32.mxu0 0.0
    %305 = vmatmul.mubr.f32.gmra.mrb[0].mxu0 %v238
    %v306 = vpop.f32.mrb[0].mxu0
    %v307 = vadd.f32 0.0, %v306
    %v308 = vpop.f32.mrb[0].mxu0
    %309 = vdwg.mxu0
    %v310 = vadd.f32 %v234, %v307
    %v311 = vxor.u32 %v310, 2147483648
    %v312 = vmul.f32 %v311, 1.442695
    %v313 = vpow.pop %v312
    %v314 = vadd.f32 %v313, 1.0
    %v315 = vrcp.pop %v314
    %v316 = vmul.f32 1.0, %v315
    %v317 = vtanh.pop %v310
    %v318 = vsel %vm74, %v317, %v316
    %v319 = vld [vmem:[#allocation5] sm:$0xff]
    %321 = vrot.lane.b32.xlu0 %v319, 32
    %v322 = vpop.permute.xlu0 %321
    %v324 = vmul.f32 %v318, %v322
    %326 = vrot.lane.b32.xlu0 %v318, 64
    %v327 = vpop.permute.xlu0 %326
    %v329 = vmul.f32 %v318, %v327
    %331 = vrot.lane.b32.xlu0 %v329, 32
    %v332 = vpop.permute.xlu0 %331
    %v334 = vadd.f32 %v324, %v332
    %v335 = vtanh.pop %v334
    %337 = vrot.lane.b32.xlu0 %v335, 64
    %v338 = vpop.permute.xlu0 %337
    %v340 = vmul.f32 %v318, %v338
    %342 = vrot.lane.b32.xlu0 %v334, 96
    %v343 = vpop.permute.xlu0 %342
    %345 = vst.msk [vmem:[#allocation5] sm:$0xff] %vm236, %v343
    %347 = vrot.lane.b32.xlu0 %v340, 32
    %v348 = vpop.permute.xlu0 %347
    %350 = vst.msk [vmem:[#allocation4] sm:$0xff] %vm236, %v348
    %351 = vst.msk [vmem:[#allocation3] sm:$0xff] %vm236, %v348
    %s352 = scalar_lea.vmem [#allocation2], 8
    %v353 = vld [vmem:[%s352] sm:$0xff]
    %v354 = vld [vmem:[#allocation4] sm:$0xff]
    %v356 = vsel %vm236, %v354, 0
    %358 = vmatprep.subr.mxu0 0.0
    %359 = vmatpush1.msra.mxu0 %v230
    %360 = vmatprep.subr.mxu0 0.0
    %361 = vmatpush1.msra.mxu0 %v231
    %362 = vmatprep.subr.mxu0 0.0
    %363 = vmatpush1.msra.mxu0 %v232
    %364 = vmatprep.subr.mxu0 0.0
    %365 = vmatpush1.msra.mxu0 %v233
    %366 = vmatprep.subr.mxu0 0.0
    %367 = vmatpush1.msra.mxu0 0.0
    %368 = vmatprep.subr.mxu0 0.0
    %369 = vmatpush1.msra.mxu0 0.0
    %370 = vmatprep.subr.mxu0 0.0
    %371 = vmatpush1.msra.mxu0 0.0
    %372 = vmatprep.subr.mxu0 0.0
    %373 = vmatpush1.msra.mxu0 0.0
    %374 = vmatprep.subr.mxu0 0.0
    %375 = vmatpush1.msra.mxu0 0.0
    %376 = vmatprep.subr.mxu0 0.0
    %377 = vmatpush1.msra.mxu0 0.0
    %378 = vmatprep.subr.mxu0 0.0
    %379 = vmatpush1.msra.mxu0 0.0
    %380 = vmatprep.subr.mxu0 0.0
    %381 = vmatpush1.msra.mxu0 0.0
    %382 = vmatprep.subr.mxu0 0.0
    %383 = vmatpush1.msra.mxu0 0.0
    %384 = vmatprep.subr.mxu0 0.0
    %385 = vmatpush1.msra.mxu0 0.0
    %386 = vmatprep.subr.mxu0 0.0
    %387 = vmatpush1.msra.mxu0 0.0
    %388 = vmatprep.subr.mxu0 0.0
    %389 = vmatpush1.msra.mxu0 0.0
    %390 = vmatprep.subr.mxu0 0.0
    %391 = vmatpush1.msra.mxu0 0.0
    %392 = vmatprep.subr.mxu0 0.0
    %393 = vmatpush1.msra.mxu0 0.0
    %394 = vmatprep.subr.mxu0 0.0
    %395 = vmatpush1.msra.mxu0 0.0
    %396 = vmatprep.subr.mxu0 0.0
    %397 = vmatpush1.msra.mxu0 0.0
    %398 = vmatprep.subr.mxu0 0.0
    %399 = vmatpush1.msra.mxu0 0.0
    %400 = vmatprep.subr.mxu0 0.0
    %401 = vmatpush1.msra.mxu0 0.0
    %402 = vmatprep.subr.mxu0 0.0
    %403 = vmatpush1.msra.mxu0 0.0
    %404 = vmatprep.subr.mxu0 0.0
    %405 = vmatpush1.msra.mxu0 0.0
    %406 = vmatprep.subr.mxu0 0.0
    %407 = vmatpush1.msra.mxu0 0.0
    %408 = vmatprep.subr.mxu0 0.0
    %409 = vmatpush1.msra.mxu0 0.0
    %410 = vmatprep.subr.mxu0 0.0
    %411 = vmatpush1.msra.mxu0 0.0
    %412 = vmatprep.subr.mxu0 0.0
    %413 = vmatpush1.msra.mxu0 0.0
    %414 = vmatprep.subr.mxu0 0.0
    %415 = vmatpush1.msra.mxu0 0.0
    %416 = vmatprep.subr.mxu0 0.0
    %417 = vmatpush1.msra.mxu0 0.0
    %418 = vmatprep.subr.mxu0 0.0
    %419 = vmatpush1.msra.mxu0 0.0
    %420 = vmatprep.subr.mxu0 0.0
    %421 = vmatpush1.msra.mxu0 0.0
    %422 = vmatprep.mubr.f32.mxu0 0.0
    %423 = vmatmul.mubr.f32.gmra.mrb[0].mxu0 %v356
    %v424 = vpop.f32.mrb[0].mxu0
    %v425 = vadd.f32 0.0, %v424
    %v426 = vpop.f32.mrb[0].mxu0
    %427 = vdwg.mxu0
    %v428 = vadd.f32 %v353, %v425
    %v429 = vxor.u32 %v428, 2147483648
    %v430 = vmul.f32 %v429, 1.442695
    %v431 = vpow.pop %v430
    %v432 = vadd.f32 %v431, 1.0
    %v433 = vrcp.pop %v432
    %v434 = vmul.f32 1.0, %v433
    %v435 = vtanh.pop %v428
    %v436 = vsel %vm74, %v435, %v434
    %v437 = vld [vmem:[#allocation5] sm:$0xff]
    %439 = vrot.lane.b32.xlu0 %v437, 32
    %v440 = vpop.permute.xlu0 %439
    %v442 = vmul.f32 %v436, %v440
    %444 = vrot.lane.b32.xlu0 %v436, 64
    %v445 = vpop.permute.xlu0 %444
    %v447 = vmul.f32 %v436, %v445
    %449 = vrot.lane.b32.xlu0 %v447, 32
    %v450 = vpop.permute.xlu0 %449
    %v452 = vadd.f32 %v442, %v450
    %v453 = vtanh.pop %v452
    %455 = vrot.lane.b32.xlu0 %v453, 64
    %v456 = vpop.permute.xlu0 %455
    %v458 = vmul.f32 %v436, %v456
    %460 = vrot.lane.b32.xlu0 %v452, 96
    %v461 = vpop.permute.xlu0 %460
    %463 = vst.msk [vmem:[#allocation5] sm:$0xff] %vm236, %v461
    %465 = vrot.lane.b32.xlu0 %v458, 32
    %v466 = vpop.permute.xlu0 %465
    %468 = vst.msk [vmem:[#allocation4] sm:$0xff] %vm236, %v466
    %s469 = scalar_lea.vmem [#allocation3], 8
    %470 = vst.msk [vmem:[%s469] sm:$0xff] %vm236, %v466
    %s471 = scalar_lea.vmem [#allocation2], 16
    %v472 = vld [vmem:[%s471] sm:$0xff]
    %v473 = vld [vmem:[#allocation4] sm:$0xff]
    %v475 = vsel %vm236, %v473, 0
    %477 = vmatprep.subr.mxu0 0.0
    %478 = vmatpush1.msra.mxu0 %v230
    %479 = vmatprep.subr.mxu0 0.0
    %480 = vmatpush1.msra.mxu0 %v231
    %481 = vmatprep.subr.mxu0 0.0
    %482 = vmatpush1.msra.mxu0 %v232
    %483 = vmatprep.subr.mxu0 0.0
    %484 = vmatpush1.msra.mxu0 %v233
    %485 = vmatprep.subr.mxu0 0.0
    %486 = vmatpush1.msra.mxu0 0.0
    %487 = vmatprep.subr.mxu0 0.0
    %488 = vmatpush1.msra.mxu0 0.0
    %489 = vmatprep.subr.mxu0 0.0
    %490 = vmatpush1.msra.mxu0 0.0
    %491 = vmatprep.subr.mxu0 0.0
    %492 = vmatpush1.msra.mxu0 0.0
    %493 = vmatprep.subr.mxu0 0.0
    %494 = vmatpush1.msra.mxu0 0.0
    %495 = vmatprep.subr.mxu0 0.0
    %496 = vmatpush1.msra.mxu0 0.0
    %497 = vmatprep.subr.mxu0 0.0
    %498 = vmatpush1.msra.mxu0 0.0
    %499 = vmatprep.subr.mxu0 0.0
    %500 = vmatpush1.msra.mxu0 0.0
    %501 = vmatprep.subr.mxu0 0.0
    %502 = vmatpush1.msra.mxu0 0.0
    %503 = vmatprep.subr.mxu0 0.0
    %504 = vmatpush1.msra.mxu0 0.0
    %505 = vmatprep.subr.mxu0 0.0
    %506 = vmatpush1.msra.mxu0 0.0
    %507 = vmatprep.subr.mxu0 0.0
    %508 = vmatpush1.msra.mxu0 0.0
    %509 = vmatprep.subr.mxu0 0.0
    %510 = vmatpush1.msra.mxu0 0.0
    %511 = vmatprep.subr.mxu0 0.0
    %512 = vmatpush1.msra.mxu0 0.0
    %513 = vmatprep.subr.mxu0 0.0
    %514 = vmatpush1.msra.mxu0 0.0
    %515 = vmatprep.subr.mxu0 0.0
    %516 = vmatpush1.msra.mxu0 0.0
    %517 = vmatprep.subr.mxu0 0.0
    %518 = vmatpush1.msra.mxu0 0.0
    %519 = vmatprep.subr.mxu0 0.0
    %520 = vmatpush1.msra.mxu0 0.0
    %521 = vmatprep.subr.mxu0 0.0
    %522 = vmatpush1.msra.mxu0 0.0
    %523 = vmatprep.subr.mxu0 0.0
    %524 = vmatpush1.msra.mxu0 0.0
    %525 = vmatprep.subr.mxu0 0.0
    %526 = vmatpush1.msra.mxu0 0.0
    %527 = vmatprep.subr.mxu0 0.0
    %528 = vmatpush1.msra.mxu0 0.0
    %529 = vmatprep.subr.mxu0 0.0
    %530 = vmatpush1.msra.mxu0 0.0
    %531 = vmatprep.subr.mxu0 0.0
    %532 = vmatpush1.msra.mxu0 0.0
    %533 = vmatprep.subr.mxu0 0.0
    %534 = vmatpush1.msra.mxu0 0.0
    %535 = vmatprep.subr.mxu0 0.0
    %536 = vmatpush1.msra.mxu0 0.0
    %537 = vmatprep.subr.mxu0 0.0
    %538 = vmatpush1.msra.mxu0 0.0
    %539 = vmatprep.subr.mxu0 0.0
    %540 = vmatpush1.msra.mxu0 0.0
    %541 = vmatprep.mubr.f32.mxu0 0.0
    %542 = vmatmul.mubr.f32.gmra.mrb[0].mxu0 %v475
    %v543 = vpop.f32.mrb[0].mxu0
    %v544 = vadd.f32 0.0, %v543
    %v545 = vpop.f32.mrb[0].mxu0
    %546 = vdwg.mxu0
    %v547 = vadd.f32 %v472, %v544
    %v548 = vxor.u32 %v547, 2147483648
    %v549 = vmul.f32 %v548, 1.442695
    %v550 = vpow.pop %v549
    %v551 = vadd.f32 %v550, 1.0
    %v552 = vrcp.pop %v551
    %v553 = vmul.f32 1.0, %v552
    %v554 = vtanh.pop %v547
    %v555 = vsel %vm74, %v554, %v553
    %v556 = vld [vmem:[#allocation5] sm:$0xff]
    %558 = vrot.lane.b32.xlu0 %v556, 32
    %v559 = vpop.permute.xlu0 %558
    %v561 = vmul.f32 %v555, %v559
    %563 = vrot.lane.b32.xlu0 %v555, 64
    %v564 = vpop.permute.xlu0 %563
    %v566 = vmul.f32 %v555, %v564
    %568 = vrot.lane.b32.xlu0 %v566, 32
    %v569 = vpop.permute.xlu0 %568
    %v571 = vadd.f32 %v561, %v569
    %v572 = vtanh.pop %v571
    %574 = vrot.lane.b32.xlu0 %v572, 64
    %v575 = vpop.permute.xlu0 %574
    %v577 = vmul.f32 %v555, %v575
    %579 = vrot.lane.b32.xlu0 %v571, 96
    %v580 = vpop.permute.xlu0 %579
    %582 = vst.msk [vmem:[#allocation5] sm:$0xff] %vm236, %v580
    %584 = vrot.lane.b32.xlu0 %v577, 32
    %v585 = vpop.permute.xlu0 %584
    %587 = vst.msk [vmem:[#allocation4] sm:$0xff] %vm236, %v585
    %s588 = scalar_lea.vmem [#allocation3], 16
    %589 = vst.msk [vmem:[%s588] sm:$0xff] %vm236, %v585
    %s590 = scalar_lea.vmem [#allocation2], 24
    %v591 = vld [vmem:[%s590] sm:$0xff]
    %v592 = vld [vmem:[#allocation4] sm:$0xff]
    %v594 = vsel %vm236, %v592, 0
    %596 = vmatprep.subr.mxu0 0.0
    %597 = vmatpush1.msra.mxu0 %v230
    %598 = vmatprep.subr.mxu0 0.0
    %599 = vmatpush1.msra.mxu0 %v231
    %600 = vmatprep.subr.mxu0 0.0
    %601 = vmatpush1.msra.mxu0 %v232
    %602 = vmatprep.subr.mxu0 0.0
    %603 = vmatpush1.msra.mxu0 %v233
    %604 = vmatprep.subr.mxu0 0.0
    %605 = vmatpush1.msra.mxu0 0.0
    %606 = vmatprep.subr.mxu0 0.0
    %607 = vmatpush1.msra.mxu0 0.0
    %608 = vmatprep.subr.mxu0 0.0
    %609 = vmatpush1.msra.mxu0 0.0
    %610 = vmatprep.subr.mxu0 0.0
    %611 = vmatpush1.msra.mxu0 0.0
    %612 = vmatprep.subr.mxu0 0.0
    %613 = vmatpush1.msra.mxu0 0.0
    %614 = vmatprep.subr.mxu0 0.0
    %615 = vmatpush1.msra.mxu0 0.0
    %616 = vmatprep.subr.mxu0 0.0
    %617 = vmatpush1.msra.mxu0 0.0
    %618 = vmatprep.subr.mxu0 0.0
    %619 = vmatpush1.msra.mxu0 0.0
    %620 = vmatprep.subr.mxu0 0.0
    %621 = vmatpush1.msra.mxu0 0.0
    %622 = vmatprep.subr.mxu0 0.0
    %623 = vmatpush1.msra.mxu0 0.0
    %624 = vmatprep.subr.mxu0 0.0
    %625 = vmatpush1.msra.mxu0 0.0
    %626 = vmatprep.subr.mxu0 0.0
    %627 = vmatpush1.msra.mxu0 0.0
    %628 = vmatprep.subr.mxu0 0.0
    %629 = vmatpush1.msra.mxu0 0.0
    %630 = vmatprep.subr.mxu0 0.0
    %631 = vmatpush1.msra.mxu0 0.0
    %632 = vmatprep.subr.mxu0 0.0
    %633 = vmatpush1.msra.mxu0 0.0
    %634 = vmatprep.subr.mxu0 0.0
    %635 = vmatpush1.msra.mxu0 0.0
    %636 = vmatprep.subr.mxu0 0.0
    %637 = vmatpush1.msra.mxu0 0.0
    %638 = vmatprep.subr.mxu0 0.0
    %639 = vmatpush1.msra.mxu0 0.0
    %640 = vmatprep.subr.mxu0 0.0
    %641 = vmatpush1.msra.mxu0 0.0
    %642 = vmatprep.subr.mxu0 0.0
    %643 = vmatpush1.msra.mxu0 0.0
    %644 = vmatprep.subr.mxu0 0.0
    %645 = vmatpush1.msra.mxu0 0.0
    %646 = vmatprep.subr.mxu0 0.0
    %647 = vmatpush1.msra.mxu0 0.0
    %648 = vmatprep.subr.mxu0 0.0
    %649 = vmatpush1.msra.mxu0 0.0
    %650 = vmatprep.subr.mxu0 0.0
    %651 = vmatpush1.msra.mxu0 0.0
    %652 = vmatprep.subr.mxu0 0.0
    %653 = vmatpush1.msra.mxu0 0.0
    %654 = vmatprep.subr.mxu0 0.0
    %655 = vmatpush1.msra.mxu0 0.0
    %656 = vmatprep.subr.mxu0 0.0
    %657 = vmatpush1.msra.mxu0 0.0
    %658 = vmatprep.subr.mxu0 0.0
    %659 = vmatpush1.msra.mxu0 0.0
    %660 = vmatprep.mubr.f32.mxu0 0.0
    %661 = vmatmul.mubr.f32.gmra.mrb[0].mxu0 %v594
    %v662 = vpop.f32.mrb[0].mxu0
    %v663 = vadd.f32 0.0, %v662
    %v664 = vpop.f32.mrb[0].mxu0
    %665 = vdwg.mxu0
    %v666 = vadd.f32 %v591, %v663
    %v667 = vxor.u32 %v666, 2147483648
    %v668 = vmul.f32 %v667, 1.442695
    %v669 = vpow.pop %v668
    %v670 = vadd.f32 %v669, 1.0
    %v671 = vrcp.pop %v670
    %v672 = vmul.f32 1.0, %v671
    %v673 = vtanh.pop %v666
    %v674 = vsel %vm74, %v673, %v672
    %v675 = vld [vmem:[#allocation5] sm:$0xff]
    %677 = vrot.lane.b32.xlu0 %v675, 32
    %v678 = vpop.permute.xlu0 %677
    %v680 = vmul.f32 %v674, %v678
    %682 = vrot.lane.b32.xlu0 %v674, 64
    %v683 = vpop.permute.xlu0 %682
    %v685 = vmul.f32 %v674, %v683
    %687 = vrot.lane.b32.xlu0 %v685, 32
    %v688 = vpop.permute.xlu0 %687
    %v690 = vadd.f32 %v680, %v688
    %v691 = vtanh.pop %v690
    %693 = vrot.lane.b32.xlu0 %v691, 64
    %v694 = vpop.permute.xlu0 %693
    %v696 = vmul.f32 %v674, %v694
    %698 = vrot.lane.b32.xlu0 %v690, 96
    %v699 = vpop.permute.xlu0 %698
    %701 = vst.msk [vmem:[#allocation5] sm:$0xff] %vm236, %v699
    %703 = vrot.lane.b32.xlu0 %v696, 32
    %v704 = vpop.permute.xlu0 %703
    %706 = vst.msk [vmem:[#allocation4] sm:$0xff] %vm236, %v704
    %s707 = scalar_lea.vmem [#allocation3], 24
    %708 = vst.msk [vmem:[%s707] sm:$0xff] %vm236, %v704
    %s709 = scalar_lea.vmem [#allocation2], 32
    %v710 = vld [vmem:[%s709] sm:$0xff]
    %v711 = vld [vmem:[#allocation4] sm:$0xff]
    %v713 = vsel %vm236, %v711, 0
    %715 = vmatprep.subr.mxu0 0.0
    %716 = vmatpush1.msra.mxu0 %v230
    %717 = vmatprep.subr.mxu0 0.0
    %718 = vmatpush1.msra.mxu0 %v231
    %719 = vmatprep.subr.mxu0 0.0
    %720 = vmatpush1.msra.mxu0 %v232
    %721 = vmatprep.subr.mxu0 0.0
    %722 = vmatpush1.msra.mxu0 %v233
    %723 = vmatprep.subr.mxu0 0.0
    %724 = vmatpush1.msra.mxu0 0.0
    %725 = vmatprep.subr.mxu0 0.0
    %726 = vmatpush1.msra.mxu0 0.0
    %727 = vmatprep.subr.mxu0 0.0
    %728 = vmatpush1.msra.mxu0 0.0
    %729 = vmatprep.subr.mxu0 0.0
    %730 = vmatpush1.msra.mxu0 0.0
    %731 = vmatprep.subr.mxu0 0.0
    %732 = vmatpush1.msra.mxu0 0.0
    %733 = vmatprep.subr.mxu0 0.0
    %734 = vmatpush1.msra.mxu0 0.0
    %735 = vmatprep.subr.mxu0 0.0
    %736 = vmatpush1.msra.mxu0 0.0
    %737 = vmatprep.subr.mxu0 0.0
    %738 = vmatpush1.msra.mxu0 0.0
    %739 = vmatprep.subr.mxu0 0.0
    %740 = vmatpush1.msra.mxu0 0.0
    %741 = vmatprep.subr.mxu0 0.0
    %742 = vmatpush1.msra.mxu0 0.0
    %743 = vmatprep.subr.mxu0 0.0
    %744 = vmatpush1.msra.mxu0 0.0
    %745 = vmatprep.subr.mxu0 0.0
    %746 = vmatpush1.msra.mxu0 0.0
    %747 = vmatprep.subr.mxu0 0.0
    %748 = vmatpush1.msra.mxu0 0.0
    %749 = vmatprep.subr.mxu0 0.0
    %750 = vmatpush1.msra.mxu0 0.0
    %751 = vmatprep.subr.mxu0 0.0
    %752 = vmatpush1.msra.mxu0 0.0
    %753 = vmatprep.subr.mxu0 0.0
    %754 = vmatpush1.msra.mxu0 0.0
    %755 = vmatprep.subr.mxu0 0.0
    %756 = vmatpush1.msra.mxu0 0.0
    %757 = vmatprep.subr.mxu0 0.0
    %758 = vmatpush1.msra.mxu0 0.0
    %759 = vmatprep.subr.mxu0 0.0
    %760 = vmatpush1.msra.mxu0 0.0
    %761 = vmatprep.subr.mxu0 0.0
    %762 = vmatpush1.msra.mxu0 0.0
    %763 = vmatprep.subr.mxu0 0.0
    %764 = vmatpush1.msra.mxu0 0.0
    %765 = vmatprep.subr.mxu0 0.0
    %766 = vmatpush1.msra.mxu0 0.0
    %767 = vmatprep.subr.mxu0 0.0
    %768 = vmatpush1.msra.mxu0 0.0
    %769 = vmatprep.subr.mxu0 0.0
    %770 = vmatpush1.msra.mxu0 0.0
    %771 = vmatprep.subr.mxu0 0.0
    %772 = vmatpush1.msra.mxu0 0.0
    %773 = vmatprep.subr.mxu0 0.0
    %774 = vmatpush1.msra.mxu0 0.0
    %775 = vmatprep.subr.mxu0 0.0
    %776 = vmatpush1.msra.mxu0 0.0
    %777 = vmatprep.subr.mxu0 0.0
    %778 = vmatpush1.msra.mxu0 0.0
    %779 = vmatprep.mubr.f32.mxu0 0.0
    %780 = vmatmul.mubr.f32.gmra.mrb[0].mxu0 %v713
    %v781 = vpop.f32.mrb[0].mxu0
    %v782 = vadd.f32 0.0, %v781
    %v783 = vpop.f32.mrb[0].mxu0
    %784 = vdwg.mxu0
    %v785 = vadd.f32 %v710, %v782
    %v786 = vxor.u32 %v785, 2147483648
    %v787 = vmul.f32 %v786, 1.442695
    %v788 = vpow.pop %v787
    %v789 = vadd.f32 %v788, 1.0
    %v790 = vrcp.pop %v789
    %v791 = vmul.f32 1.0, %v790
    %v792 = vtanh.pop %v785
    %v793 = vsel %vm74, %v792, %v791
    %v794 = vld [vmem:[#allocation5] sm:$0xff]
    %796 = vrot.lane.b32.xlu0 %v794, 32
    %v797 = vpop.permute.xlu0 %796
    %v799 = vmul.f32 %v793, %v797
    %801 = vrot.lane.b32.xlu0 %v793, 64
    %v802 = vpop.permute.xlu0 %801
    %v804 = vmul.f32 %v793, %v802
    %806 = vrot.lane.b32.xlu0 %v804, 32
    %v807 = vpop.permute.xlu0 %806
    %v809 = vadd.f32 %v799, %v807
    %v810 = vtanh.pop %v809
    %812 = vrot.lane.b32.xlu0 %v810, 64
    %v813 = vpop.permute.xlu0 %812
    %v815 = vmul.f32 %v793, %v813
    %817 = vrot.lane.b32.xlu0 %v809, 96
    %v818 = vpop.permute.xlu0 %817
    %820 = vst.msk [vmem:[#allocation5] sm:$0xff] %vm236, %v818
    %822 = vrot.lane.b32.xlu0 %v815, 32
    %v823 = vpop.permute.xlu0 %822
    %825 = vst.msk [vmem:[#allocation4] sm:$0xff] %vm236, %v823
    %s826 = scalar_lea.vmem [#allocation3], 32
    %827 = vst.msk [vmem:[%s826] sm:$0xff] %vm236, %v823
    %s828 = scalar_lea.vmem [#allocation2], 40
    %v829 = vld [vmem:[%s828] sm:$0xff]
    %v830 = vld [vmem:[#allocation4] sm:$0xff]
    %v832 = vsel %vm236, %v830, 0
    %834 = vmatprep.subr.mxu0 0.0
    %835 = vmatpush1.msra.mxu0 %v230
    %836 = vmatprep.subr.mxu0 0.0
    %837 = vmatpush1.msra.mxu0 %v231
    %838 = vmatprep.subr.mxu0 0.0
    %839 = vmatpush1.msra.mxu0 %v232
    %840 = vmatprep.subr.mxu0 0.0
    %841 = vmatpush1.msra.mxu0 %v233
    %842 = vmatprep.subr.mxu0 0.0
    %843 = vmatpush1.msra.mxu0 0.0
    %844 = vmatprep.subr.mxu0 0.0
    %845 = vmatpush1.msra.mxu0 0.0
    %846 = vmatprep.subr.mxu0 0.0
    %847 = vmatpush1.msra.mxu0 0.0
    %848 = vmatprep.subr.mxu0 0.0
    %849 = vmatpush1.msra.mxu0 0.0
    %850 = vmatprep.subr.mxu0 0.0
    %851 = vmatpush1.msra.mxu0 0.0
    %852 = vmatprep.subr.mxu0 0.0
    %853 = vmatpush1.msra.mxu0 0.0
    %854 = vmatprep.subr.mxu0 0.0
    %855 = vmatpush1.msra.mxu0 0.0
    %856 = vmatprep.subr.mxu0 0.0
    %857 = vmatpush1.msra.mxu0 0.0
    %858 = vmatprep.subr.mxu0 0.0
    %859 = vmatpush1.msra.mxu0 0.0
    %860 = vmatprep.subr.mxu0 0.0
    %861 = vmatpush1.msra.mxu0 0.0
    %862 = vmatprep.subr.mxu0 0.0
    %863 = vmatpush1.msra.mxu0 0.0
    %864 = vmatprep.subr.mxu0 0.0
    %865 = vmatpush1.msra.mxu0 0.0
    %866 = vmatprep.subr.mxu0 0.0
    %867 = vmatpush1.msra.mxu0 0.0
    %868 = vmatprep.subr.mxu0 0.0
    %869 = vmatpush1.msra.mxu0 0.0
    %870 = vmatprep.subr.mxu0 0.0
    %871 = vmatpush1.msra.mxu0 0.0
    %872 = vmatprep.subr.mxu0 0.0
    %873 = vmatpush1.msra.mxu0 0.0
    %874 = vmatprep.subr.mxu0 0.0
    %875 = vmatpush1.msra.mxu0 0.0
    %876 = vmatprep.subr.mxu0 0.0
    %877 = vmatpush1.msra.mxu0 0.0
    %878 = vmatprep.subr.mxu0 0.0
    %879 = vmatpush1.msra.mxu0 0.0
    %880 = vmatprep.subr.mxu0 0.0
    %881 = vmatpush1.msra.mxu0 0.0
    %882 = vmatprep.subr.mxu0 0.0
    %883 = vmatpush1.msra.mxu0 0.0
    %884 = vmatprep.subr.mxu0 0.0
    %885 = vmatpush1.msra.mxu0 0.0
    %886 = vmatprep.subr.mxu0 0.0
    %887 = vmatpush1.msra.mxu0 0.0
    %888 = vmatprep.subr.mxu0 0.0
    %889 = vmatpush1.msra.mxu0 0.0
    %890 = vmatprep.subr.mxu0 0.0
    %891 = vmatpush1.msra.mxu0 0.0
    %892 = vmatprep.subr.mxu0 0.0
    %893 = vmatpush1.msra.mxu0 0.0
    %894 = vmatprep.subr.mxu0 0.0
    %895 = vmatpush1.msra.mxu0 0.0
    %896 = vmatprep.subr.mxu0 0.0
    %897 = vmatpush1.msra.mxu0 0.0
    %898 = vmatprep.mubr.f32.mxu0 0.0
    %899 = vmatmul.mubr.f32.gmra.mrb[0].mxu0 %v832
    %v900 = vpop.f32.mrb[0].mxu0
    %v901 = vadd.f32 0.0, %v900
    %v902 = vpop.f32.mrb[0].mxu0
    %903 = vdwg.mxu0
    %v904 = vadd.f32 %v829, %v901
    %v905 = vxor.u32 %v904, 2147483648
    %v906 = vmul.f32 %v905, 1.442695
    %v907 = vpow.pop %v906
    %v908 = vadd.f32 %v907, 1.0
    %v909 = vrcp.pop %v908
    %v910 = vmul.f32 1.0, %v909
    %v911 = vtanh.pop %v904
    %v912 = vsel %vm74, %v911, %v910
    %v913 = vld [vmem:[#allocation5] sm:$0xff]
    %915 = vrot.lane.b32.xlu0 %v913, 32
    %v916 = vpop.permute.xlu0 %915
    %v918 = vmul.f32 %v912, %v916
    %920 = vrot.lane.b32.xlu0 %v912, 64
    %v921 = vpop.permute.xlu0 %920
    %v923 = vmul.f32 %v912, %v921
    %925 = vrot.lane.b32.xlu0 %v923, 32
    %v926 = vpop.permute.xlu0 %925
    %v928 = vadd.f32 %v918, %v926
    %v929 = vtanh.pop %v928
    %931 = vrot.lane.b32.xlu0 %v929, 64
    %v932 = vpop.permute.xlu0 %931
    %v934 = vmul.f32 %v912, %v932
    %936 = vrot.lane.b32.xlu0 %v928, 96
    %v937 = vpop.permute.xlu0 %936
    %939 = vst.msk [vmem:[#allocation5] sm:$0xff] %vm236, %v937
    %941 = vrot.lane.b32.xlu0 %v934, 32
    %v942 = vpop.permute.xlu0 %941
    %944 = vst.msk [vmem:[#allocation4] sm:$0xff] %vm236, %v942
    %s945 = scalar_lea.vmem [#allocation3], 40
    %946 = vst.msk [vmem:[%s945] sm:$0xff] %vm236, %v942
    %s947 = scalar_lea.vmem [#allocation2], 48
    %v948 = vld [vmem:[%s947] sm:$0xff]
    %v949 = vld [vmem:[#allocation4] sm:$0xff]
    %v951 = vsel %vm236, %v949, 0
    %953 = vmatprep.subr.mxu0 0.0
    %954 = vmatpush1.msra.mxu0 %v230
    %955 = vmatprep.subr.mxu0 0.0
    %956 = vmatpush1.msra.mxu0 %v231
    %957 = vmatprep.subr.mxu0 0.0
    %958 = vmatpush1.msra.mxu0 %v232
    %959 = vmatprep.subr.mxu0 0.0
    %960 = vmatpush1.msra.mxu0 %v233
    %961 = vmatprep.subr.mxu0 0.0
    %962 = vmatpush1.msra.mxu0 0.0
    %963 = vmatprep.subr.mxu0 0.0
    %964 = vmatpush1.msra.mxu0 0.0
    %965 = vmatprep.subr.mxu0 0.0
    %966 = vmatpush1.msra.mxu0 0.0
    %967 = vmatprep.subr.mxu0 0.0
    %968 = vmatpush1.msra.mxu0 0.0
    %969 = vmatprep.subr.mxu0 0.0
    %970 = vmatpush1.msra.mxu0 0.0
    %971 = vmatprep.subr.mxu0 0.0
    %972 = vmatpush1.msra.mxu0 0.0
    %973 = vmatprep.subr.mxu0 0.0
    %974 = vmatpush1.msra.mxu0 0.0
    %975 = vmatprep.subr.mxu0 0.0
    %976 = vmatpush1.msra.mxu0 0.0
    %977 = vmatprep.subr.mxu0 0.0
    %978 = vmatpush1.msra.mxu0 0.0
    %979 = vmatprep.subr.mxu0 0.0
    %980 = vmatpush1.msra.mxu0 0.0
    %981 = vmatprep.subr.mxu0 0.0
    %982 = vmatpush1.msra.mxu0 0.0
    %983 = vmatprep.subr.mxu0 0.0
    %984 = vmatpush1.msra.mxu0 0.0
    %985 = vmatprep.subr.mxu0 0.0
    %986 = vmatpush1.msra.mxu0 0.0
    %987 = vmatprep.subr.mxu0 0.0
    %988 = vmatpush1.msra.mxu0 0.0
    %989 = vmatprep.subr.mxu0 0.0
    %990 = vmatpush1.msra.mxu0 0.0
    %991 = vmatprep.subr.mxu0 0.0
    %992 = vmatpush1.msra.mxu0 0.0
    %993 = vmatprep.subr.mxu0 0.0
    %994 = vmatpush1.msra.mxu0 0.0
    %995 = vmatprep.subr.mxu0 0.0
    %996 = vmatpush1.msra.mxu0 0.0
    %997 = vmatprep.subr.mxu0 0.0
    %998 = vmatpush1.msra.mxu0 0.0
    %999 = vmatprep.subr.mxu0 0.0
    %1000 = vmatpush1.msra.mxu0 0.0
    %1001 = vmatprep.subr.mxu0 0.0
    %1002 = vmatpush1.msra.mxu0 0.0
    %1003 = vmatprep.subr.mxu0 0.0
    %1004 = vmatpush1.msra.mxu0 0.0
    %1005 = vmatprep.subr.mxu0 0.0
    %1006 = vmatpush1.msra.mxu0 0.0
    %1007 = vmatprep.subr.mxu0 0.0
    %1008 = vmatpush1.msra.mxu0 0.0
    %1009 = vmatprep.subr.mxu0 0.0
    %1010 = vmatpush1.msra.mxu0 0.0
    %1011 = vmatprep.subr.mxu0 0.0
    %1012 = vmatpush1.msra.mxu0 0.0
    %1013 = vmatprep.subr.mxu0 0.0
    %1014 = vmatpush1.msra.mxu0 0.0
    %1015 = vmatprep.subr.mxu0 0.0
    %1016 = vmatpush1.msra.mxu0 0.0
    %1017 = vmatprep.mubr.f32.mxu0 0.0
    %1018 = vmatmul.mubr.f32.gmra.mrb[0].mxu0 %v951
    %v1019 = vpop.f32.mrb[0].mxu0
    %v1020 = vadd.f32 0.0, %v1019
    %v1021 = vpop.f32.mrb[0].mxu0
    %1022 = vdwg.mxu0
    %v1023 = vadd.f32 %v948, %v1020
    %v1024 = vxor.u32 %v1023, 2147483648
    %v1025 = vmul.f32 %v1024, 1.442695
    %v1026 = vpow.pop %v1025
    %v1027 = vadd.f32 %v1026, 1.0
    %v1028 = vrcp.pop %v1027
    %v1029 = vmul.f32 1.0, %v1028
    %v1030 = vtanh.pop %v1023
    %v1031 = vsel %vm74, %v1030, %v1029
    %v1032 = vld [vmem:[#allocation5] sm:$0xff]
    %1034 = vrot.lane.b32.xlu0 %v1032, 32
    %v1035 = vpop.permute.xlu0 %1034
    %v1037 = vmul.f32 %v1031, %v1035
    %1039 = vrot.lane.b32.xlu0 %v1031, 64
    %v1040 = vpop.permute.xlu0 %1039
    %v1042 = vmul.f32 %v1031, %v1040
    %1044 = vrot.lane.b32.xlu0 %v1042, 32
    %v1045 = vpop.permute.xlu0 %1044
    %v1047 = vadd.f32 %v1037, %v1045
    %v1048 = vtanh.pop %v1047
    %1050 = vrot.lane.b32.xlu0 %v1048, 64
    %v1051 = vpop.permute.xlu0 %1050
    %v1053 = vmul.f32 %v1031, %v1051
    %1055 = vrot.lane.b32.xlu0 %v1047, 96
    %v1056 = vpop.permute.xlu0 %1055
    %1058 = vst.msk [vmem:[#allocation5] sm:$0xff] %vm236, %v1056
    %1060 = vrot.lane.b32.xlu0 %v1053, 32
    %v1061 = vpop.permute.xlu0 %1060
    %1063 = vst.msk [vmem:[#allocation4] sm:$0xff] %vm236, %v1061
    %s1064 = scalar_lea.vmem [#allocation3], 48
    %1065 = vst.msk [vmem:[%s1064] sm:$0xff] %vm236, %v1061
    %s1066 = scalar_lea.vmem [#allocation2], 56
    %v1067 = vld [vmem:[%s1066] sm:$0xff]
    %v1068 = vld [vmem:[#allocation4] sm:$0xff]
    %v1070 = vsel %vm236, %v1068, 0
    %1072 = vmatprep.subr.mxu0 0.0
    %1073 = vmatpush1.msra.mxu0 %v230
    %1074 = vmatprep.subr.mxu0 0.0
    %1075 = vmatpush1.msra.mxu0 %v231
    %1076 = vmatprep.subr.mxu0 0.0
    %1077 = vmatpush1.msra.mxu0 %v232
    %1078 = vmatprep.subr.mxu0 0.0
    %1079 = vmatpush1.msra.mxu0 %v233
    %1080 = vmatprep.subr.mxu0 0.0
    %1081 = vmatpush1.msra.mxu0 0.0
    %1082 = vmatprep.subr.mxu0 0.0
    %1083 = vmatpush1.msra.mxu0 0.0
    %1084 = vmatprep.subr.mxu0 0.0
    %1085 = vmatpush1.msra.mxu0 0.0
    %1086 = vmatprep.subr.mxu0 0.0
    %1087 = vmatpush1.msra.mxu0 0.0
    %1088 = vmatprep.subr.mxu0 0.0
    %1089 = vmatpush1.msra.mxu0 0.0
    %1090 = vmatprep.subr.mxu0 0.0
    %1091 = vmatpush1.msra.mxu0 0.0
    %1092 = vmatprep.subr.mxu0 0.0
    %1093 = vmatpush1.msra.mxu0 0.0
    %1094 = vmatprep.subr.mxu0 0.0
    %1095 = vmatpush1.msra.mxu0 0.0
    %1096 = vmatprep.subr.mxu0 0.0
    %1097 = vmatpush1.msra.mxu0 0.0
    %1098 = vmatprep.subr.mxu0 0.0
    %1099 = vmatpush1.msra.mxu0 0.0
    %1100 = vmatprep.subr.mxu0 0.0
    %1101 = vmatpush1.msra.mxu0 0.0
    %1102 = vmatprep.subr.mxu0 0.0
    %1103 = vmatpush1.msra.mxu0 0.0
    %1104 = vmatprep.subr.mxu0 0.0
    %1105 = vmatpush1.msra.mxu0 0.0
    %1106 = vmatprep.subr.mxu0 0.0
    %1107 = vmatpush1.msra.mxu0 0.0
    %1108 = vmatprep.subr.mxu0 0.0
    %1109 = vmatpush1.msra.mxu0 0.0
    %1110 = vmatprep.subr.mxu0 0.0
    %1111 = vmatpush1.msra.mxu0 0.0
    %1112 = vmatprep.subr.mxu0 0.0
    %1113 = vmatpush1.msra.mxu0 0.0
    %1114 = vmatprep.subr.mxu0 0.0
    %1115 = vmatpush1.msra.mxu0 0.0
    %1116 = vmatprep.subr.mxu0 0.0
    %1117 = vmatpush1.msra.mxu0 0.0
    %1118 = vmatprep.subr.mxu0 0.0
    %1119 = vmatpush1.msra.mxu0 0.0
    %1120 = vmatprep.subr.mxu0 0.0
    %1121 = vmatpush1.msra.mxu0 0.0
    %1122 = vmatprep.subr.mxu0 0.0
    %1123 = vmatpush1.msra.mxu0 0.0
    %1124 = vmatprep.subr.mxu0 0.0
    %1125 = vmatpush1.msra.mxu0 0.0
    %1126 = vmatprep.subr.mxu0 0.0
    %1127 = vmatpush1.msra.mxu0 0.0
    %1128 = vmatprep.subr.mxu0 0.0
    %1129 = vmatpush1.msra.mxu0 0.0
    %1130 = vmatprep.subr.mxu0 0.0
    %1131 = vmatpush1.msra.mxu0 0.0
    %1132 = vmatprep.subr.mxu0 0.0
    %1133 = vmatpush1.msra.mxu0 0.0
    %1134 = vmatprep.subr.mxu0 0.0
    %1135 = vmatpush1.msra.mxu0 0.0
    %1136 = vmatprep.mubr.f32.mxu0 0.0
    %1137 = vmatmul.mubr.f32.gmra.mrb[0].mxu0 %v1070
    %v1138 = vpop.f32.mrb[0].mxu0
    %v1139 = vadd.f32 0.0, %v1138
    %v1140 = vpop.f32.mrb[0].mxu0
    %1141 = vdwg.mxu0
    %v1142 = vadd.f32 %v1067, %v1139
    %v1143 = vxor.u32 %v1142, 2147483648
    %v1144 = vmul.f32 %v1143, 1.442695
    %v1145 = vpow.pop %v1144
    %v1146 = vadd.f32 %v1145, 1.0
    %v1147 = vrcp.pop %v1146
    %v1148 = vmul.f32 1.0, %v1147
    %v1149 = vtanh.pop %v1142
    %v1150 = vsel %vm74, %v1149, %v1148
    %v1151 = vld [vmem:[#allocation5] sm:$0xff]
    %1153 = vrot.lane.b32.xlu0 %v1151, 32
    %v1154 = vpop.permute.xlu0 %1153
    %v1156 = vmul.f32 %v1150, %v1154
    %1158 = vrot.lane.b32.xlu0 %v1150, 64
    %v1159 = vpop.permute.xlu0 %1158
    %v1161 = vmul.f32 %v1150, %v1159
    %1163 = vrot.lane.b32.xlu0 %v1161, 32
    %v1164 = vpop.permute.xlu0 %1163
    %v1166 = vadd.f32 %v1156, %v1164
    %v1167 = vtanh.pop %v1166
    %1169 = vrot.lane.b32.xlu0 %v1167, 64
    %v1170 = vpop.permute.xlu0 %1169
    %v1172 = vmul.f32 %v1150, %v1170
    %1174 = vrot.lane.b32.xlu0 %v1166, 96
    %v1175 = vpop.permute.xlu0 %1174
    %1177 = vst.msk [vmem:[#allocation5] sm:$0xff] %vm236, %v1175
    %1179 = vrot.lane.b32.xlu0 %v1172, 32
    %v1180 = vpop.permute.xlu0 %1179
    %1182 = vst.msk [vmem:[#allocation4] sm:$0xff] %vm236, %v1180
    %s1183 = scalar_lea.vmem [#allocation3], 56
    %1184 = vst.msk [vmem:[%s1183] sm:$0xff] %vm236, %v1180
    %v1185 = vld [vmem:[#allocation3] sm:$0xff]
    %v1186 = vld [vmem:[#allocation3 + $0x8] sm:$0xff]
    %v1187 = vld [vmem:[#allocation3 + $0x10] sm:$0xff]
    %v1188 = vld [vmem:[#allocation3 + $0x18] sm:$0xff]
    %v1189 = vld [vmem:[#allocation3 + $0x20] sm:$0xff]
    %v1190 = vld [vmem:[#allocation3 + $0x28] sm:$0xff]
    %v1191 = vld [vmem:[#allocation3 + $0x30] sm:$0xff]
    %v1192 = vld [vmem:[#allocation3 + $0x38] sm:$0xff]
    %v1193 = vld [vmem:[%s4] sm:$0xff]
    %v1194 = vld [vmem:[%s4 + $0x8] sm:$0xff]
    %v1195 = vld [vmem:[%s4 + $0x10] sm:$0xff]
    %v1196 = vld [vmem:[%s4 + $0x18] sm:$0xff]
    %v1197 = vld [vmem:[%s6] sm:$0x1]
    %v1199 = vlaneseq
    %v1200 = vshrl.u32 %v1199, 7
    %v1201 = vsub.s32 0, %v1200
    %v1202 = vrot.slane %v1197, %v1201
    %v1205 = vsel %vm236, %v1185, 0
    %v1208 = vsel %vm236, %v1186, 0
    %v1211 = vsel %vm236, %v1187, 0
    %v1214 = vsel %vm236, %v1188, 0
    %v1217 = vsel %vm236, %v1189, 0
    %v1220 = vsel %vm236, %v1190, 0
    %v1223 = vsel %vm236, %v1191, 0
    %v1226 = vsel %vm236, %v1192, 0
    %1228 = vmatprep.subr.mxu0 0.0
    %1229 = vmatpush1.msra.mxu0 %v1193
    %1230 = vmatprep.subr.mxu0 0.0
    %1231 = vmatpush1.msra.mxu0 %v1194
    %1232 = vmatprep.subr.mxu0 0.0
    %1233 = vmatpush1.msra.mxu0 %v1195
    %1234 = vmatprep.subr.mxu0 0.0
    %1235 = vmatpush1.msra.mxu0 %v1196
    %1236 = vmatprep.subr.mxu0 0.0
    %1237 = vmatpush1.msra.mxu0 0.0
    %1238 = vmatprep.subr.mxu0 0.0
    %1239 = vmatpush1.msra.mxu0 0.0
    %1240 = vmatprep.subr.mxu0 0.0
    %1241 = vmatpush1.msra.mxu0 0.0
    %1242 = vmatprep.subr.mxu0 0.0
    %1243 = vmatpush1.msra.mxu0 0.0
    %1244 = vmatprep.subr.mxu0 0.0
    %1245 = vmatpush1.msra.mxu0 0.0
    %1246 = vmatprep.subr.mxu0 0.0
    %1247 = vmatpush1.msra.mxu0 0.0
    %1248 = vmatprep.subr.mxu0 0.0
    %1249 = vmatpush1.msra.mxu0 0.0
    %1250 = vmatprep.subr.mxu0 0.0
    %1251 = vmatpush1.msra.mxu0 0.0
    %1252 = vmatprep.subr.mxu0 0.0
    %1253 = vmatpush1.msra.mxu0 0.0
    %1254 = vmatprep.subr.mxu0 0.0
    %1255 = vmatpush1.msra.mxu0 0.0
    %1256 = vmatprep.subr.mxu0 0.0
    %1257 = vmatpush1.msra.mxu0 0.0
    %1258 = vmatprep.subr.mxu0 0.0
    %1259 = vmatpush1.msra.mxu0 0.0
    %1260 = vmatprep.subr.mxu0 0.0
    %1261 = vmatpush1.msra.mxu0 0.0
    %1262 = vmatprep.subr.mxu0 0.0
    %1263 = vmatpush1.msra.mxu0 0.0
    %1264 = vmatprep.subr.mxu0 0.0
    %1265 = vmatpush1.msra.mxu0 0.0
    %1266 = vmatprep.subr.mxu0 0.0
    %1267 = vmatpush1.msra.mxu0 0.0
    %1268 = vmatprep.subr.mxu0 0.0
    %1269 = vmatpush1.msra.mxu0 0.0
    %1270 = vmatprep.subr.mxu0 0.0
    %1271 = vmatpush1.msra.mxu0 0.0
    %1272 = vmatprep.subr.mxu0 0.0
    %1273 = vmatpush1.msra.mxu0 0.0
    %1274 = vmatprep.subr.mxu0 0.0
    %1275 = vmatpush1.msra.mxu0 0.0
    %1276 = vmatprep.subr.mxu0 0.0
    %1277 = vmatpush1.msra.mxu0 0.0
    %1278 = vmatprep.subr.mxu0 0.0
    %1279 = vmatpush1.msra.mxu0 0.0
    %1280 = vmatprep.subr.mxu0 0.0
    %1281 = vmatpush1.msra.mxu0 0.0
    %1282 = vmatprep.subr.mxu0 0.0
    %1283 = vmatpush1.msra.mxu0 0.0
    %1284 = vmatprep.subr.mxu0 0.0
    %1285 = vmatpush1.msra.mxu0 0.0
    %1286 = vmatprep.subr.mxu0 0.0
    %1287 = vmatpush1.msra.mxu0 0.0
    %1288 = vmatprep.subr.mxu0 0.0
    %1289 = vmatpush1.msra.mxu0 0.0
    %1290 = vmatprep.subr.mxu0 0.0
    %1291 = vmatpush1.msra.mxu0 0.0
    %1292 = vmatprep.mubr.f32.mxu0 0.0
    %1293 = vmatmul.mubr.f32.gmra.mrb[0].mxu0 %v1205
    %v1294 = vpop.f32.mrb[0].mxu0
    %v1295 = vadd.f32 %v1202, %v1294
    %v1296 = vpop.f32.mrb[0].mxu0
    %1297 = vmatprep.mubr.f32.mxu0 0.0
    %1298 = vmatmul.mubr.f32.gmra.mrb[0].mxu0 %v1208
    %v1299 = vpop.f32.mrb[0].mxu0
    %v1300 = vadd.f32 %v1202, %v1299
    %v1301 = vpop.f32.mrb[0].mxu0
    %1302 = vmatprep.mubr.f32.mxu0 0.0
    %1303 = vmatmul.mubr.f32.gmra.mrb[0].mxu0 %v1211
    %v1304 = vpop.f32.mrb[0].mxu0
    %v1305 = vadd.f32 %v1202, %v1304
    %v1306 = vpop.f32.mrb[0].mxu0
    %1307 = vmatprep.mubr.f32.mxu0 0.0
    %1308 = vmatmul.mubr.f32.gmra.mrb[0].mxu0 %v1214
    %v1309 = vpop.f32.mrb[0].mxu0
    %v1310 = vadd.f32 %v1202, %v1309
    %v1311 = vpop.f32.mrb[0].mxu0
    %1312 = vmatprep.mubr.f32.mxu0 0.0
    %1313 = vmatmul.mubr.f32.gmra.mrb[0].mxu0 %v1217
    %v1314 = vpop.f32.mrb[0].mxu0
    %v1315 = vadd.f32 %v1202, %v1314
    %v1316 = vpop.f32.mrb[0].mxu0
    %1317 = vmatprep.mubr.f32.mxu0 0.0
    %1318 = vmatmul.mubr.f32.gmra.mrb[0].mxu0 %v1220
    %v1319 = vpop.f32.mrb[0].mxu0
    %v1320 = vadd.f32 %v1202, %v1319
    %v1321 = vpop.f32.mrb[0].mxu0
    %1322 = vmatprep.mubr.f32.mxu0 0.0
    %1323 = vmatmul.mubr.f32.gmra.mrb[0].mxu0 %v1223
    %v1324 = vpop.f32.mrb[0].mxu0
    %v1325 = vadd.f32 %v1202, %v1324
    %v1326 = vpop.f32.mrb[0].mxu0
    %1327 = vmatprep.mubr.f32.mxu0 0.0
    %1328 = vmatmul.mubr.f32.gmra.mrb[0].mxu0 %v1226
    %v1329 = vpop.f32.mrb[0].mxu0
    %v1330 = vadd.f32 %v1202, %v1329
    %v1331 = vpop.f32.mrb[0].mxu0
    %1332 = vdwg.mxu0
    %1333 = vst [vmem:[#allocation2] sm:$0xff] %v1295
    %1334 = vst [vmem:[#allocation2 + $0x8] sm:$0xff] %v1300
    %1335 = vst [vmem:[#allocation2 + $0x10] sm:$0xff] %v1305
    %1336 = vst [vmem:[#allocation2 + $0x18] sm:$0xff] %v1310
    %1337 = vst [vmem:[#allocation2 + $0x20] sm:$0xff] %v1315
    %1338 = vst [vmem:[#allocation2 + $0x28] sm:$0xff] %v1320
    %1339 = vst [vmem:[#allocation2 + $0x30] sm:$0xff] %v1325
    %1340 = vst [vmem:[#allocation2 + $0x38] sm:$0xff] %v1330
    %v1341 = vld [vmem:[%s5] sm:$0xff]
    %v1342 = vld [vmem:[%s5 + $0x8] sm:$0xff]
    %v1343 = vld [vmem:[%s5 + $0x10] sm:$0xff]
    %v1344 = vld [vmem:[%s5 + $0x18] sm:$0xff]
    %v1345 = vld [vmem:[#allocation2] sm:$0xff]
    %s1346 = scalar_lea.vmem [#allocation4], 8
    %v1347 = vld [vmem:[%s1346] sm:$0xff]
    %v1349 = vsel %vm236, %v1347, 0
    %1351 = vmatprep.subr.mxu0 0.0
    %1352 = vmatpush1.msra.mxu0 %v1341
    %1353 = vmatprep.subr.mxu0 0.0
    %1354 = vmatpush1.msra.mxu0 %v1342
    %1355 = vmatprep.subr.mxu0 0.0
    %1356 = vmatpush1.msra.mxu0 %v1343
    %1357 = vmatprep.subr.mxu0 0.0
    %1358 = vmatpush1.msra.mxu0 %v1344
    %1359 = vmatprep.subr.mxu0 0.0
    %1360 = vmatpush1.msra.mxu0 0.0
    %1361 = vmatprep.subr.mxu0 0.0
    %1362 = vmatpush1.msra.mxu0 0.0
    %1363 = vmatprep.subr.mxu0 0.0
    %1364 = vmatpush1.msra.mxu0 0.0
    %1365 = vmatprep.subr.mxu0 0.0
    %1366 = vmatpush1.msra.mxu0 0.0
    %1367 = vmatprep.subr.mxu0 0.0
    %1368 = vmatpush1.msra.mxu0 0.0
    %1369 = vmatprep.subr.mxu0 0.0
    %1370 = vmatpush1.msra.mxu0 0.0
    %1371 = vmatprep.subr.mxu0 0.0
    %1372 = vmatpush1.msra.mxu0 0.0
    %1373 = vmatprep.subr.mxu0 0.0
    %1374 = vmatpush1.msra.mxu0 0.0
    %1375 = vmatprep.subr.mxu0 0.0
    %1376 = vmatpush1.msra.mxu0 0.0
    %1377 = vmatprep.subr.mxu0 0.0
    %1378 = vmatpush1.msra.mxu0 0.0
    %1379 = vmatprep.subr.mxu0 0.0
    %1380 = vmatpush1.msra.mxu0 0.0
    %1381 = vmatprep.subr.mxu0 0.0
    %1382 = vmatpush1.msra.mxu0 0.0
    %1383 = vmatprep.subr.mxu0 0.0
    %1384 = vmatpush1.msra.mxu0 0.0
    %1385 = vmatprep.subr.mxu0 0.0
    %1386 = vmatpush1.msra.mxu0 0.0
    %1387 = vmatprep.subr.mxu0 0.0
    %1388 = vmatpush1.msra.mxu0 0.0
    %1389 = vmatprep.subr.mxu0 0.0
    %1390 = vmatpush1.msra.mxu0 0.0
    %1391 = vmatprep.subr.mxu0 0.0
    %1392 = vmatpush1.msra.mxu0 0.0
    %1393 = vmatprep.subr.mxu0 0.0
    %1394 = vmatpush1.msra.mxu0 0.0
    %1395 = vmatprep.subr.mxu0 0.0
    %1396 = vmatpush1.msra.mxu0 0.0
    %1397 = vmatprep.subr.mxu0 0.0
    %1398 = vmatpush1.msra.mxu0 0.0
    %1399 = vmatprep.subr.mxu0 0.0
    %1400 = vmatpush1.msra.mxu0 0.0
    %1401 = vmatprep.subr.mxu0 0.0
    %1402 = vmatpush1.msra.mxu0 0.0
    %1403 = vmatprep.subr.mxu0 0.0
    %1404 = vmatpush1.msra.mxu0 0.0
    %1405 = vmatprep.subr.mxu0 0.0
    %1406 = vmatpush1.msra.mxu0 0.0
    %1407 = vmatprep.subr.mxu0 0.0
    %1408 = vmatpush1.msra.mxu0 0.0
    %1409 = vmatprep.subr.mxu0 0.0
    %1410 = vmatpush1.msra.mxu0 0.0
    %1411 = vmatprep.subr.mxu0 0.0
    %1412 = vmatpush1.msra.mxu0 0.0
    %1413 = vmatprep.subr.mxu0 0.0
    %1414 = vmatpush1.msra.mxu0 0.0
    %1415 = vmatprep.mubr.f32.mxu0 0.0
    %1416 = vmatmul.mubr.f32.gmra.mrb[0].mxu0 %v1349
    %v1417 = vpop.f32.mrb[0].mxu0
    %v1418 = vadd.f32 0.0, %v1417
    %v1419 = vpop.f32.mrb[0].mxu0
    %1420 = vdwg.mxu0
    %v1421 = vadd.f32 %v1345, %v1418
    %v1422 = vxor.u32 %v1421, 2147483648
    %v1423 = vmul.f32 %v1422, 1.442695
    %v1424 = vpow.pop %v1423
    %v1425 = vadd.f32 %v1424, 1.0
    %v1426 = vrcp.pop %v1425
    %v1427 = vmul.f32 1.0, %v1426
    %v1428 = vtanh.pop %v1421
    %v1429 = vsel %vm74, %v1428, %v1427
    %s1430 = scalar_lea.vmem [#allocation5], 8
    %v1431 = vld [vmem:[%s1430] sm:$0xff]
    %1433 = vrot.lane.b32.xlu0 %v1431, 32
    %v1434 = vpop.permute.xlu0 %1433
    %v1436 = vmul.f32 %v1429, %v1434
    %1438 = vrot.lane.b32.xlu0 %v1429, 64
    %v1439 = vpop.permute.xlu0 %1438
    %v1441 = vmul.f32 %v1429, %v1439
    %1443 = vrot.lane.b32.xlu0 %v1441, 32
    %v1444 = vpop.permute.xlu0 %1443
    %v1446 = vadd.f32 %v1436, %v1444
    %v1447 = vtanh.pop %v1446
    %1449 = vrot.lane.b32.xlu0 %v1447, 64
    %v1450 = vpop.permute.xlu0 %1449
    %v1452 = vmul.f32 %v1429, %v1450
    %1454 = vrot.lane.b32.xlu0 %v1446, 96
    %v1455 = vpop.permute.xlu0 %1454
    %1457 = vst.msk [vmem:[%s1430] sm:$0xff] %vm236, %v1455
    %1459 = vrot.lane.b32.xlu0 %v1452, 32
    %v1460 = vpop.permute.xlu0 %1459
    %1462 = vst.msk [vmem:[%s1346] sm:$0xff] %vm236, %v1460
    %1463 = vst.msk [vmem:[#allocation3] sm:$0xff] %vm236, %v1460
    %v1464 = vld [vmem:[%s352] sm:$0xff]
    %v1465 = vld [vmem:[%s1346] sm:$0xff]
    %v1467 = vsel %vm236, %v1465, 0
    %1469 = vmatprep.subr.mxu0 0.0
    %1470 = vmatpush1.msra.mxu0 %v1341
    %1471 = vmatprep.subr.mxu0 0.0
    %1472 = vmatpush1.msra.mxu0 %v1342
    %1473 = vmatprep.subr.mxu0 0.0
    %1474 = vmatpush1.msra.mxu0 %v1343
    %1475 = vmatprep.subr.mxu0 0.0
    %1476 = vmatpush1.msra.mxu0 %v1344
    %1477 = vmatprep.subr.mxu0 0.0
    %1478 = vmatpush1.msra.mxu0 0.0
    %1479 = vmatprep.subr.mxu0 0.0
    %1480 = vmatpush1.msra.mxu0 0.0
    %1481 = vmatprep.subr.mxu0 0.0
    %1482 = vmatpush1.msra.mxu0 0.0
    %1483 = vmatprep.subr.mxu0 0.0
    %1484 = vmatpush1.msra.mxu0 0.0
    %1485 = vmatprep.subr.mxu0 0.0
    %1486 = vmatpush1.msra.mxu0 0.0
    %1487 = vmatprep.subr.mxu0 0.0
    %1488 = vmatpush1.msra.mxu0 0.0
    %1489 = vmatprep.subr.mxu0 0.0
    %1490 = vmatpush1.msra.mxu0 0.0
    %1491 = vmatprep.subr.mxu0 0.0
    %1492 = vmatpush1.msra.mxu0 0.0
    %1493 = vmatprep.subr.mxu0 0.0
    %1494 = vmatpush1.msra.mxu0 0.0
    %1495 = vmatprep.subr.mxu0 0.0
    %1496 = vmatpush1.msra.mxu0 0.0
    %1497 = vmatprep.subr.mxu0 0.0
    %1498 = vmatpush1.msra.mxu0 0.0
    %1499 = vmatprep.subr.mxu0 0.0
    %1500 = vmatpush1.msra.mxu0 0.0
    %1501 = vmatprep.subr.mxu0 0.0
    %1502 = vmatpush1.msra.mxu0 0.0
    %1503 = vmatprep.subr.mxu0 0.0
    %1504 = vmatpush1.msra.mxu0 0.0
    %1505 = vmatprep.subr.mxu0 0.0
    %1506 = vmatpush1.msra.mxu0 0.0
    %1507 = vmatprep.subr.mxu0 0.0
    %1508 = vmatpush1.msra.mxu0 0.0
    %1509 = vmatprep.subr.mxu0 0.0
    %1510 = vmatpush1.msra.mxu0 0.0
    %1511 = vmatprep.subr.mxu0 0.0
    %1512 = vmatpush1.msra.mxu0 0.0
    %1513 = vmatprep.subr.mxu0 0.0
    %1514 = vmatpush1.msra.mxu0 0.0
    %1515 = vmatprep.subr.mxu0 0.0
    %1516 = vmatpush1.msra.mxu0 0.0
    %1517 = vmatprep.subr.mxu0 0.0
    %1518 = vmatpush1.msra.mxu0 0.0
    %1519 = vmatprep.subr.mxu0 0.0
    %1520 = vmatpush1.msra.mxu0 0.0
    %1521 = vmatprep.subr.mxu0 0.0
    %1522 = vmatpush1.msra.mxu0 0.0
    %1523 = vmatprep.subr.mxu0 0.0
    %1524 = vmatpush1.msra.mxu0 0.0
    %1525 = vmatprep.subr.mxu0 0.0
    %1526 = vmatpush1.msra.mxu0 0.0
    %1527 = vmatprep.subr.mxu0 0.0
    %1528 = vmatpush1.msra.mxu0 0.0
    %1529 = vmatprep.subr.mxu0 0.0
    %1530 = vmatpush1.msra.mxu0 0.0
    %1531 = vmatprep.subr.mxu0 0.0
    %1532 = vmatpush1.msra.mxu0 0.0
    %1533 = vmatprep.mubr.f32.mxu0 0.0
    %1534 = vmatmul.mubr.f32.gmra.mrb[0].mxu0 %v1467
    %v1535 = vpop.f32.mrb[0].mxu0
    %v1536 = vadd.f32 0.0, %v1535
    %v1537 = vpop.f32.mrb[0].mxu0
    %1538 = vdwg.mxu0
    %v1539 = vadd.f32 %v1464, %v1536
    %v1540 = vxor.u32 %v1539, 2147483648
    %v1541 = vmul.f32 %v1540, 1.442695
    %v1542 = vpow.pop %v1541
    %v1543 = vadd.f32 %v1542, 1.0
    %v1544 = vrcp.pop %v1543
    %v1545 = vmul.f32 1.0, %v1544
    %v1546 = vtanh.pop %v1539
    %v1547 = vsel %vm74, %v1546, %v1545
    %v1548 = vld [vmem:[%s1430] sm:$0xff]
    %1550 = vrot.lane.b32.xlu0 %v1548, 32
    %v1551 = vpop.permute.xlu0 %1550
    %v1553 = vmul.f32 %v1547, %v1551
    %1555 = vrot.lane.b32.xlu0 %v1547, 64
    %v1556 = vpop.permute.xlu0 %1555
    %v1558 = vmul.f32 %v1547, %v1556
    %1560 = vrot.lane.b32.xlu0 %v1558, 32
    %v1561 = vpop.permute.xlu0 %1560
    %v1563 = vadd.f32 %v1553, %v1561
    %v1564 = vtanh.pop %v1563
    %1566 = vrot.lane.b32.xlu0 %v1564, 64
    %v1567 = vpop.permute.xlu0 %1566
    %v1569 = vmul.f32 %v1547, %v1567
    %1571 = vrot.lane.b32.xlu0 %v1563, 96
    %v1572 = vpop.permute.xlu0 %1571
    %1574 = vst.msk [vmem:[%s1430] sm:$0xff] %vm236, %v1572
    %1576 = vrot.lane.b32.xlu0 %v1569, 32
    %v1577 = vpop.permute.xlu0 %1576
    %1579 = vst.msk [vmem:[%s1346] sm:$0xff] %vm236, %v1577
    %1580 = vst.msk [vmem:[%s469] sm:$0xff] %vm236, %v1577
    %v1581 = vld [vmem:[%s471] sm:$0xff]
    %v1582 = vld [vmem:[%s1346] sm:$0xff]
    %v1584 = vsel %vm236, %v1582, 0
    %1586 = vmatprep.subr.mxu0 0.0
    %1587 = vmatpush1.msra.mxu0 %v1341
    %1588 = vmatprep.subr.mxu0 0.0
    %1589 = vmatpush1.msra.mxu0 %v1342
    %1590 = vmatprep.subr.mxu0 0.0
    %1591 = vmatpush1.msra.mxu0 %v1343
    %1592 = vmatprep.subr.mxu0 0.0
    %1593 = vmatpush1.msra.mxu0 %v1344
    %1594 = vmatprep.subr.mxu0 0.0
    %1595 = vmatpush1.msra.mxu0 0.0
    %1596 = vmatprep.subr.mxu0 0.0
    %1597 = vmatpush1.msra.mxu0 0.0
    %1598 = vmatprep.subr.mxu0 0.0
    %1599 = vmatpush1.msra.mxu0 0.0
    %1600 = vmatprep.subr.mxu0 0.0
    %1601 = vmatpush1.msra.mxu0 0.0
    %1602 = vmatprep.subr.mxu0 0.0
    %1603 = vmatpush1.msra.mxu0 0.0
    %1604 = vmatprep.subr.mxu0 0.0
    %1605 = vmatpush1.msra.mxu0 0.0
    %1606 = vmatprep.subr.mxu0 0.0
    %1607 = vmatpush1.msra.mxu0 0.0
    %1608 = vmatprep.subr.mxu0 0.0
    %1609 = vmatpush1.msra.mxu0 0.0
    %1610 = vmatprep.subr.mxu0 0.0
    %1611 = vmatpush1.msra.mxu0 0.0
    %1612 = vmatprep.subr.mxu0 0.0
    %1613 = vmatpush1.msra.mxu0 0.0
    %1614 = vmatprep.subr.mxu0 0.0
    %1615 = vmatpush1.msra.mxu0 0.0
    %1616 = vmatprep.subr.mxu0 0.0
    %1617 = vmatpush1.msra.mxu0 0.0
    %1618 = vmatprep.subr.mxu0 0.0
    %1619 = vmatpush1.msra.mxu0 0.0
    %1620 = vmatprep.subr.mxu0 0.0
    %1621 = vmatpush1.msra.mxu0 0.0
    %1622 = vmatprep.subr.mxu0 0.0
    %1623 = vmatpush1.msra.mxu0 0.0
    %1624 = vmatprep.subr.mxu0 0.0
    %1625 = vmatpush1.msra.mxu0 0.0
    %1626 = vmatprep.subr.mxu0 0.0
    %1627 = vmatpush1.msra.mxu0 0.0
    %1628 = vmatprep.subr.mxu0 0.0
    %1629 = vmatpush1.msra.mxu0 0.0
    %1630 = vmatprep.subr.mxu0 0.0
    %1631 = vmatpush1.msra.mxu0 0.0
    %1632 = vmatprep.subr.mxu0 0.0
    %1633 = vmatpush1.msra.mxu0 0.0
    %1634 = vmatprep.subr.mxu0 0.0
    %1635 = vmatpush1.msra.mxu0 0.0
    %1636 = vmatprep.subr.mxu0 0.0
    %1637 = vmatpush1.msra.mxu0 0.0
    %1638 = vmatprep.subr.mxu0 0.0
    %1639 = vmatpush1.msra.mxu0 0.0
    %1640 = vmatprep.subr.mxu0 0.0
    %1641 = vmatpush1.msra.mxu0 0.0
    %1642 = vmatprep.subr.mxu0 0.0
    %1643 = vmatpush1.msra.mxu0 0.0
    %1644 = vmatprep.subr.mxu0 0.0
    %1645 = vmatpush1.msra.mxu0 0.0
    %1646 = vmatprep.subr.mxu0 0.0
    %1647 = vmatpush1.msra.mxu0 0.0
    %1648 = vmatprep.subr.mxu0 0.0
    %1649 = vmatpush1.msra.mxu0 0.0
    %1650 = vmatprep.mubr.f32.mxu0 0.0
    %1651 = vmatmul.mubr.f32.gmra.mrb[0].mxu0 %v1584
    %v1652 = vpop.f32.mrb[0].mxu0
    %v1653 = vadd.f32 0.0, %v1652
    %v1654 = vpop.f32.mrb[0].mxu0
    %1655 = vdwg.mxu0
    %v1656 = vadd.f32 %v1581, %v1653
    %v1657 = vxor.u32 %v1656, 2147483648
    %v1658 = vmul.f32 %v1657, 1.442695
    %v1659 = vpow.pop %v1658
    %v1660 = vadd.f32 %v1659, 1.0
    %v1661 = vrcp.pop %v1660
    %v1662 = vmul.f32 1.0, %v1661
    %v1663 = vtanh.pop %v1656
    %v1664 = vsel %vm74, %v1663, %v1662
    %v1665 = vld [vmem:[%s1430] sm:$0xff]
    %1667 = vrot.lane.b32.xlu0 %v1665, 32
    %v1668 = vpop.permute.xlu0 %1667
    %v1670 = vmul.f32 %v1664, %v1668
    %1672 = vrot.lane.b32.xlu0 %v1664, 64
    %v1673 = vpop.permute.xlu0 %1672
    %v1675 = vmul.f32 %v1664, %v1673
    %1677 = vrot.lane.b32.xlu0 %v1675, 32
    %v1678 = vpop.permute.xlu0 %1677
    %v1680 = vadd.f32 %v1670, %v1678
    %v1681 = vtanh.pop %v1680
    %1683 = vrot.lane.b32.xlu0 %v1681, 64
    %v1684 = vpop.permute.xlu0 %1683
    %v1686 = vmul.f32 %v1664, %v1684
    %1688 = vrot.lane.b32.xlu0 %v1680, 96
    %v1689 = vpop.permute.xlu0 %1688
    %1691 = vst.msk [vmem:[%s1430] sm:$0xff] %vm236, %v1689
    %1693 = vrot.lane.b32.xlu0 %v1686, 32
    %v1694 = vpop.permute.xlu0 %1693
    %1696 = vst.msk [vmem:[%s1346] sm:$0xff] %vm236, %v1694
    %1697 = vst.msk [vmem:[%s588] sm:$0xff] %vm236, %v1694
    %v1698 = vld [vmem:[%s590] sm:$0xff]
    %v1699 = vld [vmem:[%s1346] sm:$0xff]
    %v1701 = vsel %vm236, %v1699, 0
    %1703 = vmatprep.subr.mxu0 0.0
    %1704 = vmatpush1.msra.mxu0 %v1341
    %1705 = vmatprep.subr.mxu0 0.0
    %1706 = vmatpush1.msra.mxu0 %v1342
    %1707 = vmatprep.subr.mxu0 0.0
    %1708 = vmatpush1.msra.mxu0 %v1343
    %1709 = vmatprep.subr.mxu0 0.0
    %1710 = vmatpush1.msra.mxu0 %v1344
    %1711 = vmatprep.subr.mxu0 0.0
    %1712 = vmatpush1.msra.mxu0 0.0
    %1713 = vmatprep.subr.mxu0 0.0
    %1714 = vmatpush1.msra.mxu0 0.0
    %1715 = vmatprep.subr.mxu0 0.0
    %1716 = vmatpush1.msra.mxu0 0.0
    %1717 = vmatprep.subr.mxu0 0.0
    %1718 = vmatpush1.msra.mxu0 0.0
    %1719 = vmatprep.subr.mxu0 0.0
    %1720 = vmatpush1.msra.mxu0 0.0
    %1721 = vmatprep.subr.mxu0 0.0
    %1722 = vmatpush1.msra.mxu0 0.0
    %1723 = vmatprep.subr.mxu0 0.0
    %1724 = vmatpush1.msra.mxu0 0.0
    %1725 = vmatprep.subr.mxu0 0.0
    %1726 = vmatpush1.msra.mxu0 0.0
    %1727 = vmatprep.subr.mxu0 0.0
    %1728 = vmatpush1.msra.mxu0 0.0
    %1729 = vmatprep.subr.mxu0 0.0
    %1730 = vmatpush1.msra.mxu0 0.0
    %1731 = vmatprep.subr.mxu0 0.0
    %1732 = vmatpush1.msra.mxu0 0.0
    %1733 = vmatprep.subr.mxu0 0.0
    %1734 = vmatpush1.msra.mxu0 0.0
    %1735 = vmatprep.subr.mxu0 0.0
    %1736 = vmatpush1.msra.mxu0 0.0
    %1737 = vmatprep.subr.mxu0 0.0
    %1738 = vmatpush1.msra.mxu0 0.0
    %1739 = vmatprep.subr.mxu0 0.0
    %1740 = vmatpush1.msra.mxu0 0.0
    %1741 = vmatprep.subr.mxu0 0.0
    %1742 = vmatpush1.msra.mxu0 0.0
    %1743 = vmatprep.subr.mxu0 0.0
    %1744 = vmatpush1.msra.mxu0 0.0
    %1745 = vmatprep.subr.mxu0 0.0
    %1746 = vmatpush1.msra.mxu0 0.0
    %1747 = vmatprep.subr.mxu0 0.0
    %1748 = vmatpush1.msra.mxu0 0.0
    %1749 = vmatprep.subr.mxu0 0.0
    %1750 = vmatpush1.msra.mxu0 0.0
    %1751 = vmatprep.subr.mxu0 0.0
    %1752 = vmatpush1.msra.mxu0 0.0
    %1753 = vmatprep.subr.mxu0 0.0
    %1754 = vmatpush1.msra.mxu0 0.0
    %1755 = vmatprep.subr.mxu0 0.0
    %1756 = vmatpush1.msra.mxu0 0.0
    %1757 = vmatprep.subr.mxu0 0.0
    %1758 = vmatpush1.msra.mxu0 0.0
    %1759 = vmatprep.subr.mxu0 0.0
    %1760 = vmatpush1.msra.mxu0 0.0
    %1761 = vmatprep.subr.mxu0 0.0
    %1762 = vmatpush1.msra.mxu0 0.0
    %1763 = vmatprep.subr.mxu0 0.0
    %1764 = vmatpush1.msra.mxu0 0.0
    %1765 = vmatprep.subr.mxu0 0.0
    %1766 = vmatpush1.msra.mxu0 0.0
    %1767 = vmatprep.mubr.f32.mxu0 0.0
    %1768 = vmatmul.mubr.f32.gmra.mrb[0].mxu0 %v1701
    %v1769 = vpop.f32.mrb[0].mxu0
    %v1770 = vadd.f32 0.0, %v1769
    %v1771 = vpop.f32.mrb[0].mxu0
    %1772 = vdwg.mxu0
    %v1773 = vadd.f32 %v1698, %v1770
    %v1774 = vxor.u32 %v1773, 2147483648
    %v1775 = vmul.f32 %v1774, 1.442695
    %v1776 = vpow.pop %v1775
    %v1777 = vadd.f32 %v1776, 1.0
    %v1778 = vrcp.pop %v1777
    %v1779 = vmul.f32 1.0, %v1778
    %v1780 = vtanh.pop %v1773
    %v1781 = vsel %vm74, %v1780, %v1779
    %v1782 = vld [vmem:[%s1430] sm:$0xff]
    %1784 = vrot.lane.b32.xlu0 %v1782, 32
    %v1785 = vpop.permute.xlu0 %1784
    %v1787 = vmul.f32 %v1781, %v1785
    %1789 = vrot.lane.b32.xlu0 %v1781, 64
    %v1790 = vpop.permute.xlu0 %1789
    %v1792 = vmul.f32 %v1781, %v1790
    %1794 = vrot.lane.b32.xlu0 %v1792, 32
    %v1795 = vpop.permute.xlu0 %1794
    %v1797 = vadd.f32 %v1787, %v1795
    %v1798 = vtanh.pop %v1797
    %1800 = vrot.lane.b32.xlu0 %v1798, 64
    %v1801 = vpop.permute.xlu0 %1800
    %v1803 = vmul.f32 %v1781, %v1801
    %1805 = vrot.lane.b32.xlu0 %v1797, 96
    %v1806 = vpop.permute.xlu0 %1805
    %1808 = vst.msk [vmem:[%s1430] sm:$0xff] %vm236, %v1806
    %1810 = vrot.lane.b32.xlu0 %v1803, 32
    %v1811 = vpop.permute.xlu0 %1810
    %1813 = vst.msk [vmem:[%s1346] sm:$0xff] %vm236, %v1811
    %1814 = vst.msk [vmem:[%s707] sm:$0xff] %vm236, %v1811
    %v1815 = vld [vmem:[%s709] sm:$0xff]
    %v1816 = vld [vmem:[%s1346] sm:$0xff]
    %v1818 = vsel %vm236, %v1816, 0
    %1820 = vmatprep.subr.mxu0 0.0
    %1821 = vmatpush1.msra.mxu0 %v1341
    %1822 = vmatprep.subr.mxu0 0.0
    %1823 = vmatpush1.msra.mxu0 %v1342
    %1824 = vmatprep.subr.mxu0 0.0
    %1825 = vmatpush1.msra.mxu0 %v1343
    %1826 = vmatprep.subr.mxu0 0.0
    %1827 = vmatpush1.msra.mxu0 %v1344
    %1828 = vmatprep.subr.mxu0 0.0
    %1829 = vmatpush1.msra.mxu0 0.0
    %1830 = vmatprep.subr.mxu0 0.0
    %1831 = vmatpush1.msra.mxu0 0.0
    %1832 = vmatprep.subr.mxu0 0.0
    %1833 = vmatpush1.msra.mxu0 0.0
    %1834 = vmatprep.subr.mxu0 0.0
    %1835 = vmatpush1.msra.mxu0 0.0
    %1836 = vmatprep.subr.mxu0 0.0
    %1837 = vmatpush1.msra.mxu0 0.0
    %1838 = vmatprep.subr.mxu0 0.0
    %1839 = vmatpush1.msra.mxu0 0.0
    %1840 = vmatprep.subr.mxu0 0.0
    %1841 = vmatpush1.msra.mxu0 0.0
    %1842 = vmatprep.subr.mxu0 0.0
    %1843 = vmatpush1.msra.mxu0 0.0
    %1844 = vmatprep.subr.mxu0 0.0
    %1845 = vmatpush1.msra.mxu0 0.0
    %1846 = vmatprep.subr.mxu0 0.0
    %1847 = vmatpush1.msra.mxu0 0.0
    %1848 = vmatprep.subr.mxu0 0.0
    %1849 = vmatpush1.msra.mxu0 0.0
    %1850 = vmatprep.subr.mxu0 0.0
    %1851 = vmatpush1.msra.mxu0 0.0
    %1852 = vmatprep.subr.mxu0 0.0
    %1853 = vmatpush1.msra.mxu0 0.0
    %1854 = vmatprep.subr.mxu0 0.0
    %1855 = vmatpush1.msra.mxu0 0.0
    %1856 = vmatprep.subr.mxu0 0.0
    %1857 = vmatpush1.msra.mxu0 0.0
    %1858 = vmatprep.subr.mxu0 0.0
    %1859 = vmatpush1.msra.mxu0 0.0
    %1860 = vmatprep.subr.mxu0 0.0
    %1861 = vmatpush1.msra.mxu0 0.0
    %1862 = vmatprep.subr.mxu0 0.0
    %1863 = vmatpush1.msra.mxu0 0.0
    %1864 = vmatprep.subr.mxu0 0.0
    %1865 = vmatpush1.msra.mxu0 0.0
    %1866 = vmatprep.subr.mxu0 0.0
    %1867 = vmatpush1.msra.mxu0 0.0
    %1868 = vmatprep.subr.mxu0 0.0
    %1869 = vmatpush1.msra.mxu0 0.0
    %1870 = vmatprep.subr.mxu0 0.0
    %1871 = vmatpush1.msra.mxu0 0.0
    %1872 = vmatprep.subr.mxu0 0.0
    %1873 = vmatpush1.msra.mxu0 0.0
    %1874 = vmatprep.subr.mxu0 0.0
    %1875 = vmatpush1.msra.mxu0 0.0
    %1876 = vmatprep.subr.mxu0 0.0
    %1877 = vmatpush1.msra.mxu0 0.0
    %1878 = vmatprep.subr.mxu0 0.0
    %1879 = vmatpush1.msra.mxu0 0.0
    %1880 = vmatprep.subr.mxu0 0.0
    %1881 = vmatpush1.msra.mxu0 0.0
    %1882 = vmatprep.subr.mxu0 0.0
    %1883 = vmatpush1.msra.mxu0 0.0
    %1884 = vmatprep.mubr.f32.mxu0 0.0
    %1885 = vmatmul.mubr.f32.gmra.mrb[0].mxu0 %v1818
    %v1886 = vpop.f32.mrb[0].mxu0
    %v1887 = vadd.f32 0.0, %v1886
    %v1888 = vpop.f32.mrb[0].mxu0
    %1889 = vdwg.mxu0
    %v1890 = vadd.f32 %v1815, %v1887
    %v1891 = vxor.u32 %v1890, 2147483648
    %v1892 = vmul.f32 %v1891, 1.442695
    %v1893 = vpow.pop %v1892
    %v1894 = vadd.f32 %v1893, 1.0
    %v1895 = vrcp.pop %v1894
    %v1896 = vmul.f32 1.0, %v1895
    %v1897 = vtanh.pop %v1890
    %v1898 = vsel %vm74, %v1897, %v1896
    %v1899 = vld [vmem:[%s1430] sm:$0xff]
    %1901 = vrot.lane.b32.xlu0 %v1899, 32
    %v1902 = vpop.permute.xlu0 %1901
    %v1904 = vmul.f32 %v1898, %v1902
    %1906 = vrot.lane.b32.xlu0 %v1898, 64
    %v1907 = vpop.permute.xlu0 %1906
    %v1909 = vmul.f32 %v1898, %v1907
    %1911 = vrot.lane.b32.xlu0 %v1909, 32
    %v1912 = vpop.permute.xlu0 %1911
    %v1914 = vadd.f32 %v1904, %v1912
    %v1915 = vtanh.pop %v1914
    %1917 = vrot.lane.b32.xlu0 %v1915, 64
    %v1918 = vpop.permute.xlu0 %1917
    %v1920 = vmul.f32 %v1898, %v1918
    %1922 = vrot.lane.b32.xlu0 %v1914, 96
    %v1923 = vpop.permute.xlu0 %1922
    %1925 = vst.msk [vmem:[%s1430] sm:$0xff] %vm236, %v1923
    %1927 = vrot.lane.b32.xlu0 %v1920, 32
    %v1928 = vpop.permute.xlu0 %1927
    %1930 = vst.msk [vmem:[%s1346] sm:$0xff] %vm236, %v1928
    %1931 = vst.msk [vmem:[%s826] sm:$0xff] %vm236, %v1928
    %v1932 = vld [vmem:[%s828] sm:$0xff]
    %v1933 = vld [vmem:[%s1346] sm:$0xff]
    %v1935 = vsel %vm236, %v1933, 0
    %1937 = vmatprep.subr.mxu0 0.0
    %1938 = vmatpush1.msra.mxu0 %v1341
    %1939 = vmatprep.subr.mxu0 0.0
    %1940 = vmatpush1.msra.mxu0 %v1342
    %1941 = vmatprep.subr.mxu0 0.0
    %1942 = vmatpush1.msra.mxu0 %v1343
    %1943 = vmatprep.subr.mxu0 0.0
    %1944 = vmatpush1.msra.mxu0 %v1344
    %1945 = vmatprep.subr.mxu0 0.0
    %1946 = vmatpush1.msra.mxu0 0.0
    %1947 = vmatprep.subr.mxu0 0.0
    %1948 = vmatpush1.msra.mxu0 0.0
    %1949 = vmatprep.subr.mxu0 0.0
    %1950 = vmatpush1.msra.mxu0 0.0
    %1951 = vmatprep.subr.mxu0 0.0
    %1952 = vmatpush1.msra.mxu0 0.0
    %1953 = vmatprep.subr.mxu0 0.0
    %1954 = vmatpush1.msra.mxu0 0.0
    %1955 = vmatprep.subr.mxu0 0.0
    %1956 = vmatpush1.msra.mxu0 0.0
    %1957 = vmatprep.subr.mxu0 0.0
    %1958 = vmatpush1.msra.mxu0 0.0
    %1959 = vmatprep.subr.mxu0 0.0
    %1960 = vmatpush1.msra.mxu0 0.0
    %1961 = vmatprep.subr.mxu0 0.0
    %1962 = vmatpush1.msra.mxu0 0.0
    %1963 = vmatprep.subr.mxu0 0.0
    %1964 = vmatpush1.msra.mxu0 0.0
    %1965 = vmatprep.subr.mxu0 0.0
    %1966 = vmatpush1.msra.mxu0 0.0
    %1967 = vmatprep.subr.mxu0 0.0
    %1968 = vmatpush1.msra.mxu0 0.0
    %1969 = vmatprep.subr.mxu0 0.0
    %1970 = vmatpush1.msra.mxu0 0.0
    %1971 = vmatprep.subr.mxu0 0.0
    %1972 = vmatpush1.msra.mxu0 0.0
    %1973 = vmatprep.subr.mxu0 0.0
    %1974 = vmatpush1.msra.mxu0 0.0
    %1975 = vmatprep.subr.mxu0 0.0
    %1976 = vmatpush1.msra.mxu0 0.0
    %1977 = vmatprep.subr.mxu0 0.0
    %1978 = vmatpush1.msra.mxu0 0.0
    %1979 = vmatprep.subr.mxu0 0.0
    %1980 = vmatpush1.msra.mxu0 0.0
    %1981 = vmatprep.subr.mxu0 0.0
    %1982 = vmatpush1.msra.mxu0 0.0
    %1983 = vmatprep.subr.mxu0 0.0
    %1984 = vmatpush1.msra.mxu0 0.0
    %1985 = vmatprep.subr.mxu0 0.0
    %1986 = vmatpush1.msra.mxu0 0.0
    %1987 = vmatprep.subr.mxu0 0.0
    %1988 = vmatpush1.msra.mxu0 0.0
    %1989 = vmatprep.subr.mxu0 0.0
    %1990 = vmatpush1.msra.mxu0 0.0
    %1991 = vmatprep.subr.mxu0 0.0
    %1992 = vmatpush1.msra.mxu0 0.0
    %1993 = vmatprep.subr.mxu0 0.0
    %1994 = vmatpush1.msra.mxu0 0.0
    %1995 = vmatprep.subr.mxu0 0.0
    %1996 = vmatpush1.msra.mxu0 0.0
    %1997 = vmatprep.subr.mxu0 0.0
    %1998 = vmatpush1.msra.mxu0 0.0
    %1999 = vmatprep.subr.mxu0 0.0
    %2000 = vmatpush1.msra.mxu0 0.0
    %2001 = vmatprep.mubr.f32.mxu0 0.0
    %2002 = vmatmul.mubr.f32.gmra.mrb[0].mxu0 %v1935
    %v2003 = vpop.f32.mrb[0].mxu0
    %v2004 = vadd.f32 0.0, %v2003
    %v2005 = vpop.f32.mrb[0].mxu0
    %2006 = vdwg.mxu0
    %v2007 = vadd.f32 %v1932, %v2004
    %v2008 = vxor.u32 %v2007, 2147483648
    %v2009 = vmul.f32 %v2008, 1.442695
    %v2010 = vpow.pop %v2009
    %v2011 = vadd.f32 %v2010, 1.0
    %v2012 = vrcp.pop %v2011
    %v2013 = vmul.f32 1.0, %v2012
    %v2014 = vtanh.pop %v2007
    %v2015 = vsel %vm74, %v2014, %v2013
    %v2016 = vld [vmem:[%s1430] sm:$0xff]
    %2018 = vrot.lane.b32.xlu0 %v2016, 32
    %v2019 = vpop.permute.xlu0 %2018
    %v2021 = vmul.f32 %v2015, %v2019
    %2023 = vrot.lane.b32.xlu0 %v2015, 64
    %v2024 = vpop.permute.xlu0 %2023
    %v2026 = vmul.f32 %v2015, %v2024
    %2028 = vrot.lane.b32.xlu0 %v2026, 32
    %v2029 = vpop.permute.xlu0 %2028
    %v2031 = vadd.f32 %v2021, %v2029
    %v2032 = vtanh.pop %v2031
    %2034 = vrot.lane.b32.xlu0 %v2032, 64
    %v2035 = vpop.permute.xlu0 %2034
    %v2037 = vmul.f32 %v2015, %v2035
    %2039 = vrot.lane.b32.xlu0 %v2031, 96
    %v2040 = vpop.permute.xlu0 %2039
    %2042 = vst.msk [vmem:[%s1430] sm:$0xff] %vm236, %v2040
    %2044 = vrot.lane.b32.xlu0 %v2037, 32
    %v2045 = vpop.permute.xlu0 %2044
    %2047 = vst.msk [vmem:[%s1346] sm:$0xff] %vm236, %v2045
    %2048 = vst.msk [vmem:[%s945] sm:$0xff] %vm236, %v2045
    %v2049 = vld [vmem:[%s947] sm:$0xff]
    %v2050 = vld [vmem:[%s1346] sm:$0xff]
    %v2052 = vsel %vm236, %v2050, 0
    %2054 = vmatprep.subr.mxu0 0.0
    %2055 = vmatpush1.msra.mxu0 %v1341
    %2056 = vmatprep.subr.mxu0 0.0
    %2057 = vmatpush1.msra.mxu0 %v1342
    %2058 = vmatprep.subr.mxu0 0.0
    %2059 = vmatpush1.msra.mxu0 %v1343
    %2060 = vmatprep.subr.mxu0 0.0
    %2061 = vmatpush1.msra.mxu0 %v1344
    %2062 = vmatprep.subr.mxu0 0.0
    %2063 = vmatpush1.msra.mxu0 0.0
    %2064 = vmatprep.subr.mxu0 0.0
    %2065 = vmatpush1.msra.mxu0 0.0
    %2066 = vmatprep.subr.mxu0 0.0
    %2067 = vmatpush1.msra.mxu0 0.0
    %2068 = vmatprep.subr.mxu0 0.0
    %2069 = vmatpush1.msra.mxu0 0.0
    %2070 = vmatprep.subr.mxu0 0.0
    %2071 = vmatpush1.msra.mxu0 0.0
    %2072 = vmatprep.subr.mxu0 0.0
    %2073 = vmatpush1.msra.mxu0 0.0
    %2074 = vmatprep.subr.mxu0 0.0
    %2075 = vmatpush1.msra.mxu0 0.0
    %2076 = vmatprep.subr.mxu0 0.0
    %2077 = vmatpush1.msra.mxu0 0.0
    %2078 = vmatprep.subr.mxu0 0.0
    %2079 = vmatpush1.msra.mxu0 0.0
    %2080 = vmatprep.subr.mxu0 0.0
    %2081 = vmatpush1.msra.mxu0 0.0
    %2082 = vmatprep.subr.mxu0 0.0
    %2083 = vmatpush1.msra.mxu0 0.0
    %2084 = vmatprep.subr.mxu0 0.0
    %2085 = vmatpush1.msra.mxu0 0.0
    %2086 = vmatprep.subr.mxu0 0.0
    %2087 = vmatpush1.msra.mxu0 0.0
    %2088 = vmatprep.subr.mxu0 0.0
    %2089 = vmatpush1.msra.mxu0 0.0
    %2090 = vmatprep.subr.mxu0 0.0
    %2091 = vmatpush1.msra.mxu0 0.0
    %2092 = vmatprep.subr.mxu0 0.0
    %2093 = vmatpush1.msra.mxu0 0.0
    %2094 = vmatprep.subr.mxu0 0.0
    %2095 = vmatpush1.msra.mxu0 0.0
    %2096 = vmatprep.subr.mxu0 0.0
    %2097 = vmatpush1.msra.mxu0 0.0
    %2098 = vmatprep.subr.mxu0 0.0
    %2099 = vmatpush1.msra.mxu0 0.0
    %2100 = vmatprep.subr.mxu0 0.0
    %2101 = vmatpush1.msra.mxu0 0.0
    %2102 = vmatprep.subr.mxu0 0.0
    %2103 = vmatpush1.msra.mxu0 0.0
    %2104 = vmatprep.subr.mxu0 0.0
    %2105 = vmatpush1.msra.mxu0 0.0
    %2106 = vmatprep.subr.mxu0 0.0
    %2107 = vmatpush1.msra.mxu0 0.0
    %2108 = vmatprep.subr.mxu0 0.0
    %2109 = vmatpush1.msra.mxu0 0.0
    %2110 = vmatprep.subr.mxu0 0.0
    %2111 = vmatpush1.msra.mxu0 0.0
    %2112 = vmatprep.subr.mxu0 0.0
    %2113 = vmatpush1.msra.mxu0 0.0
    %2114 = vmatprep.subr.mxu0 0.0
    %2115 = vmatpush1.msra.mxu0 0.0
    %2116 = vmatprep.subr.mxu0 0.0
    %2117 = vmatpush1.msra.mxu0 0.0
    %2118 = vmatprep.mubr.f32.mxu0 0.0
    %2119 = vmatmul.mubr.f32.gmra.mrb[0].mxu0 %v2052
    %v2120 = vpop.f32.mrb[0].mxu0
    %v2121 = vadd.f32 0.0, %v2120
    %v2122 = vpop.f32.mrb[0].mxu0
    %2123 = vdwg.mxu0
    %v2124 = vadd.f32 %v2049, %v2121
    %v2125 = vxor.u32 %v2124, 2147483648
    %v2126 = vmul.f32 %v2125, 1.442695
    %v2127 = vpow.pop %v2126
    %v2128 = vadd.f32 %v2127, 1.0
    %v2129 = vrcp.pop %v2128
    %v2130 = vmul.f32 1.0, %v2129
    %v2131 = vtanh.pop %v2124
    %v2132 = vsel %vm74, %v2131, %v2130
    %v2133 = vld [vmem:[%s1430] sm:$0xff]
    %2135 = vrot.lane.b32.xlu0 %v2133, 32
    %v2136 = vpop.permute.xlu0 %2135
    %v2138 = vmul.f32 %v2132, %v2136
    %2140 = vrot.lane.b32.xlu0 %v2132, 64
    %v2141 = vpop.permute.xlu0 %2140
    %v2143 = vmul.f32 %v2132, %v2141
    %2145 = vrot.lane.b32.xlu0 %v2143, 32
    %v2146 = vpop.permute.xlu0 %2145
    %v2148 = vadd.f32 %v2138, %v2146
    %v2149 = vtanh.pop %v2148
    %2151 = vrot.lane.b32.xlu0 %v2149, 64
    %v2152 = vpop.permute.xlu0 %2151
    %v2154 = vmul.f32 %v2132, %v2152
    %2156 = vrot.lane.b32.xlu0 %v2148, 96
    %v2157 = vpop.permute.xlu0 %2156
    %2159 = vst.msk [vmem:[%s1430] sm:$0xff] %vm236, %v2157
    %2161 = vrot.lane.b32.xlu0 %v2154, 32
    %v2162 = vpop.permute.xlu0 %2161
    %2164 = vst.msk [vmem:[%s1346] sm:$0xff] %vm236, %v2162
    %2165 = vst.msk [vmem:[%s1064] sm:$0xff] %vm236, %v2162
    %v2166 = vld [vmem:[%s1066] sm:$0xff]
    %v2167 = vld [vmem:[%s1346] sm:$0xff]
    %v2169 = vsel %vm236, %v2167, 0
    %2171 = vmatprep.subr.mxu0 0.0
    %2172 = vmatpush1.msra.mxu0 %v1341
    %2173 = vmatprep.subr.mxu0 0.0
    %2174 = vmatpush1.msra.mxu0 %v1342
    %2175 = vmatprep.subr.mxu0 0.0
    %2176 = vmatpush1.msra.mxu0 %v1343
    %2177 = vmatprep.subr.mxu0 0.0
    %2178 = vmatpush1.msra.mxu0 %v1344
    %2179 = vmatprep.subr.mxu0 0.0
    %2180 = vmatpush1.msra.mxu0 0.0
    %2181 = vmatprep.subr.mxu0 0.0
    %2182 = vmatpush1.msra.mxu0 0.0
    %2183 = vmatprep.subr.mxu0 0.0
    %2184 = vmatpush1.msra.mxu0 0.0
    %2185 = vmatprep.subr.mxu0 0.0
    %2186 = vmatpush1.msra.mxu0 0.0
    %2187 = vmatprep.subr.mxu0 0.0
    %2188 = vmatpush1.msra.mxu0 0.0
    %2189 = vmatprep.subr.mxu0 0.0
    %2190 = vmatpush1.msra.mxu0 0.0
    %2191 = vmatprep.subr.mxu0 0.0
    %2192 = vmatpush1.msra.mxu0 0.0
    %2193 = vmatprep.subr.mxu0 0.0
    %2194 = vmatpush1.msra.mxu0 0.0
    %2195 = vmatprep.subr.mxu0 0.0
    %2196 = vmatpush1.msra.mxu0 0.0
    %2197 = vmatprep.subr.mxu0 0.0
    %2198 = vmatpush1.msra.mxu0 0.0
    %2199 = vmatprep.subr.mxu0 0.0
    %2200 = vmatpush1.msra.mxu0 0.0
    %2201 = vmatprep.subr.mxu0 0.0
    %2202 = vmatpush1.msra.mxu0 0.0
    %2203 = vmatprep.subr.mxu0 0.0
    %2204 = vmatpush1.msra.mxu0 0.0
    %2205 = vmatprep.subr.mxu0 0.0
    %2206 = vmatpush1.msra.mxu0 0.0
    %2207 = vmatprep.subr.mxu0 0.0
    %2208 = vmatpush1.msra.mxu0 0.0
    %2209 = vmatprep.subr.mxu0 0.0
    %2210 = vmatpush1.msra.mxu0 0.0
    %2211 = vmatprep.subr.mxu0 0.0
    %2212 = vmatpush1.msra.mxu0 0.0
    %2213 = vmatprep.subr.mxu0 0.0
    %2214 = vmatpush1.msra.mxu0 0.0
    %2215 = vmatprep.subr.mxu0 0.0
    %2216 = vmatpush1.msra.mxu0 0.0
    %2217 = vmatprep.subr.mxu0 0.0
    %2218 = vmatpush1.msra.mxu0 0.0
    %2219 = vmatprep.subr.mxu0 0.0
    %2220 = vmatpush1.msra.mxu0 0.0
    %2221 = vmatprep.subr.mxu0 0.0
    %2222 = vmatpush1.msra.mxu0 0.0
    %2223 = vmatprep.subr.mxu0 0.0
    %2224 = vmatpush1.msra.mxu0 0.0
    %2225 = vmatprep.subr.mxu0 0.0
    %2226 = vmatpush1.msra.mxu0 0.0
    %2227 = vmatprep.subr.mxu0 0.0
    %2228 = vmatpush1.msra.mxu0 0.0
    %2229 = vmatprep.subr.mxu0 0.0
    %2230 = vmatpush1.msra.mxu0 0.0
    %2231 = vmatprep.subr.mxu0 0.0
    %2232 = vmatpush1.msra.mxu0 0.0
    %2233 = vmatprep.subr.mxu0 0.0
    %2234 = vmatpush1.msra.mxu0 0.0
    %2235 = vmatprep.mubr.f32.mxu0 0.0
    %2236 = vmatmul.mubr.f32.gmra.mrb[0].mxu0 %v2169
    %v2237 = vpop.f32.mrb[0].mxu0
    %v2238 = vadd.f32 0.0, %v2237
    %v2239 = vpop.f32.mrb[0].mxu0
    %2240 = vdwg.mxu0
    %v2241 = vadd.f32 %v2166, %v2238
    %v2242 = vxor.u32 %v2241, 2147483648
    %v2243 = vmul.f32 %v2242, 1.442695
    %v2244 = vpow.pop %v2243
    %v2245 = vadd.f32 %v2244, 1.0
    %v2246 = vrcp.pop %v2245
    %v2247 = vmul.f32 1.0, %v2246
    %v2248 = vtanh.pop %v2241
    %v2249 = vsel %vm74, %v2248, %v2247
    %v2250 = vld [vmem:[%s1430] sm:$0xff]
    %2252 = vrot.lane.b32.xlu0 %v2250, 32
    %v2253 = vpop.permute.xlu0 %2252
    %v2255 = vmul.f32 %v2249, %v2253
    %2257 = vrot.lane.b32.xlu0 %v2249, 64
    %v2258 = vpop.permute.xlu0 %2257
    %v2260 = vmul.f32 %v2249, %v2258
    %2262 = vrot.lane.b32.xlu0 %v2260, 32
    %v2263 = vpop.permute.xlu0 %2262
    %v2265 = vadd.f32 %v2255, %v2263
    %v2266 = vtanh.pop %v2265
    %2268 = vrot.lane.b32.xlu0 %v2266, 64
    %v2269 = vpop.permute.xlu0 %2268
    %v2271 = vmul.f32 %v2249, %v2269
    %2273 = vrot.lane.b32.xlu0 %v2265, 96
    %v2274 = vpop.permute.xlu0 %2273
    %2276 = vst.msk [vmem:[%s1430] sm:$0xff] %vm236, %v2274
    %2278 = vrot.lane.b32.xlu0 %v2271, 32
    %v2279 = vpop.permute.xlu0 %2278
    %2281 = vst.msk [vmem:[%s1346] sm:$0xff] %vm236, %v2279
    %2282 = vst.msk [vmem:[%s1183] sm:$0xff] %vm236, %v2279
    %v2283 = vld [vmem:[#allocation3] sm:$0xff]
    %v2284 = vld [vmem:[#allocation3 + $0x8] sm:$0xff]
    %v2285 = vld [vmem:[#allocation3 + $0x10] sm:$0xff]
    %v2286 = vld [vmem:[#allocation3 + $0x18] sm:$0xff]
    %v2287 = vld [vmem:[#allocation3 + $0x20] sm:$0xff]
    %v2288 = vld [vmem:[#allocation3 + $0x28] sm:$0xff]
    %v2289 = vld [vmem:[#allocation3 + $0x30] sm:$0xff]
    %v2290 = vld [vmem:[#allocation3 + $0x38] sm:$0xff]
    %v2291 = vld [vmem:[#allocation9] sm:$0xff]
    %v2292 = vld [vmem:[#allocation9 + $0x8] sm:$0xff]
    %v2293 = vld [vmem:[#allocation9 + $0x10] sm:$0xff]
    %v2294 = vld [vmem:[#allocation9 + $0x18] sm:$0xff]
    %v2295 = vld [vmem:[%s8] sm:$0x1]
    %v2297 = vlaneseq
    %v2298 = vshrl.u32 %v2297, 7
    %v2299 = vsub.s32 0, %v2298
    %v2300 = vrot.slane %v2295, %v2299
    %v2303 = vsel %vm236, %v2283, 0
    %v2306 = vsel %vm236, %v2284, 0
    %v2309 = vsel %vm236, %v2285, 0
    %v2312 = vsel %vm236, %v2286, 0
    %v2315 = vsel %vm236, %v2287, 0
    %v2318 = vsel %vm236, %v2288, 0
    %v2321 = vsel %vm236, %v2289, 0
    %v2324 = vsel %vm236, %v2290, 0
    %2326 = vmatprep.subr.mxu0 0.0
    %2327 = vmatpush1.msra.mxu0 %v2291
    %2328 = vmatprep.subr.mxu0 0.0
    %2329 = vmatpush1.msra.mxu0 %v2292
    %2330 = vmatprep.subr.mxu0 0.0
    %2331 = vmatpush1.msra.mxu0 %v2293
    %2332 = vmatprep.subr.mxu0 0.0
    %2333 = vmatpush1.msra.mxu0 %v2294
    %2334 = vmatprep.subr.mxu0 0.0
    %2335 = vmatpush1.msra.mxu0 0.0
    %2336 = vmatprep.subr.mxu0 0.0
    %2337 = vmatpush1.msra.mxu0 0.0
    %2338 = vmatprep.subr.mxu0 0.0
    %2339 = vmatpush1.msra.mxu0 0.0
    %2340 = vmatprep.subr.mxu0 0.0
    %2341 = vmatpush1.msra.mxu0 0.0
    %2342 = vmatprep.subr.mxu0 0.0
    %2343 = vmatpush1.msra.mxu0 0.0
    %2344 = vmatprep.subr.mxu0 0.0
    %2345 = vmatpush1.msra.mxu0 0.0
    %2346 = vmatprep.subr.mxu0 0.0
    %2347 = vmatpush1.msra.mxu0 0.0
    %2348 = vmatprep.subr.mxu0 0.0
    %2349 = vmatpush1.msra.mxu0 0.0
    %2350 = vmatprep.subr.mxu0 0.0
    %2351 = vmatpush1.msra.mxu0 0.0
    %2352 = vmatprep.subr.mxu0 0.0
    %2353 = vmatpush1.msra.mxu0 0.0
    %2354 = vmatprep.subr.mxu0 0.0
    %2355 = vmatpush1.msra.mxu0 0.0
    %2356 = vmatprep.subr.mxu0 0.0
    %2357 = vmatpush1.msra.mxu0 0.0
    %2358 = vmatprep.subr.mxu0 0.0
    %2359 = vmatpush1.msra.mxu0 0.0
    %2360 = vmatprep.subr.mxu0 0.0
    %2361 = vmatpush1.msra.mxu0 0.0
    %2362 = vmatprep.subr.mxu0 0.0
    %2363 = vmatpush1.msra.mxu0 0.0
    %2364 = vmatprep.subr.mxu0 0.0
    %2365 = vmatpush1.msra.mxu0 0.0
    %2366 = vmatprep.subr.mxu0 0.0
    %2367 = vmatpush1.msra.mxu0 0.0
    %2368 = vmatprep.subr.mxu0 0.0
    %2369 = vmatpush1.msra.mxu0 0.0
    %2370 = vmatprep.subr.mxu0 0.0
    %2371 = vmatpush1.msra.mxu0 0.0
    %2372 = vmatprep.subr.mxu0 0.0
    %2373 = vmatpush1.msra.mxu0 0.0
    %2374 = vmatprep.subr.mxu0 0.0
    %2375 = vmatpush1.msra.mxu0 0.0
    %2376 = vmatprep.subr.mxu0 0.0
    %2377 = vmatpush1.msra.mxu0 0.0
    %2378 = vmatprep.subr.mxu0 0.0
    %2379 = vmatpush1.msra.mxu0 0.0
    %2380 = vmatprep.subr.mxu0 0.0
    %2381 = vmatpush1.msra.mxu0 0.0
    %2382 = vmatprep.subr.mxu0 0.0
    %2383 = vmatpush1.msra.mxu0 0.0
    %2384 = vmatprep.subr.mxu0 0.0
    %2385 = vmatpush1.msra.mxu0 0.0
    %2386 = vmatprep.subr.mxu0 0.0
    %2387 = vmatpush1.msra.mxu0 0.0
    %2388 = vmatprep.subr.mxu0 0.0
    %2389 = vmatpush1.msra.mxu0 0.0
    %2390 = vmatprep.mubr.f32.mxu0 0.0
    %2391 = vmatmul.mubr.f32.gmra.mrb[0].mxu0 %v2303
    %v2392 = vpop.f32.mrb[0].mxu0
    %v2393 = vadd.f32 %v2300, %v2392
    %v2394 = vpop.f32.mrb[0].mxu0
    %2395 = vmatprep.mubr.f32.mxu0 0.0
    %2396 = vmatmul.mubr.f32.gmra.mrb[0].mxu0 %v2306
    %v2397 = vpop.f32.mrb[0].mxu0
    %v2398 = vadd.f32 %v2300, %v2397
    %v2399 = vpop.f32.mrb[0].mxu0
    %2400 = vmatprep.mubr.f32.mxu0 0.0
    %2401 = vmatmul.mubr.f32.gmra.mrb[0].mxu0 %v2309
    %v2402 = vpop.f32.mrb[0].mxu0
    %v2403 = vadd.f32 %v2300, %v2402
    %v2404 = vpop.f32.mrb[0].mxu0
    %2405 = vmatprep.mubr.f32.mxu0 0.0
    %2406 = vmatmul.mubr.f32.gmra.mrb[0].mxu0 %v2312
    %v2407 = vpop.f32.mrb[0].mxu0
    %v2408 = vadd.f32 %v2300, %v2407
    %v2409 = vpop.f32.mrb[0].mxu0
    %2410 = vmatprep.mubr.f32.mxu0 0.0
    %2411 = vmatmul.mubr.f32.gmra.mrb[0].mxu0 %v2315
    %v2412 = vpop.f32.mrb[0].mxu0
    %v2413 = vadd.f32 %v2300, %v2412
    %v2414 = vpop.f32.mrb[0].mxu0
    %2415 = vmatprep.mubr.f32.mxu0 0.0
    %2416 = vmatmul.mubr.f32.gmra.mrb[0].mxu0 %v2318
    %v2417 = vpop.f32.mrb[0].mxu0
    %v2418 = vadd.f32 %v2300, %v2417
    %v2419 = vpop.f32.mrb[0].mxu0
    %2420 = vmatprep.mubr.f32.mxu0 0.0
    %2421 = vmatmul.mubr.f32.gmra.mrb[0].mxu0 %v2321
    %v2422 = vpop.f32.mrb[0].mxu0
    %v2423 = vadd.f32 %v2300, %v2422
    %v2424 = vpop.f32.mrb[0].mxu0
    %2425 = vmatprep.mubr.f32.mxu0 0.0
    %2426 = vmatmul.mubr.f32.gmra.mrb[0].mxu0 %v2324
    %v2427 = vpop.f32.mrb[0].mxu0
    %v2428 = vadd.f32 %v2300, %v2427
    %v2429 = vpop.f32.mrb[0].mxu0
    %2430 = vdwg.mxu0
    %2431 = vst [vmem:[#allocation11] sm:$0xff] %v2393
    %2432 = vst [vmem:[#allocation11 + $0x8] sm:$0xff] %v2398
    %2433 = vst [vmem:[#allocation11 + $0x10] sm:$0xff] %v2403
    %2434 = vst [vmem:[#allocation11 + $0x18] sm:$0xff] %v2408
    %2435 = vst [vmem:[#allocation11 + $0x20] sm:$0xff] %v2413
    %2436 = vst [vmem:[#allocation11 + $0x28] sm:$0xff] %v2418
    %2437 = vst [vmem:[#allocation11 + $0x30] sm:$0xff] %v2423
    %2438 = vst [vmem:[#allocation11 + $0x38] sm:$0xff] %v2428
    // Predicated region
    $region50: #{tpu_custom_call.1} parent=1 // pred_check
      _
    $region51: #{tpu_custom_call.1} parent=1 // pred_check_branch
      %2440 = sbr.rel (0) target = $region53
    $region52: #{tpu_custom_call.1} parent=1 // pred_region
      %s2442 = ssub.s32 1024, 1024
      %2443 = vsyncadd [#allocation8], %s2442
      %s2444 = sshll.u32 [#allocation11], 4
      %s2445 = int_to_ptr.vmem [resolvable:$true] %s2444
      %2450 = dma.vmem_to_hbm [thread:$0]  %s2445, 1024, %s9, [#allocation8], 128, 128, 8
    $region53: #{tpu_custom_call.1} parent=1 // pred_fallthru
      _
    // Predicated region
    $region54: #{tpu_custom_call.1} parent=1 // pred_check
      _
    $region55: #{tpu_custom_call.1} parent=1 // pred_check_branch
      %2452 = sbr.rel (0) target = $region57
    $region56: #{tpu_custom_call.1} parent=1 // pred_region
      %2453 = dma.done [#allocation8], 1024
    $region57: #{tpu_custom_call.1} parent=1 // pred_fallthru
      _
    %2454 = vsyncpa [#allocation7], 1
    %2455 = vsyncpa [#allocation10], 1
    %2456 = vsyncpa [#allocation8], 1

</llo_original>
